<compile_context>
chip_gen: v7x
topology: tpu7x:2x2x1
jax: 0.10.0
libtpu: 0.0.40
codegen_flags: <defaults>
</compile_context>

<pallas_src>
import math

import numpy as np
import jax
import jax.numpy as jnp
from jax.experimental import pallas as pl
from jax.experimental.pallas import tpu as pltpu


_LAYER_PARAM_NAMES = ('ln1w', 'ln1b', 'wq', 'bq', 'wk', 'bk', 'wv', 'bv',
                      'wo', 'ln2w', 'ln2b', 'wp1', 'bp1', 'wp2', 'bp2')
_HEAD_PARAM_NAMES = ('fnw', 'fnb', 'rw1', 'rb1', 'rwa', 'rba',
                     'rwb', 'rbb', 'rwc', 'rbc')


# ---------------------------------------------------------------------------
# Fused kernel: all GraphLayers + final LayerNorm + RankingHead.
# ---------------------------------------------------------------------------
def make_fused_kernel(Bt, n, d, n_head, d_head, resident):
    rows = Bt * n
    G = Bt * n_head                       # head-batched batch dim, g = h*Bt + b
    bf16 = jnp.bfloat16
    f32 = jnp.float32

    def layernorm(x, w, b):
        mu = jnp.mean(x, axis=-1, keepdims=True)
        var = jnp.mean((x - mu) ** 2, axis=-1, keepdims=True)
        return (x - mu) * jax.lax.rsqrt(var + 1e-5) * w + b

    def mm(a, w_bf16):
        # MXU matmul: bf16 operands, f32 accumulation.
        return jnp.dot(a.astype(bf16), w_bf16, preferred_element_type=f32)

    def kernel(z_ref, mrow_ref, mcol_ref,
               ln1w_ref, ln1b_ref, wq_ref, bq_ref, wk_ref, bk_ref,
               wv_ref, bv_ref, wo_ref, ln2w_ref, ln2b_ref,
               wp1_ref, bp1_ref, wp2_ref, bp2_ref,
               fnw_ref, fnb_ref, rw1_ref, rb1_ref, rwa_ref, rba_ref,
               rwb_ref, rbb_ref, rwc_ref, rbc_ref,
               out_ref, z_scr, msk_scr, nm_scr):
        layer = pl.program_id(1)
        n_layers = pl.num_programs(1)

        def LW(ref):
            # resident: full (L, ...) stack lives in VMEM, pick this layer.
            # streamed: this layer's (1, ...) block was DMA'd for this step.
            return ref[layer] if resident else ref[0]

        # ---- layer-invariant init (hoisted out of the layer loop) ----
        @pl.when(layer == 0)
        def _():
            z_scr[...] = z_ref[...].reshape(rows, d)
            m2 = mcol_ref[...] * mrow_ref[...]                    # (Bt, n, n)
            big = jnp.broadcast_to(m2[None], (n_head, Bt, n, n)).reshape(G, n, n)
            msk_scr[...] = big                                    # multiplicative
            nm_scr[...] = jnp.where(big > 0, f32(0.0), f32(-1e20))  # additive

        Z = z_scr[...]                                            # (rows, d) f32

        # ---------------- attention block ----------------
        Zn = layernorm(Z, LW(ln1w_ref), LW(ln1b_ref))
        Znb = Zn.astype(bf16)
        # three lane-aligned projections (Q pre-scaled by 1/sqrt(d_head))
        Q = (mm(Znb, LW(wq_ref)) + LW(bq_ref)).reshape(Bt, n, d)
        K = (mm(Znb, LW(wk_ref)) + LW(bk_ref)).reshape(Bt, n, d)
        V = (mm(Znb, LW(wv_ref)) + LW(bv_ref)).reshape(Bt, n, d)

        def to_heads(X):
            # (Bt, n, d) -> (n_head*Bt, n, d_head), g = h*Bt + b
            return jnp.concatenate(
                [X[:, :, h * d_head:(h + 1) * d_head] for h in range(n_head)],
                axis=0).astype(bf16)

        Qh, Kh, Vh = to_heads(Q), to_heads(K), to_heads(V)

        # one batched score matmul, one masked softmax, one batched PV matmul
        S = jnp.einsum('gnd,gmd->gnm', Qh, Kh,
                       preferred_element_type=f32) + nm_scr[...]  # (G, n, n)
        m = jnp.max(S, axis=-1, keepdims=True)
        e = jnp.exp(S - m)
        P = e * pl.reciprocal(jnp.sum(e, axis=-1, keepdims=True), approx=True)
        P = P * msk_scr[...]
        PV = jnp.einsum('gnm,gmd->gnd', P.astype(bf16), Vh,
                        preferred_element_type=f32)               # (G, n, dh)

        # leaky_relu then output projection folded per head into a single
        # head-batched matmul against the head-split o_net weight, summed.
        A = jnp.where(PV >= 0, PV, 0.01 * PV)
        A = A.reshape(n_head, rows, d_head).astype(bf16)
        proj = jnp.einsum('hrd,hde->hre', A, LW(wo_ref),
                          preferred_element_type=f32)             # (n_head, rows, d)
        Z1 = jnp.sum(proj, axis=0) + Z                            # o_net (no bias) + residual

        # ---------------- FFN block ----------------
        Z2n = layernorm(Z1, LW(ln2w_ref), LW(ln2b_ref))
        H = jnp.maximum(mm(Z2n, LW(wp1_ref)) + LW(bp1_ref), 0.0)
        z_scr[...] = mm(H, LW(wp2_ref)) + LW(bp2_ref) + Z1

        # -------- final LayerNorm + ranking head on the last layer --------
        @pl.when(layer == n_layers - 1)
        def _():
            Zf = layernorm(z_scr[...], fnw_ref[...], fnb_ref[...])
            Y = mm(Zf, rw1_ref[...]) + rb1_ref[...]               # Conv1d(dim, final_dim, 1)
            Pp = jnp.maximum(mm(Y, rwa_ref[...]) + rba_ref[...], 0.0)
            Pp = mm(Pp, rwb_ref[...]) + rbb_ref[...]
            R = (Y + Pp).astype(bf16)                             # ResidualBlock output
            # single lane-dense (1, rows) row: one transposed-RHS dot with wc
            row = jax.lax.dot_general(
                rwc_ref[...], R, (((1,), (1,)), ((), ())),
                preferred_element_type=f32) + rbc_ref[...]
            out_ref[0] = row

    return kernel


# ---------------------------------------------------------------------------
# Device-aware planning helpers.
# ---------------------------------------------------------------------------
def _tpu_generation():
    try:
        kind = jax.devices()[0].device_kind.lower()
    except Exception:
        kind = ""
    if 'v7' in kind or '7x' in kind:
        return 7
    if 'v6' in kind:
        return 6
    if 'v5' in kind:
        return 5
    return 6


def choose_batch_tile(bsz, n, gen):
    """v7x: keep >=2 parallel batch blocks for the two TensorCores.
    v5e/v6e: single TensorCore -> fewer, bigger blocks amortize per-step
    overhead and weight traffic."""
    min_blocks = 2 if (gen >= 7 and bsz >= 2) else 1
    row_cap = 256 if gen >= 7 else 512
    best = 1
    for bt in range(1, bsz + 1):
        if bsz % bt == 0 and bsz // bt >= min_blocks and bt * n <= row_cap:
            best = bt
    return best


def _padded_nbytes(shape, dtype):
    """Rough VMEM footprint: pad second-minor to 8 and minor to 128."""
    shape = tuple(int(s) for s in shape)
    if len(shape) == 0:
        shape = (1, 1)
    if len(shape) == 1:
        shape = (1,) + shape
    lead = int(np.prod(shape[:-2])) if len(shape) > 2 else 1
    sub = -(-shape[-2] // 8) * 8
    lane = -(-shape[-1] // 128) * 128
    return lead * sub * lane * jnp.dtype(dtype).itemsize


def _vmem_plan(Bt, n, d, n_head, kp, gen):
    rows, G = Bt * n, Bt * n_head
    # v7x: 64 MiB/TC -> cap well below; v5e/v6e: 128 MiB -> generous cap.
    budget = (48 << 20) if gen >= 7 else (96 << 20)
    act = (_padded_nbytes((Bt, n, d), jnp.float32)
           + _padded_nbytes((Bt, 1, n), jnp.float32)
           + _padded_nbytes((Bt, n, 1), jnp.float32)
           + _padded_nbytes((1, 1, rows), jnp.float32))
    layer_full = sum(_padded_nbytes(kp[k].shape, kp[k].dtype)
                     for k in _LAYER_PARAM_NAMES)
    layer_blk = sum(_padded_nbytes((1,) + kp[k].shape[1:], kp[k].dtype)
                    for k in _LAYER_PARAM_NAMES)
    head = sum(_padded_nbytes(kp[k].shape, kp[k].dtype)
               for k in _HEAD_PARAM_NAMES)
    scratch = (_padded_nbytes((rows, d), jnp.float32)
               + 2 * _padded_nbytes((G, n, n), jnp.float32))
    headroom = 8 << 20                       # Mosaic-internal scratch headroom
    need_res = 2 * (act + layer_full + head) + scratch + headroom
    resident = need_res <= budget
    need = need_res if resident else (2 * (act + layer_blk + head)
                                      + scratch + headroom)
    vmem_limit = int(min(budget, max(32 << 20, need)))
    return resident, vmem_limit


# ---------------------------------------------------------------------------
# Parameter folding into the kernel layout.
# ---------------------------------------------------------------------------
def build_kernel_params(params, cfg):
    dim, n_head = cfg['dim'], cfg['n_head']
    d_head = dim // n_head
    inv_sqrtd = jnp.float32(1.0 / math.sqrt(d_head))
    bf16 = jnp.bfloat16

    def stack(name):
        return jnp.stack([lp[name] for lp in params['layers']], axis=0)

    kp = {
        'ln1w': stack('ln1w'), 'ln1b': stack('ln1b'),
        # 1/sqrt(d_head) folded into Q (zero runtime cost)
        'wq': (stack('wq') * inv_sqrtd).astype(bf16), 'bq': stack('bq') * inv_sqrtd,
        'wk': stack('wk').astype(bf16), 'bk': stack('bk'),
        'wv': stack('wv').astype(bf16), 'bv': stack('bv'),
        # o_net weight split per head: (L, n_head, d_head, dim)
        'wo': stack('wo').reshape(-1, n_head, d_head, dim).astype(bf16),
        'ln2w': stack('ln2w'), 'ln2b': stack('ln2b'),
        'wp1': stack('wp1').astype(bf16), 'bp1': stack('bp1'),
        'wp2': stack('wp2').astype(bf16), 'bp2': stack('bp2'),
    }
    rp = params['rank']
    kp.update({
        'fnw': rp['nw'], 'fnb': rp['nb'],
        'rw1': rp['w1'].astype(bf16), 'rb1': rp['b1'],
        'rwa': rp['wa'].astype(bf16), 'rba': rp['ba'],
        'rwb': rp['wb'].astype(bf16), 'rbb': rp['bb'],
        'rwc': rp['wc'].astype(bf16), 'rbc': rp['bc'],
    })
    return kp


# ---------------------------------------------------------------------------
# pallas_call wrapper.
# ---------------------------------------------------------------------------
def fused_forward(Z, mask, kp, n_head):
    bsz, n, d = Z.shape
    d_head = d // n_head
    n_layers = int(kp['wq'].shape[0])
    gen = _tpu_generation()
    Bt = choose_batch_tile(bsz, n, gen)
    rows = Bt * n
    G = Bt * n_head
    n_blocks = bsz // Bt
    resident, vmem_limit = _vmem_plan(Bt, n, d, n_head, kp, gen)

    mrow = mask[:, None, :]                  # (B, 1, N)
    mcol = mask[:, :, None]                  # (B, N, 1)

    layer_args = [kp[name] for name in _LAYER_PARAM_NAMES]
    head_args = [kp[name] for name in _HEAD_PARAM_NAMES]

    in_specs = [
        pl.BlockSpec((Bt, n, d), lambda b, l: (b, 0, 0)),
        pl.BlockSpec((Bt, 1, n), lambda b, l: (b, 0, 0)),
        pl.BlockSpec((Bt, n, 1), lambda b, l: (b, 0, 0)),
    ]
    for p in layer_args:
        if resident:
            # whole stack stays resident in VMEM, DMA'd once per kernel
            in_specs.append(pl.BlockSpec(
                p.shape, lambda b, l, nd=p.ndim: (0,) * nd))
        else:
            # stream this layer's slice per (batch_block, layer) grid step
            in_specs.append(pl.BlockSpec(
                (1,) + p.shape[1:], lambda b, l, nd=p.ndim: (l,) + (0,) * (nd - 1)))
    for p in head_args:                      # untiled, constant block
        in_specs.append(pl.BlockSpec(
            p.shape, lambda b, l, nd=p.ndim: (0,) * nd))

    # Advisory cost estimate so XLA can overlap surrounding glue ops.
    d_inner = int(kp['wp1'].shape[-1])
    fdim = int(kp['rw1'].shape[-1])
    fl_layer = (3 * 2 * rows * d * d + 4 * G * n * n * d_head
                + 2 * rows * d * d + 4 * rows * d * d_inner)
    fl_head = 2 * rows * d * fdim + 4 * rows * fdim * fdim + 2 * rows * fdim
    flops = n_blocks * (n_layers * fl_layer + fl_head)
    transc = n_blocks * n_layers * G * n * n
    pbytes = sum(int(np.prod(kp[k].shape)) * jnp.dtype(kp[k].dtype).itemsize
                 for k in _LAYER_PARAM_NAMES + _HEAD_PARAM_NAMES)
    io_bytes = bsz * n * d * 4 + 3 * bsz * n * 4
    cost = pl.CostEstimate(
        flops=int(flops), transcendentals=int(transc),
        bytes_accessed=int(io_bytes + (pbytes if resident else pbytes * n_blocks)))

    kernel = make_fused_kernel(Bt, n, d, n_head, d_head, resident)
    out = pl.pallas_call(
        kernel,
        out_shape=jax.ShapeDtypeStruct((n_blocks, 1, rows), jnp.float32),
        grid=(n_blocks, n_layers),           # layer axis MUST stay innermost
        in_specs=in_specs,
        out_specs=pl.BlockSpec((1, 1, rows), lambda b, l: (b, 0, 0)),
        scratch_shapes=[pltpu.VMEM((rows, d), jnp.float32),   # residual stream
                        pltpu.VMEM((G, n, n), jnp.float32),   # multiplicative mask
                        pltpu.VMEM((G, n, n), jnp.float32)],  # additive mask
        compiler_params=pltpu.CompilerParams(
            dimension_semantics=("parallel", "arbitrary"),
            vmem_limit_bytes=vmem_limit),
        cost_estimate=cost,
    )(Z, mrow, mcol, *layer_args, *head_args)                 # (n_blocks, 1, rows)
    return out.reshape(bsz, n)


# ---------------------------------------------------------------------------
# Parameter init (deterministic, mirrors GraphTransformer.weights_init:
# Linear/Conv1d weights ~ U(-0.1, 0.1), biases = 0, LayerNorm defaults,
# Embeddings ~ N(0, 1)).
# ---------------------------------------------------------------------------
def init_params(key, cfg):
    dim, d_inner, d_embed = cfg['dim'], cfg['d_inner'], cfg['d_embed']
    n_feat, final_dim = cfg['n_feat'], cfg['final_dim']
    n_head, n_toks, n_layers = cfg['n_head'], cfg['n_toks'], cfg['n_layers']
    d_head = dim // n_head
    feat_dim = dim - d_embed * len(n_toks)

    keys = iter(jax.random.split(key, 64))

    def unif(shape):
        return jax.random.uniform(next(keys), shape, jnp.float32, -0.1, 0.1)

    params = {}
    params['emb'] = [jax.random.normal(next(keys), (nt + 1, d_embed), jnp.float32)
                     for nt in n_toks]
    params['feat_w'] = unif((n_feat, feat_dim))       # (in, out)
    params['feat_b'] = jnp.zeros((feat_dim,), jnp.float32)

    layers = []
    for _ in range(n_layers):
        lp = {}
        lp['ln1w'] = jnp.ones((1, dim), jnp.float32)
        lp['ln1b'] = jnp.zeros((1, dim), jnp.float32)
        # fused qkv weight (torch layout (3*dim, dim)), split with the exact
        # view(bsz, n, n_head, 3*d_head).chunk(3, dim=3) semantics: V, Q, K
        Wqkv = unif((3 * dim, dim))
        Wr = Wqkv.reshape(n_head, 3, d_head, dim)
        lp['wv'] = Wr[:, 0].reshape(dim, dim).T       # (in, out); cols = (head, d_head)
        lp['wq'] = Wr[:, 1].reshape(dim, dim).T
        lp['wk'] = Wr[:, 2].reshape(dim, dim).T
        lp['bv'] = jnp.zeros((1, dim), jnp.float32)
        lp['bq'] = jnp.zeros((1, dim), jnp.float32)
        lp['bk'] = jnp.zeros((1, dim), jnp.float32)
        lp['wo'] = unif((dim, dim)).T                 # o_net (bias=False); rows=(head,d_head)
        lp['ln2w'] = jnp.ones((1, dim), jnp.float32)
        lp['ln2b'] = jnp.zeros((1, dim), jnp.float32)
        lp['wp1'] = unif((d_inner, dim)).T
        lp['bp1'] = jnp.zeros((1, d_inner), jnp.float32)
        lp['wp2'] = unif((dim, d_inner)).T
        lp['bp2'] = jnp.zeros((1, dim), jnp.float32)
        layers.append(lp)
    params['layers'] = layers

    rp = {}
    rp['nw'] = jnp.ones((1, dim), jnp.float32)        # final LayerNorm
    rp['nb'] = jnp.zeros((1, dim), jnp.float32)
    rp['w1'] = unif((final_dim, dim)).T               # Conv1d(dim, final_dim, 1)
    rp['b1'] = jnp.zeros((1, final_dim), jnp.float32)
    rp['wa'] = unif((final_dim, final_dim)).T         # ResidualBlock conv 1
    rp['ba'] = jnp.zeros((1, final_dim), jnp.float32)
    rp['wb'] = unif((final_dim, final_dim)).T         # ResidualBlock conv 2
    rp['bb'] = jnp.zeros((1, final_dim), jnp.float32)
    rp['wc'] = unif((1, final_dim))                   # Conv1d(final_dim, 1, 1), row vec
    rp['bc'] = jnp.zeros((1, 1), jnp.float32)
    params['rank'] = rp
    return params


# ---------------------------------------------------------------------------
# Full forward (glue in plain JAX, hot path in the fused Pallas kernel).
# ---------------------------------------------------------------------------
def graph_transformer_forward(x_feats, x_toks, mask, params, cfg):
    # embeddings + feature projection (glue)
    zs = [params['emb'][i][x_toks[..., i]] for i in range(len(cfg['n_toks']))]
    zs.append(x_feats @ params['feat_w'] + params['feat_b'])
    Z = jnp.concatenate(zs, axis=-1).astype(jnp.float32)

    kp = build_kernel_params(params, cfg)
    out = fused_forward(Z, mask.astype(jnp.float32), kp, cfg['n_head'])
    return jnp.squeeze(out)                           # mirrors torch .squeeze()


# ---------------------------------------------------------------------------
# Pure-JAX f32 reference (same canonical parameters) for a sanity check.
# ---------------------------------------------------------------------------
def reference_forward(x_feats, x_toks, mask, params, cfg):
    n_head = cfg['n_head']
    mask2 = jnp.einsum('bi,bj->bij', mask, mask)
    new_mask = jnp.where(mask2 > 0, 0.0, -1e20).astype(jnp.float32)
    zs = [params['emb'][i][x_toks[..., i]] for i in range(len(cfg['n_toks']))]
    zs.append(x_feats @ params['feat_w'] + params['feat_b'])
    Z = jnp.concatenate(zs, axis=-1).astype(jnp.float32)
    b, n, d = Z.shape
    dh = d // n_head

    def ln(x, w, bb):
        mu = x.mean(-1, keepdims=True)
        var = ((x - mu) ** 2).mean(-1, keepdims=True)
        return (x - mu) / jnp.sqrt(var + 1e-5) * w + bb

    for lp in params['layers']:
        inp = Z
        Zn = ln(Z, lp['ln1w'][0], lp['ln1b'][0])
        V = (Zn @ lp['wv'] + lp['bv'][0]).reshape(b, n, n_head, dh)
        Q = (Zn @ lp['wq'] + lp['bq'][0]).reshape(b, n, n_head, dh)
        K = (Zn @ lp['wk'] + lp['bk'][0]).reshape(b, n, n_head, dh)
        W = jnp.einsum('bnij,bmij->binm', Q, K) / np.sqrt(dh) + new_mask[:, None]
        W = jax.nn.softmax(W, axis=3) * mask2[:, None]
        attn = jnp.einsum('binm,bmij->bnij', W, V).reshape(b, n, d)
        attn = jnp.where(attn >= 0, attn, 0.01 * attn) @ lp['wo']
        Z = attn + inp
        inp = Z
        Zn = ln(Z, lp['ln2w'][0], lp['ln2b'][0])
        Z = jnp.maximum(Zn @ lp['wp1'] + lp['bp1'][0], 0.0) @ lp['wp2'] + lp['bp2'][0] + inp

    rp = params['rank']
    Zn = ln(Z, rp['nw'][0], rp['nb'][0])
    Y = Zn @ rp['w1'] + rp['b1'][0]
    P = jnp.maximum(Y @ rp['wa'] + rp['ba'][0], 0.0) @ rp['wb'] + rp['bb'][0]
    R = Y + P
    out = jnp.sum(R * rp['wc'], axis=-1, keepdims=True) + rp['bc'][0]
    return jnp.squeeze(out)


if __name__ == "__main__":
    cfg = dict(dim=32, n_layers=2, d_inner=64, d_embed=8, n_feat=19,
               final_dim=64, n_head=4, n_toks=[5, 7])

    key = jax.random.PRNGKey(0)
    kp_, kf, kt = jax.random.split(key, 3)
    params = init_params(kp_, cfg)

    bsz, n_elem = 2, 8
    x_feats = jax.random.normal(kf, (bsz, n_elem, cfg['n_feat']), jnp.float32)
    x_toks = jnp.stack(
        [jax.random.randint(jax.random.fold_in(kt, i), (bsz, n_elem), 0, nt + 1)
         for i, nt in enumerate(cfg['n_toks'])], axis=-1)
    mask = jnp.array([[1.0] * n_elem,
                      [1.0] * (n_elem - 2) + [0.0] * 2], jnp.float32)

    out = graph_transformer_forward(x_feats, x_toks, mask, params, cfg)
    out = jax.block_until_ready(out)

    ref = reference_forward(x_feats, x_toks, mask, params, cfg)
    assert out.shape == (bsz, n_elem), out.shape
    np.testing.assert_allclose(np.asarray(out), np.asarray(ref),
                               atol=5e-2, rtol=5e-2)
    print("KERNEL_OK")
</pallas_src>

<mosaic_0001>
module attributes {stable_mosaic.version = 11 : i64} {
  func.func @kernel(%arg0: i32, %arg1: i32, %arg2: memref<2x8x32xf32, #tpu.memory_space<vmem>>, %arg3: memref<2x1x8xf32, #tpu.memory_space<vmem>>, %arg4: memref<2x8x1xf32, #tpu.memory_space<vmem>>, %arg5: memref<2x1x32xf32, #tpu.memory_space<vmem>>, %arg6: memref<2x1x32xf32, #tpu.memory_space<vmem>>, %arg7: memref<2x32x32xbf16, #tpu.memory_space<vmem>>, %arg8: memref<2x1x32xf32, #tpu.memory_space<vmem>>, %arg9: memref<2x32x32xbf16, #tpu.memory_space<vmem>>, %arg10: memref<2x1x32xf32, #tpu.memory_space<vmem>>, %arg11: memref<2x32x32xbf16, #tpu.memory_space<vmem>>, %arg12: memref<2x1x32xf32, #tpu.memory_space<vmem>>, %arg13: memref<2x4x8x32xbf16, #tpu.memory_space<vmem>>, %arg14: memref<2x1x32xf32, #tpu.memory_space<vmem>>, %arg15: memref<2x1x32xf32, #tpu.memory_space<vmem>>, %arg16: memref<2x32x64xbf16, #tpu.memory_space<vmem>>, %arg17: memref<2x1x64xf32, #tpu.memory_space<vmem>>, %arg18: memref<2x64x32xbf16, #tpu.memory_space<vmem>>, %arg19: memref<2x1x32xf32, #tpu.memory_space<vmem>>, %arg20: memref<1x32xf32, #tpu.memory_space<vmem>>, %arg21: memref<1x32xf32, #tpu.memory_space<vmem>>, %arg22: memref<32x64xbf16, #tpu.memory_space<vmem>>, %arg23: memref<1x64xf32, #tpu.memory_space<vmem>>, %arg24: memref<64x64xbf16, #tpu.memory_space<vmem>>, %arg25: memref<1x64xf32, #tpu.memory_space<vmem>>, %arg26: memref<64x64xbf16, #tpu.memory_space<vmem>>, %arg27: memref<1x64xf32, #tpu.memory_space<vmem>>, %arg28: memref<1x64xbf16, #tpu.memory_space<vmem>>, %arg29: memref<1x1xf32, #tpu.memory_space<vmem>>, %arg30: memref<1x1x16xf32, #tpu.memory_space<vmem>>, %arg31: memref<16x32xf32, #tpu.memory_space<vmem>>, %arg32: memref<8x8x8xf32, #tpu.memory_space<vmem>>, %arg33: memref<8x8x8xf32, #tpu.memory_space<vmem>>) attributes {dimension_semantics = [#tpu.dimension_semantics<parallel>, #tpu.dimension_semantics<arbitrary>], iteration_bounds = array<i64: 1, 2>, scalar_prefetch = 0 : i64, scratch_operands = 3 : i64, tpu.core_type = #tpu.core_type<tc>, window_params = [{transform_indices = @transform_0, window_bounds = array<i64: 2, 8, 32>}, {transform_indices = @transform_1, window_bounds = array<i64: 2, 1, 8>}, {transform_indices = @transform_2, window_bounds = array<i64: 2, 8, 1>}, {pipeline_mode = #tpu.pipeline_mode<synchronous>, transform_indices = @transform_3, window_bounds = array<i64: 2, 1, 32>}, {pipeline_mode = #tpu.pipeline_mode<synchronous>, transform_indices = @transform_4, window_bounds = array<i64: 2, 1, 32>}, {pipeline_mode = #tpu.pipeline_mode<synchronous>, transform_indices = @transform_5, window_bounds = array<i64: 2, 32, 32>}, {pipeline_mode = #tpu.pipeline_mode<synchronous>, transform_indices = @transform_6, window_bounds = array<i64: 2, 1, 32>}, {pipeline_mode = #tpu.pipeline_mode<synchronous>, transform_indices = @transform_7, window_bounds = array<i64: 2, 32, 32>}, {pipeline_mode = #tpu.pipeline_mode<synchronous>, transform_indices = @transform_8, window_bounds = array<i64: 2, 1, 32>}, {pipeline_mode = #tpu.pipeline_mode<synchronous>, transform_indices = @transform_9, window_bounds = array<i64: 2, 32, 32>}, {pipeline_mode = #tpu.pipeline_mode<synchronous>, transform_indices = @transform_10, window_bounds = array<i64: 2, 1, 32>}, {pipeline_mode = #tpu.pipeline_mode<synchronous>, transform_indices = @transform_11, window_bounds = array<i64: 2, 4, 8, 32>}, {pipeline_mode = #tpu.pipeline_mode<synchronous>, transform_indices = @transform_12, window_bounds = array<i64: 2, 1, 32>}, {pipeline_mode = #tpu.pipeline_mode<synchronous>, transform_indices = @transform_13, window_bounds = array<i64: 2, 1, 32>}, {pipeline_mode = #tpu.pipeline_mode<synchronous>, transform_indices = @transform_14, window_bounds = array<i64: 2, 32, 64>}, {pipeline_mode = #tpu.pipeline_mode<synchronous>, transform_indices = @transform_15, window_bounds = array<i64: 2, 1, 64>}, {pipeline_mode = #tpu.pipeline_mode<synchronous>, transform_indices = @transform_16, window_bounds = array<i64: 2, 64, 32>}, {pipeline_mode = #tpu.pipeline_mode<synchronous>, transform_indices = @transform_17, window_bounds = array<i64: 2, 1, 32>}, {pipeline_mode = #tpu.pipeline_mode<synchronous>, transform_indices = @transform_18, window_bounds = array<i64: 1, 32>}, {pipeline_mode = #tpu.pipeline_mode<synchronous>, transform_indices = @transform_19, window_bounds = array<i64: 1, 32>}, {pipeline_mode = #tpu.pipeline_mode<synchronous>, transform_indices = @transform_20, window_bounds = array<i64: 32, 64>}, {pipeline_mode = #tpu.pipeline_mode<synchronous>, transform_indices = @transform_21, window_bounds = array<i64: 1, 64>}, {pipeline_mode = #tpu.pipeline_mode<synchronous>, transform_indices = @transform_22, window_bounds = array<i64: 64, 64>}, {pipeline_mode = #tpu.pipeline_mode<synchronous>, transform_indices = @transform_23, window_bounds = array<i64: 1, 64>}, {pipeline_mode = #tpu.pipeline_mode<synchronous>, transform_indices = @transform_24, window_bounds = array<i64: 64, 64>}, {pipeline_mode = #tpu.pipeline_mode<synchronous>, transform_indices = @transform_25, window_bounds = array<i64: 1, 64>}, {pipeline_mode = #tpu.pipeline_mode<synchronous>, transform_indices = @transform_26, window_bounds = array<i64: 1, 64>}, {pipeline_mode = #tpu.pipeline_mode<synchronous>, transform_indices = @transform_27, window_bounds = array<i64: 1, 1>}, {transform_indices = @transform_28, window_bounds = array<i64: 1, 1, 16>}]} {
    %c0_i32 = arith.constant 0 : i32
    %0 = arith.cmpi eq, %arg1, %c0_i32 : i32
    %1 = arith.extui %0 : i1 to i32
    %c0_i32_0 = arith.constant 0 : i32
    %2 = arith.cmpi ne, %1, %c0_i32_0 : i32
    scf.if %2 {
      %c0_65 = arith.constant 0 : index
      %c0_66 = arith.constant 0 : index
      %c0_67 = arith.constant 0 : index
      %166 = vector.load %arg2[%c0_65, %c0_66, %c0_67] : memref<2x8x32xf32, #tpu.memory_space<vmem>>, vector<2x8x32xf32>
      %167 = vector.shape_cast %166 : vector<2x8x32xf32> to vector<16x32xf32>
      %c0_68 = arith.constant 0 : index
      %c0_69 = arith.constant 0 : index
      %168 = vector.load %arg31[%c0_68, %c0_69] : memref<16x32xf32, #tpu.memory_space<vmem>>, vector<16x32xf32>
      tpu.vector_store %arg31[%c0_68, %c0_69], %167 {strides = array<i32>} : memref<16x32xf32, #tpu.memory_space<vmem>>, vector<16x32xf32>,
      %c0_70 = arith.constant 0 : index
      %c0_71 = arith.constant 0 : index
      %c0_72 = arith.constant 0 : index
      %169 = vector.load %arg4[%c0_70, %c0_71, %c0_72] : memref<2x8x1xf32, #tpu.memory_space<vmem>>, vector<2x8x1xf32>
      %c0_73 = arith.constant 0 : index
      %c0_74 = arith.constant 0 : index
      %c0_75 = arith.constant 0 : index
      %170 = vector.load %arg3[%c0_73, %c0_74, %c0_75] : memref<2x1x8xf32, #tpu.memory_space<vmem>>, vector<2x1x8xf32>
      %171 = vector.broadcast %169 : vector<2x8x1xf32> to vector<2x8x8xf32>
      %172 = vector.broadcast %170 : vector<2x1x8xf32> to vector<2x8x8xf32>
      %173 = arith.mulf %171, %172 : vector<2x8x8xf32>
      %174 = vector.shape_cast %173 : vector<2x8x8xf32> to vector<1x2x8x8xf32>
      %175 = vector.shape_cast %174 : vector<1x2x8x8xf32> to vector<1x2x8x8xf32>
      %176 = vector.broadcast %175 : vector<1x2x8x8xf32> to vector<4x2x8x8xf32>
      %177 = vector.shape_cast %176 : vector<4x2x8x8xf32> to vector<8x8x8xf32>
      %c0_76 = arith.constant 0 : index
      %c0_77 = arith.constant 0 : index
      %c0_78 = arith.constant 0 : index
      %178 = vector.load %arg32[%c0_76, %c0_77, %c0_78] : memref<8x8x8xf32, #tpu.memory_space<vmem>>, vector<8x8x8xf32>
      tpu.vector_store %arg32[%c0_76, %c0_77, %c0_78], %177 {strides = array<i32>} : memref<8x8x8xf32, #tpu.memory_space<vmem>>, vector<8x8x8xf32>,
      %cst_79 = arith.constant 0.000000e+00 : f32
      %179 = vector.broadcast %cst_79 : f32 to vector<8x8x8xf32>
      %180 = arith.cmpf ogt, %177, %179 : vector<8x8x8xf32>
      %cst_80 = arith.constant 0.000000e+00 : f32
      %cst_81 = arith.constant -1.000000e+20 : f32
      %181 = vector.broadcast %cst_80 : f32 to vector<8x8x8xf32>
      %182 = vector.broadcast %cst_81 : f32 to vector<8x8x8xf32>
      %183 = arith.select %180, %181, %182 : vector<8x8x8xi1>, vector<8x8x8xf32>
      %c0_82 = arith.constant 0 : index
      %c0_83 = arith.constant 0 : index
      %c0_84 = arith.constant 0 : index
      %184 = vector.load %arg33[%c0_82, %c0_83, %c0_84] : memref<8x8x8xf32, #tpu.memory_space<vmem>>, vector<8x8x8xf32>
      tpu.vector_store %arg33[%c0_82, %c0_83, %c0_84], %183 {strides = array<i32>} : memref<8x8x8xf32, #tpu.memory_space<vmem>>, vector<8x8x8xf32>,
    } else {
    }
    %c0 = arith.constant 0 : index
    %c0_1 = arith.constant 0 : index
    %3 = vector.load %arg31[%c0, %c0_1] : memref<16x32xf32, #tpu.memory_space<vmem>>, vector<16x32xf32>
    %4 = arith.index_cast %arg1 : i32 to index
    %c0_2 = arith.constant 0 : index
    %c0_3 = arith.constant 0 : index
    %5 = vector.load %arg5[%4, %c0_2, %c0_3] : memref<2x1x32xf32, #tpu.memory_space<vmem>>, vector<1x1x32xf32>
    %6 = vector.shape_cast %5 : vector<1x1x32xf32> to vector<1x32xf32>
    %7 = arith.index_cast %arg1 : i32 to index
    %c0_4 = arith.constant 0 : index
    %c0_5 = arith.constant 0 : index
    %8 = vector.load %arg6[%7, %c0_4, %c0_5] : memref<2x1x32xf32, #tpu.memory_space<vmem>>, vector<1x1x32xf32>
    %9 = vector.shape_cast %8 : vector<1x1x32xf32> to vector<1x32xf32>
    %cst = arith.constant dense<0.000000e+00> : vector<16xf32>
    %10 = vector.multi_reduction <add>, %3, %cst [1] : vector<16x32xf32> to vector<16xf32>
    %11 = vector.shape_cast %10 : vector<16xf32> to vector<16x1xf32>
    %cst_6 = arith.constant 3.200000e+01 : f32
    %12 = vector.broadcast %cst_6 : f32 to vector<16x1xf32>
    %13 = arith.divf %11, %12 : vector<16x1xf32>
    %14 = vector.broadcast %13 : vector<16x1xf32> to vector<16x32xf32>
    %15 = arith.subf %3, %14 : vector<16x32xf32>
    %16 = arith.mulf %15, %15 : vector<16x32xf32>
    %cst_7 = arith.constant dense<0.000000e+00> : vector<16xf32>
    %17 = vector.multi_reduction <add>, %16, %cst_7 [1] : vector<16x32xf32> to vector<16xf32>
    %18 = vector.shape_cast %17 : vector<16xf32> to vector<16x1xf32>
    %cst_8 = arith.constant 3.200000e+01 : f32
    %19 = vector.broadcast %cst_8 : f32 to vector<16x1xf32>
    %20 = arith.divf %18, %19 : vector<16x1xf32>
    %21 = vector.broadcast %13 : vector<16x1xf32> to vector<16x32xf32>
    %22 = arith.subf %3, %21 : vector<16x32xf32>
    %cst_9 = arith.constant 9.99999974E-6 : f32
    %23 = vector.broadcast %cst_9 : f32 to vector<16x1xf32>
    %24 = arith.addf %20, %23 : vector<16x1xf32>
    %25 = math.rsqrt %24 : vector<16x1xf32>
    %26 = vector.broadcast %25 : vector<16x1xf32> to vector<16x32xf32>
    %27 = arith.mulf %22, %26 : vector<16x32xf32>
    %28 = vector.broadcast %6 : vector<1x32xf32> to vector<16x32xf32>
    %29 = arith.mulf %27, %28 : vector<16x32xf32>
    %30 = vector.broadcast %9 : vector<1x32xf32> to vector<16x32xf32>
    %31 = arith.addf %29, %30 : vector<16x32xf32>
    %32 = arith.truncf %31 : vector<16x32xf32> to vector<16x32xbf16>
    %33 = arith.index_cast %arg1 : i32 to index
    %c0_10 = arith.constant 0 : index
    %c0_11 = arith.constant 0 : index
    %34 = vector.load %arg7[%33, %c0_10, %c0_11] : memref<2x32x32xbf16, #tpu.memory_space<vmem>>, vector<1x32x32xbf16>
    %35 = vector.shape_cast %34 : vector<1x32x32xbf16> to vector<32x32xbf16>
    %cst_12 = arith.constant dense<0.000000e+00> : vector<16x32xf32>
    %36 = tpu.matmul %32, %35, %cst_12 {dimension_numbers = #tpu.dot_dimension_numbers<[1], [0], [0], [1], [0, 0, 1, 1], [], []>} : vector<16x32xbf16>, vector<32x32xbf16>, vector<16x32xf32> -> vector<16x32xf32>
    %37 = arith.index_cast %arg1 : i32 to index
    %c0_13 = arith.constant 0 : index
    %c0_14 = arith.constant 0 : index
    %38 = vector.load %arg8[%37, %c0_13, %c0_14] : memref<2x1x32xf32, #tpu.memory_space<vmem>>, vector<1x1x32xf32>
    %39 = vector.shape_cast %38 : vector<1x1x32xf32> to vector<1x32xf32>
    %40 = vector.broadcast %39 : vector<1x32xf32> to vector<16x32xf32>
    %41 = arith.addf %36, %40 : vector<16x32xf32>
    %42 = vector.shape_cast %41 : vector<16x32xf32> to vector<2x8x32xf32>
    %43 = arith.index_cast %arg1 : i32 to index
    %c0_15 = arith.constant 0 : index
    %c0_16 = arith.constant 0 : index
    %44 = vector.load %arg9[%43, %c0_15, %c0_16] : memref<2x32x32xbf16, #tpu.memory_space<vmem>>, vector<1x32x32xbf16>
    %45 = vector.shape_cast %44 : vector<1x32x32xbf16> to vector<32x32xbf16>
    %cst_17 = arith.constant dense<0.000000e+00> : vector<16x32xf32>
    %46 = tpu.matmul %32, %45, %cst_17 {dimension_numbers = #tpu.dot_dimension_numbers<[1], [0], [0], [1], [0, 0, 1, 1], [], []>} : vector<16x32xbf16>, vector<32x32xbf16>, vector<16x32xf32> -> vector<16x32xf32>
    %47 = arith.index_cast %arg1 : i32 to index
    %c0_18 = arith.constant 0 : index
    %c0_19 = arith.constant 0 : index
    %48 = vector.load %arg10[%47, %c0_18, %c0_19] : memref<2x1x32xf32, #tpu.memory_space<vmem>>, vector<1x1x32xf32>
    %49 = vector.shape_cast %48 : vector<1x1x32xf32> to vector<1x32xf32>
    %50 = vector.broadcast %49 : vector<1x32xf32> to vector<16x32xf32>
    %51 = arith.addf %46, %50 : vector<16x32xf32>
    %52 = vector.shape_cast %51 : vector<16x32xf32> to vector<2x8x32xf32>
    %53 = arith.index_cast %arg1 : i32 to index
    %c0_20 = arith.constant 0 : index
    %c0_21 = arith.constant 0 : index
    %54 = vector.load %arg11[%53, %c0_20, %c0_21] : memref<2x32x32xbf16, #tpu.memory_space<vmem>>, vector<1x32x32xbf16>
    %55 = vector.shape_cast %54 : vector<1x32x32xbf16> to vector<32x32xbf16>
    %cst_22 = arith.constant dense<0.000000e+00> : vector<16x32xf32>
    %56 = tpu.matmul %32, %55, %cst_22 {dimension_numbers = #tpu.dot_dimension_numbers<[1], [0], [0], [1], [0, 0, 1, 1], [], []>} : vector<16x32xbf16>, vector<32x32xbf16>, vector<16x32xf32> -> vector<16x32xf32>
    %57 = arith.index_cast %arg1 : i32 to index
    %c0_23 = arith.constant 0 : index
    %c0_24 = arith.constant 0 : index
    %58 = vector.load %arg12[%57, %c0_23, %c0_24] : memref<2x1x32xf32, #tpu.memory_space<vmem>>, vector<1x1x32xf32>
    %59 = vector.shape_cast %58 : vector<1x1x32xf32> to vector<1x32xf32>
    %60 = vector.broadcast %59 : vector<1x32xf32> to vector<16x32xf32>
    %61 = arith.addf %56, %60 : vector<16x32xf32>
    %62 = vector.shape_cast %61 : vector<16x32xf32> to vector<2x8x32xf32>
    %63 = vector.extract_strided_slice %42 {offsets = [0, 0, 0], sizes = [2, 8, 8], strides = [1, 1, 1]} : vector<2x8x32xf32> to vector<2x8x8xf32>
    %64 = vector.extract_strided_slice %42 {offsets = [0, 0, 8], sizes = [2, 8, 8], strides = [1, 1, 1]} : vector<2x8x32xf32> to vector<2x8x8xf32>
    %65 = vector.extract_strided_slice %42 {offsets = [0, 0, 16], sizes = [2, 8, 8], strides = [1, 1, 1]} : vector<2x8x32xf32> to vector<2x8x8xf32>
    %66 = vector.extract_strided_slice %42 {offsets = [0, 0, 24], sizes = [2, 8, 8], strides = [1, 1, 1]} : vector<2x8x32xf32> to vector<2x8x8xf32>
    %67 = tpu.concatenate %63, %64, %65, %66 in 0 : vector<2x8x8xf32>, vector<2x8x8xf32>, vector<2x8x8xf32>, vector<2x8x8xf32> -> vector<8x8x8xf32>
    %68 = arith.truncf %67 : vector<8x8x8xf32> to vector<8x8x8xbf16>
    %69 = vector.extract_strided_slice %52 {offsets = [0, 0, 0], sizes = [2, 8, 8], strides = [1, 1, 1]} : vector<2x8x32xf32> to vector<2x8x8xf32>
    %70 = vector.extract_strided_slice %52 {offsets = [0, 0, 8], sizes = [2, 8, 8], strides = [1, 1, 1]} : vector<2x8x32xf32> to vector<2x8x8xf32>
    %71 = vector.extract_strided_slice %52 {offsets = [0, 0, 16], sizes = [2, 8, 8], strides = [1, 1, 1]} : vector<2x8x32xf32> to vector<2x8x8xf32>
    %72 = vector.extract_strided_slice %52 {offsets = [0, 0, 24], sizes = [2, 8, 8], strides = [1, 1, 1]} : vector<2x8x32xf32> to vector<2x8x8xf32>
    %73 = tpu.concatenate %69, %70, %71, %72 in 0 : vector<2x8x8xf32>, vector<2x8x8xf32>, vector<2x8x8xf32>, vector<2x8x8xf32> -> vector<8x8x8xf32>
    %74 = arith.truncf %73 : vector<8x8x8xf32> to vector<8x8x8xbf16>
    %75 = vector.extract_strided_slice %62 {offsets = [0, 0, 0], sizes = [2, 8, 8], strides = [1, 1, 1]} : vector<2x8x32xf32> to vector<2x8x8xf32>
    %76 = vector.extract_strided_slice %62 {offsets = [0, 0, 8], sizes = [2, 8, 8], strides = [1, 1, 1]} : vector<2x8x32xf32> to vector<2x8x8xf32>
    %77 = vector.extract_strided_slice %62 {offsets = [0, 0, 16], sizes = [2, 8, 8], strides = [1, 1, 1]} : vector<2x8x32xf32> to vector<2x8x8xf32>
    %78 = vector.extract_strided_slice %62 {offsets = [0, 0, 24], sizes = [2, 8, 8], strides = [1, 1, 1]} : vector<2x8x32xf32> to vector<2x8x8xf32>
    %79 = tpu.concatenate %75, %76, %77, %78 in 0 : vector<2x8x8xf32>, vector<2x8x8xf32>, vector<2x8x8xf32>, vector<2x8x8xf32> -> vector<8x8x8xf32>
    %80 = arith.truncf %79 : vector<8x8x8xf32> to vector<8x8x8xbf16>
    "tpu.trace_start"() <{level = 10 : i32, message = "gnd,gmd->gnm"}> : () -> ()
    %cst_25 = arith.constant dense<0.000000e+00> : vector<8x8x8xf32>
    %81 = tpu.matmul %68, %74, %cst_25 {dimension_numbers = #tpu.dot_dimension_numbers<[2], [2], [1], [1], [0, 0, 0, 1, 1, 1], [0], [0]>} : vector<8x8x8xbf16>, vector<8x8x8xbf16>, vector<8x8x8xf32> -> vector<8x8x8xf32>
    "tpu.trace_stop"() : () -> ()
    %c0_26 = arith.constant 0 : index
    %c0_27 = arith.constant 0 : index
    %c0_28 = arith.constant 0 : index
    %82 = vector.load %arg33[%c0_26, %c0_27, %c0_28] : memref<8x8x8xf32, #tpu.memory_space<vmem>>, vector<8x8x8xf32>
    %83 = arith.addf %81, %82 : vector<8x8x8xf32>
    %cst_29 = arith.constant dense<0xFF800000> : vector<8x8xf32>
    %84 = vector.multi_reduction <maximumf>, %83, %cst_29 [2] : vector<8x8x8xf32> to vector<8x8xf32>
    %85 = vector.shape_cast %84 : vector<8x8xf32> to vector<8x8x1xf32>
    %86 = vector.broadcast %85 : vector<8x8x1xf32> to vector<8x8x8xf32>
    %87 = arith.subf %83, %86 : vector<8x8x8xf32>
    %88 = math.exp %87 : vector<8x8x8xf32>
    %cst_30 = arith.constant dense<0.000000e+00> : vector<8x8xf32>
    %89 = vector.multi_reduction <add>, %88, %cst_30 [2] : vector<8x8x8xf32> to vector<8x8xf32>
    %90 = vector.shape_cast %89 : vector<8x8xf32> to vector<8x8x1xf32>
    %91 = tpu.reciprocal %90 {approx = true} : vector<8x8x1xf32> -> vector<8x8x1xf32>
    %92 = vector.broadcast %91 : vector<8x8x1xf32> to vector<8x8x8xf32>
    %93 = arith.mulf %88, %92 : vector<8x8x8xf32>
    %c0_31 = arith.constant 0 : index
    %c0_32 = arith.constant 0 : index
    %c0_33 = arith.constant 0 : index
    %94 = vector.load %arg32[%c0_31, %c0_32, %c0_33] : memref<8x8x8xf32, #tpu.memory_space<vmem>>, vector<8x8x8xf32>
    %95 = arith.mulf %93, %94 : vector<8x8x8xf32>
    %96 = arith.truncf %95 : vector<8x8x8xf32> to vector<8x8x8xbf16>
    "tpu.trace_start"() <{level = 10 : i32, message = "gnm,gmd->gnd"}> : () -> ()
    %cst_34 = arith.constant dense<0.000000e+00> : vector<8x8x8xf32>
    %97 = tpu.matmul %96, %80, %cst_34 {dimension_numbers = #tpu.dot_dimension_numbers<[2], [1], [1], [2], [0, 0, 0, 1, 1, 2], [0], [0]>} : vector<8x8x8xbf16>, vector<8x8x8xbf16>, vector<8x8x8xf32> -> vector<8x8x8xf32>
    %cst_35 = arith.constant 0.000000e+00 : f32
    "tpu.trace_stop"() : () -> ()
    %98 = vector.broadcast %cst_35 : f32 to vector<8x8x8xf32>
    %99 = arith.cmpf oge, %97, %98 : vector<8x8x8xf32>
    %cst_36 = arith.constant 0.00999999977 : f32
    %100 = vector.broadcast %cst_36 : f32 to vector<8x8x8xf32>
    %101 = arith.mulf %100, %97 : vector<8x8x8xf32>
    %102 = arith.select %99, %97, %101 : vector<8x8x8xi1>, vector<8x8x8xf32>
    %103 = vector.shape_cast %102 : vector<8x8x8xf32> to vector<4x16x8xf32>
    %104 = arith.truncf %103 : vector<4x16x8xf32> to vector<4x16x8xbf16>
    %105 = arith.index_cast %arg1 : i32 to index
    %c0_37 = arith.constant 0 : index
    %c0_38 = arith.constant 0 : index
    %c0_39 = arith.constant 0 : index
    %106 = vector.load %arg13[%105, %c0_37, %c0_38, %c0_39] : memref<2x4x8x32xbf16, #tpu.memory_space<vmem>>, vector<1x4x8x32xbf16>
    %107 = vector.shape_cast %106 : vector<1x4x8x32xbf16> to vector<4x8x32xbf16>
    "tpu.trace_start"() <{level = 10 : i32, message = "hrd,hde->hre"}> : () -> ()
    %cst_40 = arith.constant dense<0.000000e+00> : vector<4x16x32xf32>
    %108 = tpu.matmul %104, %107, %cst_40 {dimension_numbers = #tpu.dot_dimension_numbers<[2], [1], [1], [2], [0, 0, 0, 1, 1, 2], [0], [0]>} : vector<4x16x8xbf16>, vector<4x8x32xbf16>, vector<4x16x32xf32> -> vector<4x16x32xf32>
    "tpu.trace_stop"() : () -> ()
    %cst_41 = arith.constant dense<0.000000e+00> : vector<16x32xf32>
    %109 = vector.multi_reduction <add>, %108, %cst_41 [0] : vector<4x16x32xf32> to vector<16x32xf32>
    %110 = arith.addf %109, %3 : vector<16x32xf32>
    %111 = arith.index_cast %arg1 : i32 to index
    %c0_42 = arith.constant 0 : index
    %c0_43 = arith.constant 0 : index
    %112 = vector.load %arg14[%111, %c0_42, %c0_43] : memref<2x1x32xf32, #tpu.memory_space<vmem>>, vector<1x1x32xf32>
    %113 = vector.shape_cast %112 : vector<1x1x32xf32> to vector<1x32xf32>
    %114 = arith.index_cast %arg1 : i32 to index
    %c0_44 = arith.constant 0 : index
    %c0_45 = arith.constant 0 : index
    %115 = vector.load %arg15[%114, %c0_44, %c0_45] : memref<2x1x32xf32, #tpu.memory_space<vmem>>, vector<1x1x32xf32>
    %116 = vector.shape_cast %115 : vector<1x1x32xf32> to vector<1x32xf32>
    %cst_46 = arith.constant dense<0.000000e+00> : vector<16xf32>
    %117 = vector.multi_reduction <add>, %110, %cst_46 [1] : vector<16x32xf32> to vector<16xf32>
    %118 = vector.shape_cast %117 : vector<16xf32> to vector<16x1xf32>
    %cst_47 = arith.constant 3.200000e+01 : f32
    %119 = vector.broadcast %cst_47 : f32 to vector<16x1xf32>
    %120 = arith.divf %118, %119 : vector<16x1xf32>
    %121 = vector.broadcast %120 : vector<16x1xf32> to vector<16x32xf32>
    %122 = arith.subf %110, %121 : vector<16x32xf32>
    %123 = arith.mulf %122, %122 : vector<16x32xf32>
    %cst_48 = arith.constant dense<0.000000e+00> : vector<16xf32>
    %124 = vector.multi_reduction <add>, %123, %cst_48 [1] : vector<16x32xf32> to vector<16xf32>
    %125 = vector.shape_cast %124 : vector<16xf32> to vector<16x1xf32>
    %cst_49 = arith.constant 3.200000e+01 : f32
    %126 = vector.broadcast %cst_49 : f32 to vector<16x1xf32>
    %127 = arith.divf %125, %126 : vector<16x1xf32>
    %128 = vector.broadcast %120 : vector<16x1xf32> to vector<16x32xf32>
    %129 = arith.subf %110, %128 : vector<16x32xf32>
    %cst_50 = arith.constant 9.99999974E-6 : f32
    %130 = vector.broadcast %cst_50 : f32 to vector<16x1xf32>
    %131 = arith.addf %127, %130 : vector<16x1xf32>
    %132 = math.rsqrt %131 : vector<16x1xf32>
    %133 = vector.broadcast %132 : vector<16x1xf32> to vector<16x32xf32>
    %134 = arith.mulf %129, %133 : vector<16x32xf32>
    %135 = vector.broadcast %113 : vector<1x32xf32> to vector<16x32xf32>
    %136 = arith.mulf %134, %135 : vector<16x32xf32>
    %137 = vector.broadcast %116 : vector<1x32xf32> to vector<16x32xf32>
    %138 = arith.addf %136, %137 : vector<16x32xf32>
    %139 = arith.index_cast %arg1 : i32 to index
    %c0_51 = arith.constant 0 : index
    %c0_52 = arith.constant 0 : index
    %140 = vector.load %arg16[%139, %c0_51, %c0_52] : memref<2x32x64xbf16, #tpu.memory_space<vmem>>, vector<1x32x64xbf16>
    %141 = vector.shape_cast %140 : vector<1x32x64xbf16> to vector<32x64xbf16>
    %142 = arith.truncf %138 : vector<16x32xf32> to vector<16x32xbf16>
    %cst_53 = arith.constant dense<0.000000e+00> : vector<16x64xf32>
    %143 = tpu.matmul %142, %141, %cst_53 {dimension_numbers = #tpu.dot_dimension_numbers<[1], [0], [0], [1], [0, 0, 1, 1], [], []>} : vector<16x32xbf16>, vector<32x64xbf16>, vector<16x64xf32> -> vector<16x64xf32>
    %144 = arith.index_cast %arg1 : i32 to index
    %c0_54 = arith.constant 0 : index
    %c0_55 = arith.constant 0 : index
    %145 = vector.load %arg17[%144, %c0_54, %c0_55] : memref<2x1x64xf32, #tpu.memory_space<vmem>>, vector<1x1x64xf32>
    %146 = vector.shape_cast %145 : vector<1x1x64xf32> to vector<1x64xf32>
    %147 = vector.broadcast %146 : vector<1x64xf32> to vector<16x64xf32>
    %148 = arith.addf %143, %147 : vector<16x64xf32>
    %cst_56 = arith.constant 0.000000e+00 : f32
    %149 = vector.broadcast %cst_56 : f32 to vector<16x64xf32>
    %150 = arith.maximumf %148, %149 : vector<16x64xf32>
    %151 = arith.index_cast %arg1 : i32 to index
    %c0_57 = arith.constant 0 : index
    %c0_58 = arith.constant 0 : index
    %152 = vector.load %arg18[%151, %c0_57, %c0_58] : memref<2x64x32xbf16, #tpu.memory_space<vmem>>, vector<1x64x32xbf16>
    %153 = vector.shape_cast %152 : vector<1x64x32xbf16> to vector<64x32xbf16>
    %154 = arith.truncf %150 : vector<16x64xf32> to vector<16x64xbf16>
    %cst_59 = arith.constant dense<0.000000e+00> : vector<16x32xf32>
    %155 = tpu.matmul %154, %153, %cst_59 {dimension_numbers = #tpu.dot_dimension_numbers<[1], [0], [0], [1], [0, 0, 1, 1], [], []>} : vector<16x64xbf16>, vector<64x32xbf16>, vector<16x32xf32> -> vector<16x32xf32>
    %156 = arith.index_cast %arg1 : i32 to index
    %c0_60 = arith.constant 0 : index
    %c0_61 = arith.constant 0 : index
    %157 = vector.load %arg19[%156, %c0_60, %c0_61] : memref<2x1x32xf32, #tpu.memory_space<vmem>>, vector<1x1x32xf32>
    %158 = vector.shape_cast %157 : vector<1x1x32xf32> to vector<1x32xf32>
    %159 = vector.broadcast %158 : vector<1x32xf32> to vector<16x32xf32>
    %160 = arith.addf %155, %159 : vector<16x32xf32>
    %161 = arith.addf %160, %110 : vector<16x32xf32>
    %c0_62 = arith.constant 0 : index
    %c0_63 = arith.constant 0 : index
    %162 = vector.load %arg31[%c0_62, %c0_63] : memref<16x32xf32, #tpu.memory_space<vmem>>, vector<16x32xf32>
    tpu.vector_store %arg31[%c0_62, %c0_63], %161 {strides = array<i32>} : memref<16x32xf32, #tpu.memory_space<vmem>>, vector<16x32xf32>,
    %c1_i32 = arith.constant 1 : i32
    %163 = arith.cmpi eq, %arg1, %c1_i32 : i32
    %164 = arith.extui %163 : i1 to i32
    %c0_i32_64 = arith.constant 0 : i32
    %165 = arith.cmpi ne, %164, %c0_i32_64 : i32
    scf.if %165 {
      %c0_65 = arith.constant 0 : index
      %c0_66 = arith.constant 0 : index
      %166 = vector.load %arg31[%c0_65, %c0_66] : memref<16x32xf32, #tpu.memory_space<vmem>>, vector<16x32xf32>
      %c0_67 = arith.constant 0 : index
      %c0_68 = arith.constant 0 : index
      %167 = vector.load %arg20[%c0_67, %c0_68] : memref<1x32xf32, #tpu.memory_space<vmem>>, vector<1x32xf32>
      %c0_69 = arith.constant 0 : index
      %c0_70 = arith.constant 0 : index
      %168 = vector.load %arg21[%c0_69, %c0_70] : memref<1x32xf32, #tpu.memory_space<vmem>>, vector<1x32xf32>
      %cst_71 = arith.constant dense<0.000000e+00> : vector<16xf32>
      %169 = vector.multi_reduction <add>, %166, %cst_71 [1] : vector<16x32xf32> to vector<16xf32>
      %170 = vector.shape_cast %169 : vector<16xf32> to vector<16x1xf32>
      %cst_72 = arith.constant 3.200000e+01 : f32
      %171 = vector.broadcast %cst_72 : f32 to vector<16x1xf32>
      %172 = arith.divf %170, %171 : vector<16x1xf32>
      %173 = vector.broadcast %172 : vector<16x1xf32> to vector<16x32xf32>
      %174 = arith.subf %166, %173 : vector<16x32xf32>
      %175 = arith.mulf %174, %174 : vector<16x32xf32>
      %cst_73 = arith.constant dense<0.000000e+00> : vector<16xf32>
      %176 = vector.multi_reduction <add>, %175, %cst_73 [1] : vector<16x32xf32> to vector<16xf32>
      %177 = vector.shape_cast %176 : vector<16xf32> to vector<16x1xf32>
      %cst_74 = arith.constant 3.200000e+01 : f32
      %178 = vector.broadcast %cst_74 : f32 to vector<16x1xf32>
      %179 = arith.divf %177, %178 : vector<16x1xf32>
      %180 = vector.broadcast %172 : vector<16x1xf32> to vector<16x32xf32>
      %181 = arith.subf %166, %180 : vector<16x32xf32>
      %cst_75 = arith.constant 9.99999974E-6 : f32
      %182 = vector.broadcast %cst_75 : f32 to vector<16x1xf32>
      %183 = arith.addf %179, %182 : vector<16x1xf32>
      %184 = math.rsqrt %183 : vector<16x1xf32>
      %185 = vector.broadcast %184 : vector<16x1xf32> to vector<16x32xf32>
      %186 = arith.mulf %181, %185 : vector<16x32xf32>
      %187 = vector.broadcast %167 : vector<1x32xf32> to vector<16x32xf32>
      %188 = arith.mulf %186, %187 : vector<16x32xf32>
      %189 = vector.broadcast %168 : vector<1x32xf32> to vector<16x32xf32>
      %190 = arith.addf %188, %189 : vector<16x32xf32>
      %c0_76 = arith.constant 0 : index
      %c0_77 = arith.constant 0 : index
      %191 = vector.load %arg22[%c0_76, %c0_77] : memref<32x64xbf16, #tpu.memory_space<vmem>>, vector<32x64xbf16>
      %192 = arith.truncf %190 : vector<16x32xf32> to vector<16x32xbf16>
      %cst_78 = arith.constant dense<0.000000e+00> : vector<16x64xf32>
      %193 = tpu.matmul %192, %191, %cst_78 {dimension_numbers = #tpu.dot_dimension_numbers<[1], [0], [0], [1], [0, 0, 1, 1], [], []>} : vector<16x32xbf16>, vector<32x64xbf16>, vector<16x64xf32> -> vector<16x64xf32>
      %c0_79 = arith.constant 0 : index
      %c0_80 = arith.constant 0 : index
      %194 = vector.load %arg23[%c0_79, %c0_80] : memref<1x64xf32, #tpu.memory_space<vmem>>, vector<1x64xf32>
      %195 = vector.broadcast %194 : vector<1x64xf32> to vector<16x64xf32>
      %196 = arith.addf %193, %195 : vector<16x64xf32>
      %c0_81 = arith.constant 0 : index
      %c0_82 = arith.constant 0 : index
      %197 = vector.load %arg24[%c0_81, %c0_82] : memref<64x64xbf16, #tpu.memory_space<vmem>>, vector<64x64xbf16>
      %198 = arith.truncf %196 : vector<16x64xf32> to vector<16x64xbf16>
      %cst_83 = arith.constant dense<0.000000e+00> : vector<16x64xf32>
      %199 = tpu.matmul %198, %197, %cst_83 {dimension_numbers = #tpu.dot_dimension_numbers<[1], [0], [0], [1], [0, 0, 1, 1], [], []>} : vector<16x64xbf16>, vector<64x64xbf16>, vector<16x64xf32> -> vector<16x64xf32>
      %c0_84 = arith.constant 0 : index
      %c0_85 = arith.constant 0 : index
      %200 = vector.load %arg25[%c0_84, %c0_85] : memref<1x64xf32, #tpu.memory_space<vmem>>, vector<1x64xf32>
      %201 = vector.broadcast %200 : vector<1x64xf32> to vector<16x64xf32>
      %202 = arith.addf %199, %201 : vector<16x64xf32>
      %cst_86 = arith.constant 0.000000e+00 : f32
      %203 = vector.broadcast %cst_86 : f32 to vector<16x64xf32>
      %204 = arith.maximumf %202, %203 : vector<16x64xf32>
      %c0_87 = arith.constant 0 : index
      %c0_88 = arith.constant 0 : index
      %205 = vector.load %arg26[%c0_87, %c0_88] : memref<64x64xbf16, #tpu.memory_space<vmem>>, vector<64x64xbf16>
      %206 = arith.truncf %204 : vector<16x64xf32> to vector<16x64xbf16>
      %cst_89 = arith.constant dense<0.000000e+00> : vector<16x64xf32>
      %207 = tpu.matmul %206, %205, %cst_89 {dimension_numbers = #tpu.dot_dimension_numbers<[1], [0], [0], [1], [0, 0, 1, 1], [], []>} : vector<16x64xbf16>, vector<64x64xbf16>, vector<16x64xf32> -> vector<16x64xf32>
      %c0_90 = arith.constant 0 : index
      %c0_91 = arith.constant 0 : index
      %208 = vector.load %arg27[%c0_90, %c0_91] : memref<1x64xf32, #tpu.memory_space<vmem>>, vector<1x64xf32>
      %209 = vector.broadcast %208 : vector<1x64xf32> to vector<16x64xf32>
      %210 = arith.addf %207, %209 : vector<16x64xf32>
      %211 = arith.addf %196, %210 : vector<16x64xf32>
      %212 = arith.truncf %211 : vector<16x64xf32> to vector<16x64xbf16>
      %c0_92 = arith.constant 0 : index
      %c0_93 = arith.constant 0 : index
      %213 = vector.load %arg28[%c0_92, %c0_93] : memref<1x64xbf16, #tpu.memory_space<vmem>>, vector<1x64xbf16>
      %cst_94 = arith.constant dense<0.000000e+00> : vector<1x16xf32>
      %214 = tpu.matmul %213, %212, %cst_94 {dimension_numbers = #tpu.dot_dimension_numbers<[1], [1], [0], [0], [0, 0, 1, 0], [], []>} : vector<1x64xbf16>, vector<16x64xbf16>, vector<1x16xf32> -> vector<1x16xf32>
      %c0_95 = arith.constant 0 : index
      %c0_96 = arith.constant 0 : index
      %215 = vector.load %arg29[%c0_95, %c0_96] : memref<1x1xf32, #tpu.memory_space<vmem>>, vector<1x1xf32>
      %216 = vector.broadcast %215 : vector<1x1xf32> to vector<1x16xf32>
      %217 = arith.addf %214, %216 : vector<1x16xf32>
      %c0_97 = arith.constant 0 : index
      %c0_98 = arith.constant 0 : index
      %c0_99 = arith.constant 0 : index
      %218 = vector.load %arg30[%c0_97, %c0_98, %c0_99] : memref<1x1x16xf32, #tpu.memory_space<vmem>>, vector<1x1x16xf32>
      %219 = vector.shape_cast %218 : vector<1x1x16xf32> to vector<1x16xf32>
      %220 = vector.shape_cast %217 : vector<1x16xf32> to vector<1x1x16xf32>
      tpu.vector_store %arg30[%c0_97, %c0_98, %c0_99], %220 {strides = array<i32>} : memref<1x1x16xf32, #tpu.memory_space<vmem>>, vector<1x1x16xf32>,
    } else {
    }
    return
  }
  func.func @transform_0(%arg0: i32, %arg1: i32) -> (i32, i32, i32) {
    %c0_i32 = arith.constant 0 : i32
    %c0_i32_0 = arith.constant 0 : i32
    %c0_i32_1 = arith.constant 0 : i32
    return %arg0, %c0_i32, %c0_i32_0 : i32, i32, i32
  }
  func.func @transform_1(%arg0: i32, %arg1: i32) -> (i32, i32, i32) {
    %c0_i32 = arith.constant 0 : i32
    %c0_i32_0 = arith.constant 0 : i32
    %c0_i32_1 = arith.constant 0 : i32
    return %arg0, %c0_i32, %c0_i32_0 : i32, i32, i32
  }
  func.func @transform_2(%arg0: i32, %arg1: i32) -> (i32, i32, i32) {
    %c0_i32 = arith.constant 0 : i32
    %c0_i32_0 = arith.constant 0 : i32
    %c0_i32_1 = arith.constant 0 : i32
    return %arg0, %c0_i32, %c0_i32_0 : i32, i32, i32
  }
  func.func @transform_3(%arg0: i32, %arg1: i32) -> (i32, i32, i32) {
    %c0_i32 = arith.constant 0 : i32
    %c0_i32_0 = arith.constant 0 : i32
    %c0_i32_1 = arith.constant 0 : i32
    %c0_i32_2 = arith.constant 0 : i32
    return %c0_i32, %c0_i32_0, %c0_i32_1 : i32, i32, i32
  }
  func.func @transform_4(%arg0: i32, %arg1: i32) -> (i32, i32, i32) {
    %c0_i32 = arith.constant 0 : i32
    %c0_i32_0 = arith.constant 0 : i32
    %c0_i32_1 = arith.constant 0 : i32
    %c0_i32_2 = arith.constant 0 : i32
    return %c0_i32, %c0_i32_0, %c0_i32_1 : i32, i32, i32
  }
  func.func @transform_5(%arg0: i32, %arg1: i32) -> (i32, i32, i32) {
    %c0_i32 = arith.constant 0 : i32
    %c0_i32_0 = arith.constant 0 : i32
    %c0_i32_1 = arith.constant 0 : i32
    %c0_i32_2 = arith.constant 0 : i32
    return %c0_i32, %c0_i32_0, %c0_i32_1 : i32, i32, i32
  }
  func.func @transform_6(%arg0: i32, %arg1: i32) -> (i32, i32, i32) {
    %c0_i32 = arith.constant 0 : i32
    %c0_i32_0 = arith.constant 0 : i32
    %c0_i32_1 = arith.constant 0 : i32
    %c0_i32_2 = arith.constant 0 : i32
    return %c0_i32, %c0_i32_0, %c0_i32_1 : i32, i32, i32
  }
  func.func @transform_7(%arg0: i32, %arg1: i32) -> (i32, i32, i32) {
    %c0_i32 = arith.constant 0 : i32
    %c0_i32_0 = arith.constant 0 : i32
    %c0_i32_1 = arith.constant 0 : i32
    %c0_i32_2 = arith.constant 0 : i32
    return %c0_i32, %c0_i32_0, %c0_i32_1 : i32, i32, i32
  }
  func.func @transform_8(%arg0: i32, %arg1: i32) -> (i32, i32, i32) {
    %c0_i32 = arith.constant 0 : i32
    %c0_i32_0 = arith.constant 0 : i32
    %c0_i32_1 = arith.constant 0 : i32
    %c0_i32_2 = arith.constant 0 : i32
    return %c0_i32, %c0_i32_0, %c0_i32_1 : i32, i32, i32
  }
  func.func @transform_9(%arg0: i32, %arg1: i32) -> (i32, i32, i32) {
    %c0_i32 = arith.constant 0 : i32
    %c0_i32_0 = arith.constant 0 : i32
    %c0_i32_1 = arith.constant 0 : i32
    %c0_i32_2 = arith.constant 0 : i32
    return %c0_i32, %c0_i32_0, %c0_i32_1 : i32, i32, i32
  }
  func.func @transform_10(%arg0: i32, %arg1: i32) -> (i32, i32, i32) {
    %c0_i32 = arith.constant 0 : i32
    %c0_i32_0 = arith.constant 0 : i32
    %c0_i32_1 = arith.constant 0 : i32
    %c0_i32_2 = arith.constant 0 : i32
    return %c0_i32, %c0_i32_0, %c0_i32_1 : i32, i32, i32
  }
  func.func @transform_11(%arg0: i32, %arg1: i32) -> (i32, i32, i32, i32) {
    %c0_i32 = arith.constant 0 : i32
    %c0_i32_0 = arith.constant 0 : i32
    %c0_i32_1 = arith.constant 0 : i32
    %c0_i32_2 = arith.constant 0 : i32
    %c0_i32_3 = arith.constant 0 : i32
    return %c0_i32, %c0_i32_0, %c0_i32_1, %c0_i32_2 : i32, i32, i32, i32
  }
  func.func @transform_12(%arg0: i32, %arg1: i32) -> (i32, i32, i32) {
    %c0_i32 = arith.constant 0 : i32
    %c0_i32_0 = arith.constant 0 : i32
    %c0_i32_1 = arith.constant 0 : i32
    %c0_i32_2 = arith.constant 0 : i32
    return %c0_i32, %c0_i32_0, %c0_i32_1 : i32, i32, i32
  }
  func.func @transform_13(%arg0: i32, %arg1: i32) -> (i32, i32, i32) {
    %c0_i32 = arith.constant 0 : i32
    %c0_i32_0 = arith.constant 0 : i32
    %c0_i32_1 = arith.constant 0 : i32
    %c0_i32_2 = arith.constant 0 : i32
    return %c0_i32, %c0_i32_0, %c0_i32_1 : i32, i32, i32
  }
  func.func @transform_14(%arg0: i32, %arg1: i32) -> (i32, i32, i32) {
    %c0_i32 = arith.constant 0 : i32
    %c0_i32_0 = arith.constant 0 : i32
    %c0_i32_1 = arith.constant 0 : i32
    %c0_i32_2 = arith.constant 0 : i32
    return %c0_i32, %c0_i32_0, %c0_i32_1 : i32, i32, i32
  }
  func.func @transform_15(%arg0: i32, %arg1: i32) -> (i32, i32, i32) {
    %c0_i32 = arith.constant 0 : i32
    %c0_i32_0 = arith.constant 0 : i32
    %c0_i32_1 = arith.constant 0 : i32
    %c0_i32_2 = arith.constant 0 : i32
    return %c0_i32, %c0_i32_0, %c0_i32_1 : i32, i32, i32
  }
  func.func @transform_16(%arg0: i32, %arg1: i32) -> (i32, i32, i32) {
    %c0_i32 = arith.constant 0 : i32
    %c0_i32_0 = arith.constant 0 : i32
    %c0_i32_1 = arith.constant 0 : i32
    %c0_i32_2 = arith.constant 0 : i32
    return %c0_i32, %c0_i32_0, %c0_i32_1 : i32, i32, i32
  }
  func.func @transform_17(%arg0: i32, %arg1: i32) -> (i32, i32, i32) {
    %c0_i32 = arith.constant 0 : i32
    %c0_i32_0 = arith.constant 0 : i32
    %c0_i32_1 = arith.constant 0 : i32
    %c0_i32_2 = arith.constant 0 : i32
    return %c0_i32, %c0_i32_0, %c0_i32_1 : i32, i32, i32
  }
  func.func @transform_18(%arg0: i32, %arg1: i32) -> (i32, i32) {
    %c0_i32 = arith.constant 0 : i32
    %c0_i32_0 = arith.constant 0 : i32
    %c0_i32_1 = arith.constant 0 : i32
    return %c0_i32, %c0_i32_0 : i32, i32
  }
  func.func @transform_19(%arg0: i32, %arg1: i32) -> (i32, i32) {
    %c0_i32 = arith.constant 0 : i32
    %c0_i32_0 = arith.constant 0 : i32
    %c0_i32_1 = arith.constant 0 : i32
    return %c0_i32, %c0_i32_0 : i32, i32
  }
  func.func @transform_20(%arg0: i32, %arg1: i32) -> (i32, i32) {
    %c0_i32 = arith.constant 0 : i32
    %c0_i32_0 = arith.constant 0 : i32
    %c0_i32_1 = arith.constant 0 : i32
    return %c0_i32, %c0_i32_0 : i32, i32
  }
  func.func @transform_21(%arg0: i32, %arg1: i32) -> (i32, i32) {
    %c0_i32 = arith.constant 0 : i32
    %c0_i32_0 = arith.constant 0 : i32
    %c0_i32_1 = arith.constant 0 : i32
    return %c0_i32, %c0_i32_0 : i32, i32
  }
  func.func @transform_22(%arg0: i32, %arg1: i32) -> (i32, i32) {
    %c0_i32 = arith.constant 0 : i32
    %c0_i32_0 = arith.constant 0 : i32
    %c0_i32_1 = arith.constant 0 : i32
    return %c0_i32, %c0_i32_0 : i32, i32
  }
  func.func @transform_23(%arg0: i32, %arg1: i32) -> (i32, i32) {
    %c0_i32 = arith.constant 0 : i32
    %c0_i32_0 = arith.constant 0 : i32
    %c0_i32_1 = arith.constant 0 : i32
    return %c0_i32, %c0_i32_0 : i32, i32
  }
  func.func @transform_24(%arg0: i32, %arg1: i32) -> (i32, i32) {
    %c0_i32 = arith.constant 0 : i32
    %c0_i32_0 = arith.constant 0 : i32
    %c0_i32_1 = arith.constant 0 : i32
    return %c0_i32, %c0_i32_0 : i32, i32
  }
  func.func @transform_25(%arg0: i32, %arg1: i32) -> (i32, i32) {
    %c0_i32 = arith.constant 0 : i32
    %c0_i32_0 = arith.constant 0 : i32
    %c0_i32_1 = arith.constant 0 : i32
    return %c0_i32, %c0_i32_0 : i32, i32
  }
  func.func @transform_26(%arg0: i32, %arg1: i32) -> (i32, i32) {
    %c0_i32 = arith.constant 0 : i32
    %c0_i32_0 = arith.constant 0 : i32
    %c0_i32_1 = arith.constant 0 : i32
    return %c0_i32, %c0_i32_0 : i32, i32
  }
  func.func @transform_27(%arg0: i32, %arg1: i32) -> (i32, i32) {
    %c0_i32 = arith.constant 0 : i32
    %c0_i32_0 = arith.constant 0 : i32
    %c0_i32_1 = arith.constant 0 : i32
    return %c0_i32, %c0_i32_0 : i32, i32
  }
  func.func @transform_28(%arg0: i32, %arg1: i32) -> (i32, i32, i32) {
    %c0_i32 = arith.constant 0 : i32
    %c0_i32_0 = arith.constant 0 : i32
    %c0_i32_1 = arith.constant 0 : i32
    return %arg0, %c0_i32, %c0_i32_0 : i32, i32, i32
  }
}

</mosaic_0001>

<llo_original>
// kernel: tpu_custom_call.1
$region0: #{tpu_custom_call.1}
  #allocation0 [shape = 'u32[]', space=smem, size = 0x4, offset = 0x4, fixed_abs, tag = 'smem constant byte address 0x4 - core index']
  #allocation1 [shape = 'u32[144,128]{1,0:T(1,128)}', space=vmem, size = 0x12000, scoped, tag = 'internal scratch']
  #allocation2 [shape = 'f32[16,32]{1,0:T(8,128)}', space=vmem, size = 0x2000, scoped, tag = 'scratch operand']
  #allocation3 [shape = 'f32[8,8,8]{2,1,0:T(8,128)}', space=vmem, size = 0x8000, scoped, tag = 'scratch operand']
  #allocation4 [shape = 'f32[8,8,8]{2,1,0:T(8,128)}', space=vmem, size = 0x8000, scoped, tag = 'scratch operand']
  #allocation5 [shape = 'f32[1,1]{1,0:T(1,128)S(1)}', space=vmem, size = 0x200, scoped, tag = 'scoped memory for tpu_custom_call.1']
  %s0 = inlined_call_operand.hbm [shape: f32[2,8,32], index: 0, kind: input, shape index: {}]
  %s1 = inlined_call_operand.hbm [shape: f32[2,1,8], index: 1, kind: input, shape index: {}]
  %s2 = inlined_call_operand.vmem [shape: f32[2,8,1], index: 2, kind: input, shape index: {}]
  %s3 = inlined_call_operand.hbm [shape: f32[2,1,32], index: 3, kind: input, shape index: {}]
  %s4 = inlined_call_operand.hbm [shape: f32[2,1,32], index: 4, kind: input, shape index: {}]
  %s5 = inlined_call_operand.vmem [shape: bf16[2,32,32], index: 5, kind: input, shape index: {}]
  %s6 = inlined_call_operand.hbm [shape: f32[2,1,32], index: 6, kind: input, shape index: {}]
  %s7 = inlined_call_operand.vmem [shape: bf16[2,32,32], index: 7, kind: input, shape index: {}]
  %s8 = inlined_call_operand.hbm [shape: f32[2,1,32], index: 8, kind: input, shape index: {}]
  %s9 = inlined_call_operand.vmem [shape: bf16[2,32,32], index: 9, kind: input, shape index: {}]
  %s10 = inlined_call_operand.hbm [shape: f32[2,1,32], index: 10, kind: input, shape index: {}]
  %s11 = inlined_call_operand.hbm [shape: bf16[2,4,8,32], index: 11, kind: input, shape index: {}]
  %s12 = inlined_call_operand.hbm [shape: f32[2,1,32], index: 12, kind: input, shape index: {}]
  %s13 = inlined_call_operand.hbm [shape: f32[2,1,32], index: 13, kind: input, shape index: {}]
  %s14 = inlined_call_operand.vmem [shape: bf16[2,32,64], index: 14, kind: input, shape index: {}]
  %s15 = inlined_call_operand.hbm [shape: f32[2,1,64], index: 15, kind: input, shape index: {}]
  %s16 = inlined_call_operand.vmem [shape: bf16[2,64,32], index: 16, kind: input, shape index: {}]
  %s17 = inlined_call_operand.hbm [shape: f32[2,1,32], index: 17, kind: input, shape index: {}]
  %s18 = inlined_call_operand.vmem [shape: f32[1,32], index: 18, kind: input, shape index: {}]
  %s19 = inlined_call_operand.hbm [shape: f32[1,32], index: 19, kind: input, shape index: {}]
  %s20 = inlined_call_operand.hbm [shape: bf16[32,64], index: 20, kind: input, shape index: {}]
  %s21 = inlined_call_operand.vmem [shape: f32[1,64], index: 21, kind: input, shape index: {}]
  %s22 = inlined_call_operand.vmem [shape: bf16[64,64], index: 22, kind: input, shape index: {}]
  %s23 = inlined_call_operand.vmem [shape: f32[1,64], index: 23, kind: input, shape index: {}]
  %s24 = inlined_call_operand.hbm [shape: bf16[64,64], index: 24, kind: input, shape index: {}]
  %s25 = inlined_call_operand.vmem [shape: f32[1,64], index: 25, kind: input, shape index: {}]
  %s26 = inlined_call_operand.vmem [shape: bf16[1,64], index: 26, kind: input, shape index: {}]
  %s27 = inlined_call_operand.<no memory space> [shape: f32[1,1], index: 27, kind: input, shape index: {}]
  %s28 = inlined_call_operand.hbm [shape: f32[1,1,16], index: 28, kind: output, shape index: {}]
  %s29 = sld [smem:[#allocation0]]
  $region213: #{tpu_custom_call.1} parent=0
    _
  %s31 = ssub.s32 1, %s29
  %s32 = scalar_select 0, %s31, %s29
  %v33 = vstv %s27
  %34 = vst [vmem:[#allocation5] sm:$0x1] %v33
  $region1: #{tpu_custom_call.1} parent=0
    #allocation6 [shape = 'u8[8192]{0}', space=vmem, size = 0x2000, scoped, tag = 'input window, operand 0, single buffered']
    #allocation7 [shape = 's32[2]{0}', space=sflag, size = 0x8, scoped, tag = 'scoped memory for tpu_custom_call.1']
    #allocation8 [shape = 's32[2]{0}', space=sflag, size = 0x8, scoped, tag = 'scoped memory for tpu_custom_call.1']
    #allocation9 [shape = 'u8[1024]{0}', space=vmem, size = 0x400, scoped, tag = 'input window, operand 1, single buffered']
    #allocation10 [shape = 's32[1]{0}', space=sflag, size = 0x4, scoped, tag = 'scoped memory for tpu_custom_call.1']
    #allocation11 [shape = 'u8[1024]{0}', space=vmem, size = 0x400, scoped, tag = 'input window, operand 3, single buffered']
    #allocation12 [shape = 'u8[1024]{0}', space=vmem, size = 0x400, scoped, tag = 'input window, operand 4, single buffered']
    #allocation13 [shape = 's32[1]{0}', space=sflag, size = 0x4, scoped, tag = 'scoped memory for tpu_custom_call.1']
    #allocation14 [shape = 'u8[1024]{0}', space=vmem, size = 0x400, scoped, tag = 'input window, operand 6, single buffered']
    #allocation15 [shape = 'u8[1024]{0}', space=vmem, size = 0x400, scoped, tag = 'input window, operand 8, single buffered']
    #allocation16 [shape = 's32[1]{0}', space=sflag, size = 0x4, scoped, tag = 'scoped memory for tpu_custom_call.1']
    #allocation17 [shape = 'u8[1024]{0}', space=vmem, size = 0x400, scoped, tag = 'input window, operand 10, single buffered']
    #allocation18 [shape = 'u8[16384]{0}', space=vmem, size = 0x4000, scoped, tag = 'input window, operand 11, single buffered']
    #allocation19 [shape = 's32[1]{0}', space=sflag, size = 0x4, scoped, tag = 'scoped memory for tpu_custom_call.1']
    #allocation20 [shape = 'u8[1024]{0}', space=vmem, size = 0x400, scoped, tag = 'input window, operand 12, single buffered']
    #allocation21 [shape = 'u8[1024]{0}', space=vmem, size = 0x400, scoped, tag = 'input window, operand 13, single buffered']
    #allocation22 [shape = 's32[1]{0}', space=sflag, size = 0x4, scoped, tag = 'scoped memory for tpu_custom_call.1']
    #allocation23 [shape = 'u8[1024]{0}', space=vmem, size = 0x400, scoped, tag = 'input window, operand 15, single buffered']
    #allocation24 [shape = 'u8[1024]{0}', space=vmem, size = 0x400, scoped, tag = 'input window, operand 17, single buffered']
    #allocation25 [shape = 's32[1]{0}', space=sflag, size = 0x4, scoped, tag = 'scoped memory for tpu_custom_call.1']
    #allocation26 [shape = 'u8[512]{0}', space=vmem, size = 0x400, scoped, tag = 'input window, operand 19, single buffered']
    #allocation27 [shape = 'u8[8192]{0}', space=vmem, size = 0x2000, scoped, tag = 'input window, operand 20, single buffered']
    #allocation28 [shape = 's32[1]{0}', space=sflag, size = 0x4, scoped, tag = 'scoped memory for tpu_custom_call.1']
    #allocation29 [shape = 'u8[16384]{0}', space=vmem, size = 0x4000, scoped, tag = 'input window, operand 24, single buffered']
    #allocation30 [shape = 'u8[512]{0}', space=vmem, size = 0x400, scoped, tag = 'output window, operand 0, single buffered']
    %35 = vsyncpa [#allocation7], 0
    %36 = vsyncpa [#allocation10], 0
    %37 = vsyncpa [#allocation13], 0
    %38 = vsyncpa [#allocation16], 0
    %39 = vsyncpa [#allocation19], 0
    %40 = vsyncpa [#allocation22], 0
    %41 = vsyncpa [#allocation25], 0
    %42 = vsyncpa [#allocation28], 0
    %43 = vsyncpa [#allocation8], 0
    loop: start=0, step=1, limit=4
    $region2: #{tpu_custom_call.1} parent=1 // loop_pre_header
      _
    $region3: #{tpu_custom_call.1} parent=1 // loop_header
      %s45 = sphi 0, %s49
      %p46 = scmp.ge.s32.totalorder %s45, 4
      %s52 = sphi 0, %s64
      %s53 = sphi 0, %s60
      %s54 = sphi 0, %s52
      %s55 = sphi 0, %s53
      %s56 = sphi 0, %s54
      %s57 = sphi 0, %s55
      %s67 = sphi 0, %s69
      %s70 = sphi 0, %s67
      %s71 = sphi 0, %s70
      %s87 = sphi 0, %s71
      %s93 = sphi 0, %s95
      %s96 = sphi 0, %s93
      %s97 = sphi 0, %s96
      %s113 = sphi 0, %s97
      %s119 = sphi 0, %s121
      %s122 = sphi 0, %s119
      %s123 = sphi 0, %s122
      %s139 = sphi 0, %s123
      %s143 = sphi 0, %s143
      %s145 = sphi 0, %s143
      %s146 = sphi 0, %s145
      %s160 = sphi 0, %s146
      %s164 = sphi 0, %s164
      %s166 = sphi 0, %s164
      %s167 = sphi 0, %s166
      %s181 = sphi 0, %s167
      %s185 = sphi 0, %s185
      %s187 = sphi 0, %s185
      %s188 = sphi 0, %s187
      %s202 = sphi 0, %s188
      %s206 = sphi 0, %s206
      %s208 = sphi 0, %s206
      %s209 = sphi 0, %s208
      %s223 = sphi 0, %s209
      %s227 = sphi 0, %s227
      %s229 = sphi 0, %s227
      %s230 = sphi 0, %s229
      %s244 = sphi 0, %s230
      %s248 = sphi 0, %s248
      %s250 = sphi 0, %s248
      %s251 = sphi 0, %s250
      %s265 = sphi 0, %s251
      %s269 = sphi 0, %s269
      %s271 = sphi 0, %s269
      %s272 = sphi 0, %s271
      %s286 = sphi 0, %s272
      %s290 = sphi 0, %s290
      %s292 = sphi 0, %s290
      %s293 = sphi 0, %s292
      %s307 = sphi 0, %s293
      %s311 = sphi 0, %s311
      %s313 = sphi 0, %s311
      %s314 = sphi 0, %s313
      %s328 = sphi 0, %s314
      %s332 = sphi 0, %s332
      %s334 = sphi 0, %s332
      %s335 = sphi 0, %s334
      %s349 = sphi 0, %s335
      %s353 = sphi 0, %s353
      %s355 = sphi 0, %s353
      %s356 = sphi 0, %s355
      %s370 = sphi 0, %s356
      %s374 = sphi 0, %s374
      %s376 = sphi 0, %s374
      %s377 = sphi 0, %s376
      %s391 = sphi 0, %s377
      %s395 = sphi 0, %s395
      %s397 = sphi 0, %s395
      %s398 = sphi 0, %s397
      %s412 = sphi 0, %s398
      %s416 = sphi 0, %s416
      %s418 = sphi 0, %s416
      %s419 = sphi 0, %s418
      %s433 = sphi 0, %s419
      %s437 = sphi 0, %s437
      %s439 = sphi 0, %s437
      %s440 = sphi 0, %s439
      %s454 = sphi 0, %s440
      %s458 = sphi 0, %s458
      %s460 = sphi 0, %s458
      %s461 = sphi 0, %s460
      %s475 = sphi 0, %s461
      %s479 = sphi 0, %s479
      %s481 = sphi 0, %s479
      %s482 = sphi 0, %s481
      %s496 = sphi 0, %s482
      %s500 = sphi 0, %s500
      %s502 = sphi 0, %s500
      %s503 = sphi 0, %s502
      %s517 = sphi 0, %s503
      %s521 = sphi 0, %s521
      %s523 = sphi 0, %s521
      %s524 = sphi 0, %s523
      %s538 = sphi 0, %s524
      %s542 = sphi 0, %s542
      %s544 = sphi 0, %s542
      %s545 = sphi 0, %s544
      %s559 = sphi 0, %s545
      %s563 = sphi 0, %s563
      %s565 = sphi 0, %s563
      %s566 = sphi 0, %s565
      %s580 = sphi 0, %s566
      %s584 = sphi 0, %s584
      %s586 = sphi 0, %s584
      %s587 = sphi 0, %s586
      %s601 = sphi 0, %s587
      %s605 = sphi 0, %s605
      %s607 = sphi 0, %s605
      %s608 = sphi 0, %s607
      %s622 = sphi 0, %s608
      %s626 = sphi 0, %s626
      %s628 = sphi 0, %s626
      %s629 = sphi 0, %s628
      %s643 = sphi 0, %s629
      %s647 = sphi 0, %s647
      %s649 = sphi 0, %s647
      %s650 = sphi 0, %s649
      %s664 = sphi 0, %s650
      %s670 = sphi 0, %s672
      %s673 = sphi 0, %s670
      %s674 = sphi 0, %s673
      %s690 = sphi 0, %s674
    $region4: #{tpu_custom_call.1} parent=1 // loop_header_branch
      %48 = sbr.rel (%p46) target = $region8
    $region5: #{tpu_custom_call.1} parent=1 // loop_body
      %s50 = ssub.s32 %s45, 1
      %s51 = ssub.s32 %s45, 2
      %s58 = sadd.s32 1, %s53
      %p59 = scmp.ge.s32.totalorder %s58, 2
      %s60 = scalar_select %p59, 0, %s58
      %s61 = sadd.s32 1, %s52
      %s62 = scalar_select %p59, %s61, %s52
      %p63 = scmp.ge.s32.totalorder %s62, 1
      %s64 = scalar_select %p63, 0, %s62
      %s65 = ssub.s32 %s52, %s64
      %p66 = scmp.eq.s32.totalorder %s65, 0
      %s68 = sadd.s32 %s67, 1
      %s69 = scalar_select %p66, %s67, %s68
      %p72 = pneg %p66
      %p73 = scmp.eq.s32.totalorder %s45, 1
      %p74 = por %p72, %p73
      %p75 = scmp.ne.s32.totalorder %s67, %s70
      %p76 = scmp.eq.s32.totalorder %s45, 0
      %p77 = por %p75, %p76
      %p78 = scmp.ne.s32.totalorder %s67, %s70
      %p79 = scmp.eq.s32.totalorder %s50, 1
      %p80 = por %p78, %p79
      %p81 = scmp.ne.s32.totalorder %s70, %s71
      %p82 = scmp.eq.s32.totalorder %s50, 0
      %p83 = por %p81, %p82
      %p84 = scmp.ne.s32.totalorder %s70, %s71
      %p85 = scmp.eq.s32.totalorder %s51, 1
      %p86 = por %p84, %p85
      %p88 = scmp.ne.s32.totalorder %s71, %s87
      %p89 = scmp.eq.s32.totalorder %s51, 0
      %p90 = por %p88, %p89
      %s91 = ssub.s32 %s52, %s64
      %p92 = scmp.eq.s32.totalorder %s91, 0
      %s94 = sadd.s32 %s93, 1
      %s95 = scalar_select %p92, %s93, %s94
      %p98 = pneg %p92
      %p99 = scmp.eq.s32.totalorder %s45, 1
      %p100 = por %p98, %p99
      %p101 = scmp.ne.s32.totalorder %s93, %s96
      %p102 = scmp.eq.s32.totalorder %s45, 0
      %p103 = por %p101, %p102
      %p104 = scmp.ne.s32.totalorder %s93, %s96
      %p105 = scmp.eq.s32.totalorder %s50, 1
      %p106 = por %p104, %p105
      %p107 = scmp.ne.s32.totalorder %s96, %s97
      %p108 = scmp.eq.s32.totalorder %s50, 0
      %p109 = por %p107, %p108
      %p110 = scmp.ne.s32.totalorder %s96, %s97
      %p111 = scmp.eq.s32.totalorder %s51, 1
      %p112 = por %p110, %p111
      %p114 = scmp.ne.s32.totalorder %s97, %s113
      %p115 = scmp.eq.s32.totalorder %s51, 0
      %p116 = por %p114, %p115
      %s117 = ssub.s32 %s52, %s64
      %p118 = scmp.eq.s32.totalorder %s117, 0
      %s120 = sadd.s32 %s119, 1
      %s121 = scalar_select %p118, %s119, %s120
      %p124 = pneg %p118
      %p125 = scmp.eq.s32.totalorder %s45, 1
      %p126 = por %p124, %p125
      %p127 = scmp.ne.s32.totalorder %s119, %s122
      %p128 = scmp.eq.s32.totalorder %s45, 0
      %p129 = por %p127, %p128
      %p130 = scmp.ne.s32.totalorder %s119, %s122
      %p131 = scmp.eq.s32.totalorder %s50, 1
      %p132 = por %p130, %p131
      %p133 = scmp.ne.s32.totalorder %s122, %s123
      %p134 = scmp.eq.s32.totalorder %s50, 0
      %p135 = por %p133, %p134
      %p136 = scmp.ne.s32.totalorder %s122, %s123
      %p137 = scmp.eq.s32.totalorder %s51, 1
      %p138 = por %p136, %p137
      %p140 = scmp.ne.s32.totalorder %s123, %s139
      %p141 = scmp.eq.s32.totalorder %s51, 0
      %p142 = por %p140, %p141
      %s144 = sadd.s32 %s143, 1
      %p147 = scmp.eq.s32.totalorder %s45, 1
      %p148 = scmp.ne.s32.totalorder %s143, %s145
      %p149 = scmp.eq.s32.totalorder %s45, 0
      %p150 = por %p148, %p149
      %p151 = scmp.ne.s32.totalorder %s143, %s145
      %p152 = scmp.eq.s32.totalorder %s50, 1
      %p153 = por %p151, %p152
      %p154 = scmp.ne.s32.totalorder %s145, %s146
      %p155 = scmp.eq.s32.totalorder %s50, 0
      %p156 = por %p154, %p155
      %p157 = scmp.ne.s32.totalorder %s145, %s146
      %p158 = scmp.eq.s32.totalorder %s51, 1
      %p159 = por %p157, %p158
      %p161 = scmp.ne.s32.totalorder %s146, %s160
      %p162 = scmp.eq.s32.totalorder %s51, 0
      %p163 = por %p161, %p162
      %s165 = sadd.s32 %s164, 1
      %p168 = scmp.eq.s32.totalorder %s45, 1
      %p169 = scmp.ne.s32.totalorder %s164, %s166
      %p170 = scmp.eq.s32.totalorder %s45, 0
      %p171 = por %p169, %p170
      %p172 = scmp.ne.s32.totalorder %s164, %s166
      %p173 = scmp.eq.s32.totalorder %s50, 1
      %p174 = por %p172, %p173
      %p175 = scmp.ne.s32.totalorder %s166, %s167
      %p176 = scmp.eq.s32.totalorder %s50, 0
      %p177 = por %p175, %p176
      %p178 = scmp.ne.s32.totalorder %s166, %s167
      %p179 = scmp.eq.s32.totalorder %s51, 1
      %p180 = por %p178, %p179
      %p182 = scmp.ne.s32.totalorder %s167, %s181
      %p183 = scmp.eq.s32.totalorder %s51, 0
      %p184 = por %p182, %p183
      %s186 = sadd.s32 %s185, 1
      %p189 = scmp.eq.s32.totalorder %s45, 1
      %p190 = scmp.ne.s32.totalorder %s185, %s187
      %p191 = scmp.eq.s32.totalorder %s45, 0
      %p192 = por %p190, %p191
      %p193 = scmp.ne.s32.totalorder %s185, %s187
      %p194 = scmp.eq.s32.totalorder %s50, 1
      %p195 = por %p193, %p194
      %p196 = scmp.ne.s32.totalorder %s187, %s188
      %p197 = scmp.eq.s32.totalorder %s50, 0
      %p198 = por %p196, %p197
      %p199 = scmp.ne.s32.totalorder %s187, %s188
      %p200 = scmp.eq.s32.totalorder %s51, 1
      %p201 = por %p199, %p200
      %p203 = scmp.ne.s32.totalorder %s188, %s202
      %p204 = scmp.eq.s32.totalorder %s51, 0
      %p205 = por %p203, %p204
      %s207 = sadd.s32 %s206, 1
      %p210 = scmp.eq.s32.totalorder %s45, 1
      %p211 = scmp.ne.s32.totalorder %s206, %s208
      %p212 = scmp.eq.s32.totalorder %s45, 0
      %p213 = por %p211, %p212
      %p214 = scmp.ne.s32.totalorder %s206, %s208
      %p215 = scmp.eq.s32.totalorder %s50, 1
      %p216 = por %p214, %p215
      %p217 = scmp.ne.s32.totalorder %s208, %s209
      %p218 = scmp.eq.s32.totalorder %s50, 0
      %p219 = por %p217, %p218
      %p220 = scmp.ne.s32.totalorder %s208, %s209
      %p221 = scmp.eq.s32.totalorder %s51, 1
      %p222 = por %p220, %p221
      %p224 = scmp.ne.s32.totalorder %s209, %s223
      %p225 = scmp.eq.s32.totalorder %s51, 0
      %p226 = por %p224, %p225
      %s228 = sadd.s32 %s227, 1
      %p231 = scmp.eq.s32.totalorder %s45, 1
      %p232 = scmp.ne.s32.totalorder %s227, %s229
      %p233 = scmp.eq.s32.totalorder %s45, 0
      %p234 = por %p232, %p233
      %p235 = scmp.ne.s32.totalorder %s227, %s229
      %p236 = scmp.eq.s32.totalorder %s50, 1
      %p237 = por %p235, %p236
      %p238 = scmp.ne.s32.totalorder %s229, %s230
      %p239 = scmp.eq.s32.totalorder %s50, 0
      %p240 = por %p238, %p239
      %p241 = scmp.ne.s32.totalorder %s229, %s230
      %p242 = scmp.eq.s32.totalorder %s51, 1
      %p243 = por %p241, %p242
      %p245 = scmp.ne.s32.totalorder %s230, %s244
      %p246 = scmp.eq.s32.totalorder %s51, 0
      %p247 = por %p245, %p246
      %s249 = sadd.s32 %s248, 1
      %p252 = scmp.eq.s32.totalorder %s45, 1
      %p253 = scmp.ne.s32.totalorder %s248, %s250
      %p254 = scmp.eq.s32.totalorder %s45, 0
      %p255 = por %p253, %p254
      %p256 = scmp.ne.s32.totalorder %s248, %s250
      %p257 = scmp.eq.s32.totalorder %s50, 1
      %p258 = por %p256, %p257
      %p259 = scmp.ne.s32.totalorder %s250, %s251
      %p260 = scmp.eq.s32.totalorder %s50, 0
      %p261 = por %p259, %p260
      %p262 = scmp.ne.s32.totalorder %s250, %s251
      %p263 = scmp.eq.s32.totalorder %s51, 1
      %p264 = por %p262, %p263
      %p266 = scmp.ne.s32.totalorder %s251, %s265
      %p267 = scmp.eq.s32.totalorder %s51, 0
      %p268 = por %p266, %p267
      %s270 = sadd.s32 %s269, 1
      %p273 = scmp.eq.s32.totalorder %s45, 1
      %p274 = scmp.ne.s32.totalorder %s269, %s271
      %p275 = scmp.eq.s32.totalorder %s45, 0
      %p276 = por %p274, %p275
      %p277 = scmp.ne.s32.totalorder %s269, %s271
      %p278 = scmp.eq.s32.totalorder %s50, 1
      %p279 = por %p277, %p278
      %p280 = scmp.ne.s32.totalorder %s271, %s272
      %p281 = scmp.eq.s32.totalorder %s50, 0
      %p282 = por %p280, %p281
      %p283 = scmp.ne.s32.totalorder %s271, %s272
      %p284 = scmp.eq.s32.totalorder %s51, 1
      %p285 = por %p283, %p284
      %p287 = scmp.ne.s32.totalorder %s272, %s286
      %p288 = scmp.eq.s32.totalorder %s51, 0
      %p289 = por %p287, %p288
      %s291 = sadd.s32 %s290, 1
      %p294 = scmp.eq.s32.totalorder %s45, 1
      %p295 = scmp.ne.s32.totalorder %s290, %s292
      %p296 = scmp.eq.s32.totalorder %s45, 0
      %p297 = por %p295, %p296
      %p298 = scmp.ne.s32.totalorder %s290, %s292
      %p299 = scmp.eq.s32.totalorder %s50, 1
      %p300 = por %p298, %p299
      %p301 = scmp.ne.s32.totalorder %s292, %s293
      %p302 = scmp.eq.s32.totalorder %s50, 0
      %p303 = por %p301, %p302
      %p304 = scmp.ne.s32.totalorder %s292, %s293
      %p305 = scmp.eq.s32.totalorder %s51, 1
      %p306 = por %p304, %p305
      %p308 = scmp.ne.s32.totalorder %s293, %s307
      %p309 = scmp.eq.s32.totalorder %s51, 0
      %p310 = por %p308, %p309
      %s312 = sadd.s32 %s311, 1
      %p315 = scmp.eq.s32.totalorder %s45, 1
      %p316 = scmp.ne.s32.totalorder %s311, %s313
      %p317 = scmp.eq.s32.totalorder %s45, 0
      %p318 = por %p316, %p317
      %p319 = scmp.ne.s32.totalorder %s311, %s313
      %p320 = scmp.eq.s32.totalorder %s50, 1
      %p321 = por %p319, %p320
      %p322 = scmp.ne.s32.totalorder %s313, %s314
      %p323 = scmp.eq.s32.totalorder %s50, 0
      %p324 = por %p322, %p323
      %p325 = scmp.ne.s32.totalorder %s313, %s314
      %p326 = scmp.eq.s32.totalorder %s51, 1
      %p327 = por %p325, %p326
      %p329 = scmp.ne.s32.totalorder %s314, %s328
      %p330 = scmp.eq.s32.totalorder %s51, 0
      %p331 = por %p329, %p330
      %s333 = sadd.s32 %s332, 1
      %p336 = scmp.eq.s32.totalorder %s45, 1
      %p337 = scmp.ne.s32.totalorder %s332, %s334
      %p338 = scmp.eq.s32.totalorder %s45, 0
      %p339 = por %p337, %p338
      %p340 = scmp.ne.s32.totalorder %s332, %s334
      %p341 = scmp.eq.s32.totalorder %s50, 1
      %p342 = por %p340, %p341
      %p343 = scmp.ne.s32.totalorder %s334, %s335
      %p344 = scmp.eq.s32.totalorder %s50, 0
      %p345 = por %p343, %p344
      %p346 = scmp.ne.s32.totalorder %s334, %s335
      %p347 = scmp.eq.s32.totalorder %s51, 1
      %p348 = por %p346, %p347
      %p350 = scmp.ne.s32.totalorder %s335, %s349
      %p351 = scmp.eq.s32.totalorder %s51, 0
      %p352 = por %p350, %p351
      %s354 = sadd.s32 %s353, 1
      %p357 = scmp.eq.s32.totalorder %s45, 1
      %p358 = scmp.ne.s32.totalorder %s353, %s355
      %p359 = scmp.eq.s32.totalorder %s45, 0
      %p360 = por %p358, %p359
      %p361 = scmp.ne.s32.totalorder %s353, %s355
      %p362 = scmp.eq.s32.totalorder %s50, 1
      %p363 = por %p361, %p362
      %p364 = scmp.ne.s32.totalorder %s355, %s356
      %p365 = scmp.eq.s32.totalorder %s50, 0
      %p366 = por %p364, %p365
      %p367 = scmp.ne.s32.totalorder %s355, %s356
      %p368 = scmp.eq.s32.totalorder %s51, 1
      %p369 = por %p367, %p368
      %p371 = scmp.ne.s32.totalorder %s356, %s370
      %p372 = scmp.eq.s32.totalorder %s51, 0
      %p373 = por %p371, %p372
      %s375 = sadd.s32 %s374, 1
      %p378 = scmp.eq.s32.totalorder %s45, 1
      %p379 = scmp.ne.s32.totalorder %s374, %s376
      %p380 = scmp.eq.s32.totalorder %s45, 0
      %p381 = por %p379, %p380
      %p382 = scmp.ne.s32.totalorder %s374, %s376
      %p383 = scmp.eq.s32.totalorder %s50, 1
      %p384 = por %p382, %p383
      %p385 = scmp.ne.s32.totalorder %s376, %s377
      %p386 = scmp.eq.s32.totalorder %s50, 0
      %p387 = por %p385, %p386
      %p388 = scmp.ne.s32.totalorder %s376, %s377
      %p389 = scmp.eq.s32.totalorder %s51, 1
      %p390 = por %p388, %p389
      %p392 = scmp.ne.s32.totalorder %s377, %s391
      %p393 = scmp.eq.s32.totalorder %s51, 0
      %p394 = por %p392, %p393
      %s396 = sadd.s32 %s395, 1
      %p399 = scmp.eq.s32.totalorder %s45, 1
      %p400 = scmp.ne.s32.totalorder %s395, %s397
      %p401 = scmp.eq.s32.totalorder %s45, 0
      %p402 = por %p400, %p401
      %p403 = scmp.ne.s32.totalorder %s395, %s397
      %p404 = scmp.eq.s32.totalorder %s50, 1
      %p405 = por %p403, %p404
      %p406 = scmp.ne.s32.totalorder %s397, %s398
      %p407 = scmp.eq.s32.totalorder %s50, 0
      %p408 = por %p406, %p407
      %p409 = scmp.ne.s32.totalorder %s397, %s398
      %p410 = scmp.eq.s32.totalorder %s51, 1
      %p411 = por %p409, %p410
      %p413 = scmp.ne.s32.totalorder %s398, %s412
      %p414 = scmp.eq.s32.totalorder %s51, 0
      %p415 = por %p413, %p414
      %s417 = sadd.s32 %s416, 1
      %p420 = scmp.eq.s32.totalorder %s45, 1
      %p421 = scmp.ne.s32.totalorder %s416, %s418
      %p422 = scmp.eq.s32.totalorder %s45, 0
      %p423 = por %p421, %p422
      %p424 = scmp.ne.s32.totalorder %s416, %s418
      %p425 = scmp.eq.s32.totalorder %s50, 1
      %p426 = por %p424, %p425
      %p427 = scmp.ne.s32.totalorder %s418, %s419
      %p428 = scmp.eq.s32.totalorder %s50, 0
      %p429 = por %p427, %p428
      %p430 = scmp.ne.s32.totalorder %s418, %s419
      %p431 = scmp.eq.s32.totalorder %s51, 1
      %p432 = por %p430, %p431
      %p434 = scmp.ne.s32.totalorder %s419, %s433
      %p435 = scmp.eq.s32.totalorder %s51, 0
      %p436 = por %p434, %p435
      %s438 = sadd.s32 %s437, 1
      %p441 = scmp.eq.s32.totalorder %s45, 1
      %p442 = scmp.ne.s32.totalorder %s437, %s439
      %p443 = scmp.eq.s32.totalorder %s45, 0
      %p444 = por %p442, %p443
      %p445 = scmp.ne.s32.totalorder %s437, %s439
      %p446 = scmp.eq.s32.totalorder %s50, 1
      %p447 = por %p445, %p446
      %p448 = scmp.ne.s32.totalorder %s439, %s440
      %p449 = scmp.eq.s32.totalorder %s50, 0
      %p450 = por %p448, %p449
      %p451 = scmp.ne.s32.totalorder %s439, %s440
      %p452 = scmp.eq.s32.totalorder %s51, 1
      %p453 = por %p451, %p452
      %p455 = scmp.ne.s32.totalorder %s440, %s454
      %p456 = scmp.eq.s32.totalorder %s51, 0
      %p457 = por %p455, %p456
      %s459 = sadd.s32 %s458, 1
      %p462 = scmp.eq.s32.totalorder %s45, 1
      %p463 = scmp.ne.s32.totalorder %s458, %s460
      %p464 = scmp.eq.s32.totalorder %s45, 0
      %p465 = por %p463, %p464
      %p466 = scmp.ne.s32.totalorder %s458, %s460
      %p467 = scmp.eq.s32.totalorder %s50, 1
      %p468 = por %p466, %p467
      %p469 = scmp.ne.s32.totalorder %s460, %s461
      %p470 = scmp.eq.s32.totalorder %s50, 0
      %p471 = por %p469, %p470
      %p472 = scmp.ne.s32.totalorder %s460, %s461
      %p473 = scmp.eq.s32.totalorder %s51, 1
      %p474 = por %p472, %p473
      %p476 = scmp.ne.s32.totalorder %s461, %s475
      %p477 = scmp.eq.s32.totalorder %s51, 0
      %p478 = por %p476, %p477
      %s480 = sadd.s32 %s479, 1
      %p483 = scmp.eq.s32.totalorder %s45, 1
      %p484 = scmp.ne.s32.totalorder %s479, %s481
      %p485 = scmp.eq.s32.totalorder %s45, 0
      %p486 = por %p484, %p485
      %p487 = scmp.ne.s32.totalorder %s479, %s481
      %p488 = scmp.eq.s32.totalorder %s50, 1
      %p489 = por %p487, %p488
      %p490 = scmp.ne.s32.totalorder %s481, %s482
      %p491 = scmp.eq.s32.totalorder %s50, 0
      %p492 = por %p490, %p491
      %p493 = scmp.ne.s32.totalorder %s481, %s482
      %p494 = scmp.eq.s32.totalorder %s51, 1
      %p495 = por %p493, %p494
      %p497 = scmp.ne.s32.totalorder %s482, %s496
      %p498 = scmp.eq.s32.totalorder %s51, 0
      %p499 = por %p497, %p498
      %s501 = sadd.s32 %s500, 1
      %p504 = scmp.eq.s32.totalorder %s45, 1
      %p505 = scmp.ne.s32.totalorder %s500, %s502
      %p506 = scmp.eq.s32.totalorder %s45, 0
      %p507 = por %p505, %p506
      %p508 = scmp.ne.s32.totalorder %s500, %s502
      %p509 = scmp.eq.s32.totalorder %s50, 1
      %p510 = por %p508, %p509
      %p511 = scmp.ne.s32.totalorder %s502, %s503
      %p512 = scmp.eq.s32.totalorder %s50, 0
      %p513 = por %p511, %p512
      %p514 = scmp.ne.s32.totalorder %s502, %s503
      %p515 = scmp.eq.s32.totalorder %s51, 1
      %p516 = por %p514, %p515
      %p518 = scmp.ne.s32.totalorder %s503, %s517
      %p519 = scmp.eq.s32.totalorder %s51, 0
      %p520 = por %p518, %p519
      %s522 = sadd.s32 %s521, 1
      %p525 = scmp.eq.s32.totalorder %s45, 1
      %p526 = scmp.ne.s32.totalorder %s521, %s523
      %p527 = scmp.eq.s32.totalorder %s45, 0
      %p528 = por %p526, %p527
      %p529 = scmp.ne.s32.totalorder %s521, %s523
      %p530 = scmp.eq.s32.totalorder %s50, 1
      %p531 = por %p529, %p530
      %p532 = scmp.ne.s32.totalorder %s523, %s524
      %p533 = scmp.eq.s32.totalorder %s50, 0
      %p534 = por %p532, %p533
      %p535 = scmp.ne.s32.totalorder %s523, %s524
      %p536 = scmp.eq.s32.totalorder %s51, 1
      %p537 = por %p535, %p536
      %p539 = scmp.ne.s32.totalorder %s524, %s538
      %p540 = scmp.eq.s32.totalorder %s51, 0
      %p541 = por %p539, %p540
      %s543 = sadd.s32 %s542, 1
      %p546 = scmp.eq.s32.totalorder %s45, 1
      %p547 = scmp.ne.s32.totalorder %s542, %s544
      %p548 = scmp.eq.s32.totalorder %s45, 0
      %p549 = por %p547, %p548
      %p550 = scmp.ne.s32.totalorder %s542, %s544
      %p551 = scmp.eq.s32.totalorder %s50, 1
      %p552 = por %p550, %p551
      %p553 = scmp.ne.s32.totalorder %s544, %s545
      %p554 = scmp.eq.s32.totalorder %s50, 0
      %p555 = por %p553, %p554
      %p556 = scmp.ne.s32.totalorder %s544, %s545
      %p557 = scmp.eq.s32.totalorder %s51, 1
      %p558 = por %p556, %p557
      %p560 = scmp.ne.s32.totalorder %s545, %s559
      %p561 = scmp.eq.s32.totalorder %s51, 0
      %p562 = por %p560, %p561
      %s564 = sadd.s32 %s563, 1
      %p567 = scmp.eq.s32.totalorder %s45, 1
      %p568 = scmp.ne.s32.totalorder %s563, %s565
      %p569 = scmp.eq.s32.totalorder %s45, 0
      %p570 = por %p568, %p569
      %p571 = scmp.ne.s32.totalorder %s563, %s565
      %p572 = scmp.eq.s32.totalorder %s50, 1
      %p573 = por %p571, %p572
      %p574 = scmp.ne.s32.totalorder %s565, %s566
      %p575 = scmp.eq.s32.totalorder %s50, 0
      %p576 = por %p574, %p575
      %p577 = scmp.ne.s32.totalorder %s565, %s566
      %p578 = scmp.eq.s32.totalorder %s51, 1
      %p579 = por %p577, %p578
      %p581 = scmp.ne.s32.totalorder %s566, %s580
      %p582 = scmp.eq.s32.totalorder %s51, 0
      %p583 = por %p581, %p582
      %s585 = sadd.s32 %s584, 1
      %p588 = scmp.eq.s32.totalorder %s45, 1
      %p589 = scmp.ne.s32.totalorder %s584, %s586
      %p590 = scmp.eq.s32.totalorder %s45, 0
      %p591 = por %p589, %p590
      %p592 = scmp.ne.s32.totalorder %s584, %s586
      %p593 = scmp.eq.s32.totalorder %s50, 1
      %p594 = por %p592, %p593
      %p595 = scmp.ne.s32.totalorder %s586, %s587
      %p596 = scmp.eq.s32.totalorder %s50, 0
      %p597 = por %p595, %p596
      %p598 = scmp.ne.s32.totalorder %s586, %s587
      %p599 = scmp.eq.s32.totalorder %s51, 1
      %p600 = por %p598, %p599
      %p602 = scmp.ne.s32.totalorder %s587, %s601
      %p603 = scmp.eq.s32.totalorder %s51, 0
      %p604 = por %p602, %p603
      %s606 = sadd.s32 %s605, 1
      %p609 = scmp.eq.s32.totalorder %s45, 1
      %p610 = scmp.ne.s32.totalorder %s605, %s607
      %p611 = scmp.eq.s32.totalorder %s45, 0
      %p612 = por %p610, %p611
      %p613 = scmp.ne.s32.totalorder %s605, %s607
      %p614 = scmp.eq.s32.totalorder %s50, 1
      %p615 = por %p613, %p614
      %p616 = scmp.ne.s32.totalorder %s607, %s608
      %p617 = scmp.eq.s32.totalorder %s50, 0
      %p618 = por %p616, %p617
      %p619 = scmp.ne.s32.totalorder %s607, %s608
      %p620 = scmp.eq.s32.totalorder %s51, 1
      %p621 = por %p619, %p620
      %p623 = scmp.ne.s32.totalorder %s608, %s622
      %p624 = scmp.eq.s32.totalorder %s51, 0
      %p625 = por %p623, %p624
      %s627 = sadd.s32 %s626, 1
      %p630 = scmp.eq.s32.totalorder %s45, 1
      %p631 = scmp.ne.s32.totalorder %s626, %s628
      %p632 = scmp.eq.s32.totalorder %s45, 0
      %p633 = por %p631, %p632
      %p634 = scmp.ne.s32.totalorder %s626, %s628
      %p635 = scmp.eq.s32.totalorder %s50, 1
      %p636 = por %p634, %p635
      %p637 = scmp.ne.s32.totalorder %s628, %s629
      %p638 = scmp.eq.s32.totalorder %s50, 0
      %p639 = por %p637, %p638
      %p640 = scmp.ne.s32.totalorder %s628, %s629
      %p641 = scmp.eq.s32.totalorder %s51, 1
      %p642 = por %p640, %p641
      %p644 = scmp.ne.s32.totalorder %s629, %s643
      %p645 = scmp.eq.s32.totalorder %s51, 0
      %p646 = por %p644, %p645
      %s648 = sadd.s32 %s647, 1
      %p651 = scmp.eq.s32.totalorder %s45, 1
      %p652 = scmp.ne.s32.totalorder %s647, %s649
      %p653 = scmp.eq.s32.totalorder %s45, 0
      %p654 = por %p652, %p653
      %p655 = scmp.ne.s32.totalorder %s647, %s649
      %p656 = scmp.eq.s32.totalorder %s50, 1
      %p657 = por %p655, %p656
      %p658 = scmp.ne.s32.totalorder %s649, %s650
      %p659 = scmp.eq.s32.totalorder %s50, 0
      %p660 = por %p658, %p659
      %p661 = scmp.ne.s32.totalorder %s649, %s650
      %p662 = scmp.eq.s32.totalorder %s51, 1
      %p663 = por %p661, %p662
      %p665 = scmp.ne.s32.totalorder %s650, %s664
      %p666 = scmp.eq.s32.totalorder %s51, 0
      %p667 = por %p665, %p666
      %s668 = ssub.s32 %s52, %s64
      %p669 = scmp.eq.s32.totalorder %s668, 0
      %s671 = sadd.s32 %s670, 1
      %s672 = scalar_select %p669, %s670, %s671
      %p675 = pneg %p669
      %p676 = scmp.eq.s32.totalorder %s45, 1
      %p677 = por %p675, %p676
      %p678 = scmp.ne.s32.totalorder %s670, %s673
      %p679 = scmp.eq.s32.totalorder %s45, 0
      %p680 = por %p678, %p679
      %p681 = scmp.ne.s32.totalorder %s670, %s673
      %p682 = scmp.eq.s32.totalorder %s50, 1
      %p683 = por %p681, %p682
      %p684 = scmp.ne.s32.totalorder %s673, %s674
      %p685 = scmp.eq.s32.totalorder %s50, 0
      %p686 = por %p684, %p685
      %p687 = scmp.ne.s32.totalorder %s673, %s674
      %p688 = scmp.eq.s32.totalorder %s51, 1
      %p689 = por %p687, %p688
      %p691 = scmp.ne.s32.totalorder %s674, %s690
      %p692 = scmp.eq.s32.totalorder %s51, 0
      %p693 = por %p691, %p692
      %p694 = scmp.le.s32.totalorder 1, %s45
      %p695 = scmp.lt.s32.totalorder %s45, 3
      %p696 = pnand %p694, %p695
      %p697 = pneg %p696
      // Predicated region
      $region9: #{tpu_custom_call.1} parent=5 // pred_check
        _
      $region10: #{tpu_custom_call.1} parent=5 // pred_check_branch
        %699 = sbr.rel (%p696) target = $region12
      $region11: #{tpu_custom_call.1} parent=5 // pred_region
        %s700 = ssub.s32 %s45, 1
        // Predicated region
        $region13: #{tpu_custom_call.1} parent=11 // pred_check
          %p701 = pneg %p83
        $region14: #{tpu_custom_call.1} parent=11 // pred_check_branch
          %703 = sbr.rel (%p701) target = $region16
        $region15: #{tpu_custom_call.1} parent=11 // pred_region
          %s704 = smul.u32 2, %s54
          %s706 = ssub.s32 256, 256
          %707 = vsyncadd [#allocation7], %s706
          %s708 = smul.addr %s704, 128
          %s709 = scalar_lea.hbm %s0, %s708
          %s710 = sshll.u32 [#allocation6], 4
          %s711 = int_to_ptr.vmem [resolvable:$true] %s710
          %716 = dma.hbm_to_vmem [thread:$0]  %s709, 256, %s711, [#allocation7], 128, 128, 8
        $region16: #{tpu_custom_call.1} parent=11 // pred_fallthru
          _
        // Predicated region
        $region17: #{tpu_custom_call.1} parent=11 // pred_check
          %p717 = pneg %p109
        $region18: #{tpu_custom_call.1} parent=11 // pred_check_branch
          %719 = sbr.rel (%p717) target = $region20
        $region19: #{tpu_custom_call.1} parent=11 // pred_region
          %s720 = smul.u32 2, %s54
          %s722 = ssub.s32 32, 32
          %723 = vsyncadd [#allocation10], %s722
          %s724 = smul.addr %s720, 16
          %s725 = scalar_lea.hbm %s1, %s724
          %s726 = sshll.u32 [#allocation9], 4
          %s727 = int_to_ptr.vmem [resolvable:$true] %s726
          %732 = dma.hbm_to_vmem [thread:$0]  %s725, 32, %s727, [#allocation10], 16, 16, 1
        $region20: #{tpu_custom_call.1} parent=11 // pred_fallthru
          _
        // Predicated region
        $region21: #{tpu_custom_call.1} parent=11 // pred_check
          %p733 = pneg %p135
        $region22: #{tpu_custom_call.1} parent=11 // pred_check_branch
          %735 = sbr.rel (%p733) target = $region24
        $region23: #{tpu_custom_call.1} parent=11 // pred_region
          %s736 = smul.u32 2, %s54
          %p737 = scmp.lt.s32.totalorder %s736, 1
          %s738 = scalar_select %p737, %s736, 1
          %s739 = smul.addr %s738, 8
          %s740 = scalar_lea.vmem %s2, %s739
          %s741 = smul.u32 2, %s54
        $region24: #{tpu_custom_call.1} parent=11 // pred_fallthru
          _
        // Predicated region
        $region25: #{tpu_custom_call.1} parent=11 // pred_check
          %p742 = pneg %p156
        $region26: #{tpu_custom_call.1} parent=11 // pred_check_branch
          %744 = sbr.rel (%p742) target = $region28
        $region27: #{tpu_custom_call.1} parent=11 // pred_region
          %s746 = ssub.s32 32, 32
          %747 = vsyncadd [#allocation10], %s746
          %s748 = sshll.u32 [#allocation11], 4
          %s749 = int_to_ptr.vmem [resolvable:$true] %s748
          %754 = dma.hbm_to_vmem [thread:$0]  %s3, 32, %s749, [#allocation10], 16, 16, 1
        $region28: #{tpu_custom_call.1} parent=11 // pred_fallthru
          _
        // Predicated region
        $region29: #{tpu_custom_call.1} parent=11 // pred_check
          %p755 = pneg %p177
        $region30: #{tpu_custom_call.1} parent=11 // pred_check_branch
          %757 = sbr.rel (%p755) target = $region32
        $region31: #{tpu_custom_call.1} parent=11 // pred_region
          %s759 = ssub.s32 32, 32
          %760 = vsyncadd [#allocation13], %s759
          %s761 = sshll.u32 [#allocation12], 4
          %s762 = int_to_ptr.vmem [resolvable:$true] %s761
          %767 = dma.hbm_to_vmem [thread:$0]  %s4, 32, %s762, [#allocation13], 16, 16, 1
        $region32: #{tpu_custom_call.1} parent=11 // pred_fallthru
          _
        // Predicated region
        $region33: #{tpu_custom_call.1} parent=11 // pred_check
          %p768 = pneg %p198
        $region34: #{tpu_custom_call.1} parent=11 // pred_check_branch
          %770 = sbr.rel (%p768) target = $region36
        $region35: #{tpu_custom_call.1} parent=11 // pred_region
          _
        $region36: #{tpu_custom_call.1} parent=11 // pred_fallthru
          _
        // Predicated region
        $region37: #{tpu_custom_call.1} parent=11 // pred_check
          %p771 = pneg %p219
        $region38: #{tpu_custom_call.1} parent=11 // pred_check_branch
          %773 = sbr.rel (%p771) target = $region40
        $region39: #{tpu_custom_call.1} parent=11 // pred_region
          %s775 = ssub.s32 32, 32
          %776 = vsyncadd [#allocation13], %s775
          %s777 = sshll.u32 [#allocation14], 4
          %s778 = int_to_ptr.vmem [resolvable:$true] %s777
          %783 = dma.hbm_to_vmem [thread:$0]  %s6, 32, %s778, [#allocation13], 16, 16, 1
        $region40: #{tpu_custom_call.1} parent=11 // pred_fallthru
          _
        // Predicated region
        $region41: #{tpu_custom_call.1} parent=11 // pred_check
          %p784 = pneg %p240
        $region42: #{tpu_custom_call.1} parent=11 // pred_check_branch
          %786 = sbr.rel (%p784) target = $region44
        $region43: #{tpu_custom_call.1} parent=11 // pred_region
          _
        $region44: #{tpu_custom_call.1} parent=11 // pred_fallthru
          _
        // Predicated region
        $region45: #{tpu_custom_call.1} parent=11 // pred_check
          %p787 = pneg %p261
        $region46: #{tpu_custom_call.1} parent=11 // pred_check_branch
          %789 = sbr.rel (%p787) target = $region48
        $region47: #{tpu_custom_call.1} parent=11 // pred_region
          %s791 = ssub.s32 32, 32
          %792 = vsyncadd [#allocation16], %s791
          %s793 = sshll.u32 [#allocation15], 4
          %s794 = int_to_ptr.vmem [resolvable:$true] %s793
          %799 = dma.hbm_to_vmem [thread:$0]  %s8, 32, %s794, [#allocation16], 16, 16, 1
        $region48: #{tpu_custom_call.1} parent=11 // pred_fallthru
          _
        // Predicated region
        $region49: #{tpu_custom_call.1} parent=11 // pred_check
          %p800 = pneg %p282
        $region50: #{tpu_custom_call.1} parent=11 // pred_check_branch
          %802 = sbr.rel (%p800) target = $region52
        $region51: #{tpu_custom_call.1} parent=11 // pred_region
          _
        $region52: #{tpu_custom_call.1} parent=11 // pred_fallthru
          _
        // Predicated region
        $region53: #{tpu_custom_call.1} parent=11 // pred_check
          %p803 = pneg %p303
        $region54: #{tpu_custom_call.1} parent=11 // pred_check_branch
          %805 = sbr.rel (%p803) target = $region56
        $region55: #{tpu_custom_call.1} parent=11 // pred_region
          %s807 = ssub.s32 32, 32
          %808 = vsyncadd [#allocation16], %s807
          %s809 = sshll.u32 [#allocation17], 4
          %s810 = int_to_ptr.vmem [resolvable:$true] %s809
          %815 = dma.hbm_to_vmem [thread:$0]  %s10, 32, %s810, [#allocation16], 16, 16, 1
        $region56: #{tpu_custom_call.1} parent=11 // pred_fallthru
          _
        // Predicated region
        $region57: #{tpu_custom_call.1} parent=11 // pred_check
          %p816 = pneg %p324
        $region58: #{tpu_custom_call.1} parent=11 // pred_check_branch
          %818 = sbr.rel (%p816) target = $region60
        $region59: #{tpu_custom_call.1} parent=11 // pred_region
          %s820 = ssub.s32 512, 512
          %821 = vsyncadd [#allocation19], %s820
          %s822 = sshll.u32 [#allocation18], 4
          %s823 = int_to_ptr.vmem [resolvable:$true] %s822
          %828 = dma.hbm_to_vmem [thread:$0]  %s11, 512, %s823, [#allocation19], 64, 64, 4
        $region60: #{tpu_custom_call.1} parent=11 // pred_fallthru
          _
        // Predicated region
        $region61: #{tpu_custom_call.1} parent=11 // pred_check
          %p829 = pneg %p345
        $region62: #{tpu_custom_call.1} parent=11 // pred_check_branch
          %831 = sbr.rel (%p829) target = $region64
        $region63: #{tpu_custom_call.1} parent=11 // pred_region
          %s833 = ssub.s32 32, 32
          %834 = vsyncadd [#allocation19], %s833
          %s835 = sshll.u32 [#allocation20], 4
          %s836 = int_to_ptr.vmem [resolvable:$true] %s835
          %841 = dma.hbm_to_vmem [thread:$0]  %s12, 32, %s836, [#allocation19], 16, 16, 1
        $region64: #{tpu_custom_call.1} parent=11 // pred_fallthru
          _
        // Predicated region
        $region65: #{tpu_custom_call.1} parent=11 // pred_check
          %p842 = pneg %p366
        $region66: #{tpu_custom_call.1} parent=11 // pred_check_branch
          %844 = sbr.rel (%p842) target = $region68
        $region67: #{tpu_custom_call.1} parent=11 // pred_region
          %s846 = ssub.s32 32, 32
          %847 = vsyncadd [#allocation22], %s846
          %s848 = sshll.u32 [#allocation21], 4
          %s849 = int_to_ptr.vmem [resolvable:$true] %s848
          %854 = dma.hbm_to_vmem [thread:$0]  %s13, 32, %s849, [#allocation22], 16, 16, 1
        $region68: #{tpu_custom_call.1} parent=11 // pred_fallthru
          _
        // Predicated region
        $region69: #{tpu_custom_call.1} parent=11 // pred_check
          %p855 = pneg %p387
        $region70: #{tpu_custom_call.1} parent=11 // pred_check_branch
          %857 = sbr.rel (%p855) target = $region72
        $region71: #{tpu_custom_call.1} parent=11 // pred_region
          _
        $region72: #{tpu_custom_call.1} parent=11 // pred_fallthru
          _
        // Predicated region
        $region73: #{tpu_custom_call.1} parent=11 // pred_check
          %p858 = pneg %p408
        $region74: #{tpu_custom_call.1} parent=11 // pred_check_branch
          %860 = sbr.rel (%p858) target = $region76
        $region75: #{tpu_custom_call.1} parent=11 // pred_region
          %s862 = ssub.s32 32, 32
          %863 = vsyncadd [#allocation22], %s862
          %s864 = sshll.u32 [#allocation23], 4
          %s865 = int_to_ptr.vmem [resolvable:$true] %s864
          %870 = dma.hbm_to_vmem [thread:$0]  %s15, 32, %s865, [#allocation22], 16, 16, 1
        $region76: #{tpu_custom_call.1} parent=11 // pred_fallthru
          _
        // Predicated region
        $region77: #{tpu_custom_call.1} parent=11 // pred_check
          %p871 = pneg %p429
        $region78: #{tpu_custom_call.1} parent=11 // pred_check_branch
          %873 = sbr.rel (%p871) target = $region80
        $region79: #{tpu_custom_call.1} parent=11 // pred_region
          _
        $region80: #{tpu_custom_call.1} parent=11 // pred_fallthru
          _
        // Predicated region
        $region81: #{tpu_custom_call.1} parent=11 // pred_check
          %p874 = pneg %p450
        $region82: #{tpu_custom_call.1} parent=11 // pred_check_branch
          %876 = sbr.rel (%p874) target = $region84
        $region83: #{tpu_custom_call.1} parent=11 // pred_region
          %s878 = ssub.s32 32, 32
          %879 = vsyncadd [#allocation25], %s878
          %s880 = sshll.u32 [#allocation24], 4
          %s881 = int_to_ptr.vmem [resolvable:$true] %s880
          %886 = dma.hbm_to_vmem [thread:$0]  %s17, 32, %s881, [#allocation25], 16, 16, 1
        $region84: #{tpu_custom_call.1} parent=11 // pred_fallthru
          _
        // Predicated region
        $region85: #{tpu_custom_call.1} parent=11 // pred_check
          %p887 = pneg %p471
        $region86: #{tpu_custom_call.1} parent=11 // pred_check_branch
          %889 = sbr.rel (%p887) target = $region88
        $region87: #{tpu_custom_call.1} parent=11 // pred_region
          _
        $region88: #{tpu_custom_call.1} parent=11 // pred_fallthru
          _
        // Predicated region
        $region89: #{tpu_custom_call.1} parent=11 // pred_check
          %p890 = pneg %p492
        $region90: #{tpu_custom_call.1} parent=11 // pred_check_branch
          %892 = sbr.rel (%p890) target = $region92
        $region91: #{tpu_custom_call.1} parent=11 // pred_region
          %s894 = ssub.s32 16, 16
          %895 = vsyncadd [#allocation25], %s894
          %s897 = sshll.u32 [#allocation26], 4
          %s898 = int_to_ptr.vmem [resolvable:$true] %s897
          %900 = dma.hbm_to_vmem [thread:$0]  %s19, 16, %s898, [#allocation25]
        $region92: #{tpu_custom_call.1} parent=11 // pred_fallthru
          _
        // Predicated region
        $region93: #{tpu_custom_call.1} parent=11 // pred_check
          %p901 = pneg %p513
        $region94: #{tpu_custom_call.1} parent=11 // pred_check_branch
          %903 = sbr.rel (%p901) target = $region96
        $region95: #{tpu_custom_call.1} parent=11 // pred_region
          %s905 = ssub.s32 256, 256
          %906 = vsyncadd [#allocation28], %s905
          %s907 = sshll.u32 [#allocation27], 4
          %s908 = int_to_ptr.vmem [resolvable:$true] %s907
          %913 = dma.hbm_to_vmem [thread:$0]  %s20, 256, %s908, [#allocation28], 64, 64, 4
        $region96: #{tpu_custom_call.1} parent=11 // pred_fallthru
          _
        // Predicated region
        $region97: #{tpu_custom_call.1} parent=11 // pred_check
          %p914 = pneg %p534
        $region98: #{tpu_custom_call.1} parent=11 // pred_check_branch
          %916 = sbr.rel (%p914) target = $region100
        $region99: #{tpu_custom_call.1} parent=11 // pred_region
          _
        $region100: #{tpu_custom_call.1} parent=11 // pred_fallthru
          _
        // Predicated region
        $region101: #{tpu_custom_call.1} parent=11 // pred_check
          %p917 = pneg %p555
        $region102: #{tpu_custom_call.1} parent=11 // pred_check_branch
          %919 = sbr.rel (%p917) target = $region104
        $region103: #{tpu_custom_call.1} parent=11 // pred_region
          _
        $region104: #{tpu_custom_call.1} parent=11 // pred_fallthru
          _
        // Predicated region
        $region105: #{tpu_custom_call.1} parent=11 // pred_check
          %p920 = pneg %p576
        $region106: #{tpu_custom_call.1} parent=11 // pred_check_branch
          %922 = sbr.rel (%p920) target = $region108
        $region107: #{tpu_custom_call.1} parent=11 // pred_region
          _
        $region108: #{tpu_custom_call.1} parent=11 // pred_fallthru
          _
        // Predicated region
        $region109: #{tpu_custom_call.1} parent=11 // pred_check
          %p923 = pneg %p597
        $region110: #{tpu_custom_call.1} parent=11 // pred_check_branch
          %925 = sbr.rel (%p923) target = $region112
        $region111: #{tpu_custom_call.1} parent=11 // pred_region
          %s927 = ssub.s32 512, 512
          %928 = vsyncadd [#allocation28], %s927
          %s929 = sshll.u32 [#allocation29], 4
          %s930 = int_to_ptr.vmem [resolvable:$true] %s929
          %935 = dma.hbm_to_vmem [thread:$0]  %s24, 512, %s930, [#allocation28], 64, 64, 4
        $region112: #{tpu_custom_call.1} parent=11 // pred_fallthru
          _
        // Predicated region
        $region113: #{tpu_custom_call.1} parent=11 // pred_check
          %p936 = pneg %p618
        $region114: #{tpu_custom_call.1} parent=11 // pred_check_branch
          %938 = sbr.rel (%p936) target = $region116
        $region115: #{tpu_custom_call.1} parent=11 // pred_region
          _
        $region116: #{tpu_custom_call.1} parent=11 // pred_fallthru
          _
        // Predicated region
        $region117: #{tpu_custom_call.1} parent=11 // pred_check
          %p939 = pneg %p639
        $region118: #{tpu_custom_call.1} parent=11 // pred_check_branch
          %941 = sbr.rel (%p939) target = $region120
        $region119: #{tpu_custom_call.1} parent=11 // pred_region
          _
        $region120: #{tpu_custom_call.1} parent=11 // pred_fallthru
          _
        // Predicated region
        $region121: #{tpu_custom_call.1} parent=11 // pred_check
          %p942 = pneg %p660
        $region122: #{tpu_custom_call.1} parent=11 // pred_check_branch
          %944 = sbr.rel (%p942) target = $region124
        $region123: #{tpu_custom_call.1} parent=11 // pred_region
          _
        $region124: #{tpu_custom_call.1} parent=11 // pred_fallthru
          _
      $region12: #{tpu_custom_call.1} parent=5 // pred_fallthru
        _
      %p945 = scmp.lt.s32.totalorder %s45, 2
      // Predicated region
      $region125: #{tpu_custom_call.1} parent=5 // pred_check
        %p946 = pneg %p945
      $region126: #{tpu_custom_call.1} parent=5 // pred_check_branch
        %948 = sbr.rel (%p946) target = $region128
      $region127: #{tpu_custom_call.1} parent=5 // pred_region
        _
      $region128: #{tpu_custom_call.1} parent=5 // pred_fallthru
        _
      %p949 = scmp.le.s32.totalorder 1, %s45
      %p950 = scmp.lt.s32.totalorder %s45, 3
      %p951 = pnand %p949, %p950
      %p952 = pneg %p951
      // Predicated region
      $region129: #{tpu_custom_call.1} parent=5 // pred_check
        _
      $region130: #{tpu_custom_call.1} parent=5 // pred_check_branch
        %954 = sbr.rel (%p951) target = $region132
      $region131: #{tpu_custom_call.1} parent=5 // pred_region
        %s955 = ssub.s32 %s45, 1
        // Predicated region
        $region133: #{tpu_custom_call.1} parent=131 // pred_check
          %p956 = pneg %p83
        $region134: #{tpu_custom_call.1} parent=131 // pred_check_branch
          %958 = sbr.rel (%p956) target = $region136
        $region135: #{tpu_custom_call.1} parent=131 // pred_region
          %959 = dma.done [#allocation7], 256
        $region136: #{tpu_custom_call.1} parent=131 // pred_fallthru
          _
        // Predicated region
        $region137: #{tpu_custom_call.1} parent=131 // pred_check
          %p960 = pneg %p109
        $region138: #{tpu_custom_call.1} parent=131 // pred_check_branch
          %962 = sbr.rel (%p960) target = $region140
        $region139: #{tpu_custom_call.1} parent=131 // pred_region
          %963 = dma.done [#allocation10], 32
        $region140: #{tpu_custom_call.1} parent=131 // pred_fallthru
          _
        // Predicated region
        $region141: #{tpu_custom_call.1} parent=131 // pred_check
          %p964 = pneg %p156
        $region142: #{tpu_custom_call.1} parent=131 // pred_check_branch
          %966 = sbr.rel (%p964) target = $region144
        $region143: #{tpu_custom_call.1} parent=131 // pred_region
          %967 = dma.done [#allocation10], 32
        $region144: #{tpu_custom_call.1} parent=131 // pred_fallthru
          _
        // Predicated region
        $region145: #{tpu_custom_call.1} parent=131 // pred_check
          %p968 = pneg %p177
        $region146: #{tpu_custom_call.1} parent=131 // pred_check_branch
          %970 = sbr.rel (%p968) target = $region148
        $region147: #{tpu_custom_call.1} parent=131 // pred_region
          %971 = dma.done [#allocation13], 32
        $region148: #{tpu_custom_call.1} parent=131 // pred_fallthru
          _
        // Predicated region
        $region149: #{tpu_custom_call.1} parent=131 // pred_check
          %p972 = pneg %p219
        $region150: #{tpu_custom_call.1} parent=131 // pred_check_branch
          %974 = sbr.rel (%p972) target = $region152
        $region151: #{tpu_custom_call.1} parent=131 // pred_region
          %975 = dma.done [#allocation13], 32
        $region152: #{tpu_custom_call.1} parent=131 // pred_fallthru
          _
        // Predicated region
        $region153: #{tpu_custom_call.1} parent=131 // pred_check
          %p976 = pneg %p261
        $region154: #{tpu_custom_call.1} parent=131 // pred_check_branch
          %978 = sbr.rel (%p976) target = $region156
        $region155: #{tpu_custom_call.1} parent=131 // pred_region
          %979 = dma.done [#allocation16], 32
        $region156: #{tpu_custom_call.1} parent=131 // pred_fallthru
          _
        // Predicated region
        $region157: #{tpu_custom_call.1} parent=131 // pred_check
          %p980 = pneg %p303
        $region158: #{tpu_custom_call.1} parent=131 // pred_check_branch
          %982 = sbr.rel (%p980) target = $region160
        $region159: #{tpu_custom_call.1} parent=131 // pred_region
          %983 = dma.done [#allocation16], 32
        $region160: #{tpu_custom_call.1} parent=131 // pred_fallthru
          _
        // Predicated region
        $region161: #{tpu_custom_call.1} parent=131 // pred_check
          %p984 = pneg %p324
        $region162: #{tpu_custom_call.1} parent=131 // pred_check_branch
          %986 = sbr.rel (%p984) target = $region164
        $region163: #{tpu_custom_call.1} parent=131 // pred_region
          %987 = dma.done [#allocation19], 512
        $region164: #{tpu_custom_call.1} parent=131 // pred_fallthru
          _
        // Predicated region
        $region165: #{tpu_custom_call.1} parent=131 // pred_check
          %p988 = pneg %p345
        $region166: #{tpu_custom_call.1} parent=131 // pred_check_branch
          %990 = sbr.rel (%p988) target = $region168
        $region167: #{tpu_custom_call.1} parent=131 // pred_region
          %991 = dma.done [#allocation19], 32
        $region168: #{tpu_custom_call.1} parent=131 // pred_fallthru
          _
        // Predicated region
        $region169: #{tpu_custom_call.1} parent=131 // pred_check
          %p992 = pneg %p366
        $region170: #{tpu_custom_call.1} parent=131 // pred_check_branch
          %994 = sbr.rel (%p992) target = $region172
        $region171: #{tpu_custom_call.1} parent=131 // pred_region
          %995 = dma.done [#allocation22], 32
        $region172: #{tpu_custom_call.1} parent=131 // pred_fallthru
          _
        // Predicated region
        $region173: #{tpu_custom_call.1} parent=131 // pred_check
          %p996 = pneg %p408
        $region174: #{tpu_custom_call.1} parent=131 // pred_check_branch
          %998 = sbr.rel (%p996) target = $region176
        $region175: #{tpu_custom_call.1} parent=131 // pred_region
          %999 = dma.done [#allocation22], 32
        $region176: #{tpu_custom_call.1} parent=131 // pred_fallthru
          _
        // Predicated region
        $region177: #{tpu_custom_call.1} parent=131 // pred_check
          %p1000 = pneg %p450
        $region178: #{tpu_custom_call.1} parent=131 // pred_check_branch
          %1002 = sbr.rel (%p1000) target = $region180
        $region179: #{tpu_custom_call.1} parent=131 // pred_region
          %1003 = dma.done [#allocation25], 32
        $region180: #{tpu_custom_call.1} parent=131 // pred_fallthru
          _
        // Predicated region
        $region181: #{tpu_custom_call.1} parent=131 // pred_check
          %p1004 = pneg %p492
        $region182: #{tpu_custom_call.1} parent=131 // pred_check_branch
          %1006 = sbr.rel (%p1004) target = $region184
        $region183: #{tpu_custom_call.1} parent=131 // pred_region
          %1007 = dma.done [#allocation25], 16
        $region184: #{tpu_custom_call.1} parent=131 // pred_fallthru
          _
        // Predicated region
        $region185: #{tpu_custom_call.1} parent=131 // pred_check
          %p1008 = pneg %p513
        $region186: #{tpu_custom_call.1} parent=131 // pred_check_branch
          %1010 = sbr.rel (%p1008) target = $region188
        $region187: #{tpu_custom_call.1} parent=131 // pred_region
          %1011 = dma.done [#allocation28], 256
        $region188: #{tpu_custom_call.1} parent=131 // pred_fallthru
          _
        // Predicated region
        $region189: #{tpu_custom_call.1} parent=131 // pred_check
          %p1012 = pneg %p597
        $region190: #{tpu_custom_call.1} parent=131 // pred_check_branch
          %1014 = sbr.rel (%p1012) target = $region192
        $region191: #{tpu_custom_call.1} parent=131 // pred_region
          %1015 = dma.done [#allocation28], 512
        $region192: #{tpu_custom_call.1} parent=131 // pred_fallthru
          _
        %p1016 = pneg %p83
        %p1017 = pneg %p80
        %p1018 = pneg %p109
        %p1019 = pneg %p106
        %s1020 = smul.u32 2, %s54
        %p1021 = scmp.lt.s32.totalorder %s1020, 1
        %s1022 = scalar_select %p1021, %s1020, 1
        %s1023 = smul.addr %s1022, 8
        %s1024 = scalar_lea.vmem %s2, %s1023
        %p1025 = pneg %p135
        %p1026 = pneg %p132
        %p1027 = pneg %p156
        %p1028 = pneg %p153
        %p1029 = pneg %p177
        %p1030 = pneg %p174
        %p1031 = pneg %p198
        %p1032 = pneg %p195
        %p1033 = pneg %p219
        %p1034 = pneg %p216
        %p1035 = pneg %p240
        %p1036 = pneg %p237
        %p1037 = pneg %p261
        %p1038 = pneg %p258
        %p1039 = pneg %p282
        %p1040 = pneg %p279
        %p1041 = pneg %p303
        %p1042 = pneg %p300
        %p1043 = pneg %p324
        %p1044 = pneg %p321
        %p1045 = pneg %p345
        %p1046 = pneg %p342
        %p1047 = pneg %p366
        %p1048 = pneg %p363
        %p1049 = pneg %p387
        %p1050 = pneg %p384
        %p1051 = pneg %p408
        %p1052 = pneg %p405
        %p1053 = pneg %p429
        %p1054 = pneg %p426
        %p1055 = pneg %p450
        %p1056 = pneg %p447
        %p1057 = pneg %p471
        %p1058 = pneg %p468
        %p1059 = pneg %p492
        %p1060 = pneg %p489
        %p1061 = pneg %p513
        %p1062 = pneg %p510
        %p1063 = pneg %p534
        %p1064 = pneg %p531
        %p1065 = pneg %p555
        %p1066 = pneg %p552
        %p1067 = pneg %p576
        %p1068 = pneg %p573
        %p1069 = pneg %p597
        %p1070 = pneg %p594
        %p1071 = pneg %p618
        %p1072 = pneg %p615
        %p1073 = pneg %p639
        %p1074 = pneg %p636
        %p1075 = pneg %p660
        %p1076 = pneg %p657
        %p1077 = pneg %p686
        %p1078 = pneg %p683
        %s1079 = smul.u32 2, %s54
        %s1080 = smul.u32 2, %s54
        %s1081 = smul.u32 2, %s54
        %p1082 = scmp.lt.s32.totalorder %s1081, 1
        %s1083 = scalar_select %p1082, %s1081, 1
        %s1084 = smul.addr %s1083, 8
        %s1085 = scalar_lea.vmem %s2, %s1084
        %s1086 = smul.u32 2, %s54
        %p1088 = scmp.eq.s32.totalorder %s55, 0
        // Predicated region
        $region193: #{tpu_custom_call.1} parent=131 // pred_check
          %p1089 = pneg %p1088
        $region194: #{tpu_custom_call.1} parent=131 // pred_check_branch
          %1091 = sbr.rel (%p1089) target = $region196
        $region195: #{tpu_custom_call.1} parent=131 // pred_region
          %v1092 = vld [vmem:[#allocation6] sm:$0xff]
          %v1093 = vld [vmem:[#allocation6 + $0x8] sm:$0xff]
          %vm1094 = vcmask 261120
          %1095 = vst.msk [vmem:[#allocation2] sm:$0xff] %vm1094, %v1092
          %1096 = vst.msk [vmem:[#allocation2 + $0x8] sm:$0xff] %vm1094, %v1093
          %v1097 = vld [vmem:[%s1085] sm:$0xff]
          %v1098 = vld [vmem:[%s1085 + $0x8] sm:$0xff]
          %v1099 = vld [vmem:[#allocation9] sm:$0x1]
          %v1100 = vld [vmem:[#allocation9 + $0x1] sm:$0x1]
          %1102 = vset.pattern.permute.xlu0 0
          %1103 = vperm.xlu0 %1102, %v1097
          %v1104 = vpop.permute.xlu0 %1103
          %1107 = vset.pattern.permute.xlu0 0
          %1108 = vperm.xlu0 %1107, %v1098
          %v1109 = vpop.permute.xlu0 %1108
          %v1113 = vlaneseq
          %v1114 = vshrl.u32 %v1113, 7
          %v1115 = vsub.s32 0, %v1114
          %v1116 = vrot.slane %v1099, %v1115
          %v1117 = vlaneseq
          %v1118 = vshrl.u32 %v1117, 7
          %v1119 = vsub.s32 0, %v1118
          %v1120 = vrot.slane %v1100, %v1119
          %v1123 = vmul.f32 %v1104, %v1116
          %v1124 = vmul.f32 %v1109, %v1120
          %vm1125 = vcmask 64512
          %1126 = vst.msk [vmem:[#allocation3] sm:$0xff] %vm1125, %v1123
          %1127 = vst.msk [vmem:[#allocation3 + $0x8] sm:$0xff] %vm1125, %v1124
          %1128 = vst.msk [vmem:[#allocation3 + $0x10] sm:$0xff] %vm1125, %v1123
          %1129 = vst.msk [vmem:[#allocation3 + $0x18] sm:$0xff] %vm1125, %v1124
          %1130 = vst.msk [vmem:[#allocation3 + $0x20] sm:$0xff] %vm1125, %v1123
          %1131 = vst.msk [vmem:[#allocation3 + $0x28] sm:$0xff] %vm1125, %v1124
          %1132 = vst.msk [vmem:[#allocation3 + $0x30] sm:$0xff] %vm1125, %v1123
          %1133 = vst.msk [vmem:[#allocation3 + $0x38] sm:$0xff] %vm1125, %v1124
          %vm1134 = vcmp.gt.f32.partialorder %v1123, 0.0
          %vm1135 = vcmp.gt.f32.partialorder %v1124, 0.0
          %v1136 = vsel %vm1134, 0.0, -1e+20
          %v1137 = vsel %vm1135, 0.0, -1e+20
          %1138 = vst.msk [vmem:[#allocation4] sm:$0xff] %vm1125, %v1136
          %1139 = vst.msk [vmem:[#allocation4 + $0x8] sm:$0xff] %vm1125, %v1137
          %1140 = vst.msk [vmem:[#allocation4 + $0x10] sm:$0xff] %vm1125, %v1136
          %1141 = vst.msk [vmem:[#allocation4 + $0x18] sm:$0xff] %vm1125, %v1137
          %1142 = vst.msk [vmem:[#allocation4 + $0x20] sm:$0xff] %vm1125, %v1136
          %1143 = vst.msk [vmem:[#allocation4 + $0x28] sm:$0xff] %vm1125, %v1137
          %1144 = vst.msk [vmem:[#allocation4 + $0x30] sm:$0xff] %vm1125, %v1136
          %1145 = vst.msk [vmem:[#allocation4 + $0x38] sm:$0xff] %vm1125, %v1137
        $region196: #{tpu_custom_call.1} parent=131 // pred_fallthru
          _
        %v1146 = vld [vmem:[#allocation2] sm:$0xff]
        %v1147 = vld [vmem:[#allocation2 + $0x8] sm:$0xff]
        %s1148 = scalar_lea.vmem [#allocation11], %s55
        %v1149 = vld [vmem:[%s1148] sm:$0x1]
        %s1150 = scalar_lea.vmem [#allocation12], %s55
        %v1151 = vld [vmem:[%s1150] sm:$0x1]
        %vm1152 = vcmask 261120
        %v1153 = vsel %vm1152, %v1146, 0.0
        %1154 = vadd.xlane.f32.xlu0 %v1153
        %v1155 = vpop.xlane.xlu0 %1154
        %v1156 = vsel %vm1152, %v1147, 0.0
        %1157 = vadd.xlane.f32.xlu0 %v1156
        %v1158 = vpop.xlane.xlu0 %1157
        %v1159 = vrcp.pop 32.0
        %v1160 = vmul.f32 %v1155, %v1159
        %v1161 = vmul.f32 %v1158, %v1159
        %v1162 = vsub.f32 %v1146, %v1160
        %v1163 = vsub.f32 %v1147, %v1161
        %v1164 = vmul.f32 %v1162, %v1162
        %v1165 = vmul.f32 %v1163, %v1163
        %v1166 = vsel %vm1152, %v1164, 0.0
        %1167 = vadd.xlane.f32.xlu0 %v1166
        %v1168 = vpop.xlane.xlu0 %1167
        %v1169 = vsel %vm1152, %v1165, 0.0
        %1170 = vadd.xlane.f32.xlu0 %v1169
        %v1171 = vpop.xlane.xlu0 %1170
        %v1172 = vmul.f32 %v1168, %v1159
        %v1173 = vmul.f32 %v1171, %v1159
        %v1174 = vadd.f32 %v1172, 1e-05
        %v1175 = vadd.f32 %v1173, 1e-05
        %v1176 = vrsqrt.pop %v1174
        %v1177 = vrsqrt.pop %v1175
        %v1178 = vmul.f32 %v1162, %v1176
        %v1179 = vmul.f32 %v1163, %v1177
        %v1181 = vlaneseq
        %v1182 = vshrl.u32 %v1181, 7
        %v1183 = vsub.s32 0, %v1182
        %v1184 = vrot.slane %v1149, %v1183
        %v1186 = vmul.f32 %v1178, %v1184
        %v1187 = vmul.f32 %v1179, %v1184
        %v1189 = vlaneseq
        %v1190 = vshrl.u32 %v1189, 7
        %v1191 = vsub.s32 0, %v1190
        %v1192 = vrot.slane %v1151, %v1191
        %v1194 = vadd.f32 %v1186, %v1192
        %v1195 = vadd.f32 %v1187, %v1192
        %v1196 = vpack.c.bf16 %v1195, %v1194
        %s1197 = smul.u32 %s55, 4
        %s1198 = smul.addr %s1197, 4
        %s1199 = scalar_lea.vmem %s5, %s1198
        %v1200 = vld [vmem:[%s1199] sm:$0xf]
        %v1201 = vld [vmem:[%s1199 + $0x4] sm:$0xf]
        %v1202 = vld [vmem:[%s1199 + $0x8] sm:$0xf]
        %v1203 = vld [vmem:[%s1199 + $0xc] sm:$0xf]
        %s1204 = scalar_lea.vmem [#allocation14], %s55
        %v1205 = vld [vmem:[%s1204] sm:$0x1]
        %v1207 = vlaneseq
        %v1208 = vshrl.u32 %v1207, 7
        %v1209 = vsub.s32 0, %v1208
        %v1210 = vrot.slane %v1205, %v1209
        %v1216 = vunpack.c.l.b16 %v1200
        %v1217 = vunpack.c.l.b16 %v1201
        %v1218 = vunpack.c.l.b16 %v1202
        %v1219 = vunpack.c.l.b16 %v1203
        %v1220 = vpack.c.b16 %v1217, %v1216
        %v1221 = vpack.c.b16 %v1219, %v1218
        %v1225 = vsel %vm1152, %v1196, 0
        %1227 = vmatprep.subr.bf16.mxu0 0
        %1228 = vmatpush1.bf16.msra.mxu0 %v1220
        %1229 = vmatprep.subr.bf16.mxu0 0
        %1230 = vmatpush1.bf16.msra.mxu0 %v1221
        %1231 = vmatprep.subr.bf16.mxu0 0
        %1232 = vmatpush1.bf16.msra.mxu0 0
        %1233 = vmatprep.subr.bf16.mxu0 0
        %1234 = vmatpush1.bf16.msra.mxu0 0
        %1235 = vmatprep.subr.bf16.mxu0 0
        %1236 = vmatpush1.bf16.msra.mxu0 0
        %1237 = vmatprep.subr.bf16.mxu0 0
        %1238 = vmatpush1.bf16.msra.mxu0 0
        %1239 = vmatprep.subr.bf16.mxu0 0
        %1240 = vmatpush1.bf16.msra.mxu0 0
        %1241 = vmatprep.subr.bf16.mxu0 0
        %1242 = vmatpush1.bf16.msra.mxu0 0
        %1243 = vmatprep.subr.bf16.mxu0 0
        %1244 = vmatpush1.bf16.msra.mxu0 0
        %1245 = vmatprep.subr.bf16.mxu0 0
        %1246 = vmatpush1.bf16.msra.mxu0 0
        %1247 = vmatprep.subr.bf16.mxu0 0
        %1248 = vmatpush1.bf16.msra.mxu0 0
        %1249 = vmatprep.subr.bf16.mxu0 0
        %1250 = vmatpush1.bf16.msra.mxu0 0
        %1251 = vmatprep.subr.bf16.mxu0 0
        %1252 = vmatpush1.bf16.msra.mxu0 0
        %1253 = vmatprep.subr.bf16.mxu0 0
        %1254 = vmatpush1.bf16.msra.mxu0 0
        %1255 = vmatprep.subr.bf16.mxu0 0
        %1256 = vmatpush1.bf16.msra.mxu0 0
        %1257 = vmatprep.subr.bf16.mxu0 0
        %1258 = vmatpush1.bf16.msra.mxu0 0
        %1259 = vmatprep.mubr.bf16.mxu0 0
        %1260 = vmatmul.mubr.bf16.gmra.mrb[0].mxu0 %v1225
        %v1261 = vpop.f32.mrb[0].mxu0
        %v1262 = vadd.f32 %v1210, %v1261
        %v1263 = vpop.f32.mrb[0].mxu0
        %v1264 = vpop.f32.mrb[0].mxu0
        %v1265 = vadd.f32 %v1210, %v1264
        %v1266 = vpop.f32.mrb[0].mxu0
        %1267 = vdwg.mxu0
        %s1268 = smul.addr %s1197, 4
        %s1269 = scalar_lea.vmem %s7, %s1268
        %v1270 = vld [vmem:[%s1269] sm:$0xf]
        %v1271 = vld [vmem:[%s1269 + $0x4] sm:$0xf]
        %v1272 = vld [vmem:[%s1269 + $0x8] sm:$0xf]
        %v1273 = vld [vmem:[%s1269 + $0xc] sm:$0xf]
        %s1274 = scalar_lea.vmem [#allocation15], %s55
        %v1275 = vld [vmem:[%s1274] sm:$0x1]
        %v1277 = vlaneseq
        %v1278 = vshrl.u32 %v1277, 7
        %v1279 = vsub.s32 0, %v1278
        %v1280 = vrot.slane %v1275, %v1279
        %v1286 = vunpack.c.l.b16 %v1270
        %v1287 = vunpack.c.l.b16 %v1271
        %v1288 = vunpack.c.l.b16 %v1272
        %v1289 = vunpack.c.l.b16 %v1273
        %v1290 = vpack.c.b16 %v1287, %v1286
        %v1291 = vpack.c.b16 %v1289, %v1288
        %1294 = vmatprep.subr.bf16.mxu0 0
        %1295 = vmatpush1.bf16.msra.mxu0 %v1290
        %1296 = vmatprep.subr.bf16.mxu0 0
        %1297 = vmatpush1.bf16.msra.mxu0 %v1291
        %1298 = vmatprep.subr.bf16.mxu0 0
        %1299 = vmatpush1.bf16.msra.mxu0 0
        %1300 = vmatprep.subr.bf16.mxu0 0
        %1301 = vmatpush1.bf16.msra.mxu0 0
        %1302 = vmatprep.subr.bf16.mxu0 0
        %1303 = vmatpush1.bf16.msra.mxu0 0
        %1304 = vmatprep.subr.bf16.mxu0 0
        %1305 = vmatpush1.bf16.msra.mxu0 0
        %1306 = vmatprep.subr.bf16.mxu0 0
        %1307 = vmatpush1.bf16.msra.mxu0 0
        %1308 = vmatprep.subr.bf16.mxu0 0
        %1309 = vmatpush1.bf16.msra.mxu0 0
        %1310 = vmatprep.subr.bf16.mxu0 0
        %1311 = vmatpush1.bf16.msra.mxu0 0
        %1312 = vmatprep.subr.bf16.mxu0 0
        %1313 = vmatpush1.bf16.msra.mxu0 0
        %1314 = vmatprep.subr.bf16.mxu0 0
        %1315 = vmatpush1.bf16.msra.mxu0 0
        %1316 = vmatprep.subr.bf16.mxu0 0
        %1317 = vmatpush1.bf16.msra.mxu0 0
        %1318 = vmatprep.subr.bf16.mxu0 0
        %1319 = vmatpush1.bf16.msra.mxu0 0
        %1320 = vmatprep.subr.bf16.mxu0 0
        %1321 = vmatpush1.bf16.msra.mxu0 0
        %1322 = vmatprep.subr.bf16.mxu0 0
        %1323 = vmatpush1.bf16.msra.mxu0 0
        %1324 = vmatprep.subr.bf16.mxu0 0
        %1325 = vmatpush1.bf16.msra.mxu0 0
        %1326 = vmatprep.mubr.bf16.mxu0 0
        %1327 = vmatmul.mubr.bf16.gmra.mrb[0].mxu0 %v1225
        %v1328 = vpop.f32.mrb[0].mxu0
        %v1329 = vadd.f32 %v1280, %v1328
        %v1330 = vpop.f32.mrb[0].mxu0
        %v1331 = vpop.f32.mrb[0].mxu0
        %v1332 = vadd.f32 %v1280, %v1331
        %v1333 = vpop.f32.mrb[0].mxu0
        %1334 = vdwg.mxu0
        %s1335 = smul.addr %s1197, 4
        %s1336 = scalar_lea.vmem %s9, %s1335
        %v1337 = vld [vmem:[%s1336] sm:$0xf]
        %v1338 = vld [vmem:[%s1336 + $0x4] sm:$0xf]
        %v1339 = vld [vmem:[%s1336 + $0x8] sm:$0xf]
        %v1340 = vld [vmem:[%s1336 + $0xc] sm:$0xf]
        %s1341 = scalar_lea.vmem [#allocation17], %s55
        %v1342 = vld [vmem:[%s1341] sm:$0x1]
        %v1344 = vlaneseq
        %v1345 = vshrl.u32 %v1344, 7
        %v1346 = vsub.s32 0, %v1345
        %v1347 = vrot.slane %v1342, %v1346
        %v1353 = vunpack.c.l.b16 %v1337
        %v1354 = vunpack.c.l.b16 %v1338
        %v1355 = vunpack.c.l.b16 %v1339
        %v1356 = vunpack.c.l.b16 %v1340
        %v1357 = vpack.c.b16 %v1354, %v1353
        %v1358 = vpack.c.b16 %v1356, %v1355
        %1361 = vmatprep.subr.bf16.mxu0 0
        %1362 = vmatpush1.bf16.msra.mxu0 %v1357
        %1363 = vmatprep.subr.bf16.mxu0 0
        %1364 = vmatpush1.bf16.msra.mxu0 %v1358
        %1365 = vmatprep.subr.bf16.mxu0 0
        %1366 = vmatpush1.bf16.msra.mxu0 0
        %1367 = vmatprep.subr.bf16.mxu0 0
        %1368 = vmatpush1.bf16.msra.mxu0 0
        %1369 = vmatprep.subr.bf16.mxu0 0
        %1370 = vmatpush1.bf16.msra.mxu0 0
        %1371 = vmatprep.subr.bf16.mxu0 0
        %1372 = vmatpush1.bf16.msra.mxu0 0
        %1373 = vmatprep.subr.bf16.mxu0 0
        %1374 = vmatpush1.bf16.msra.mxu0 0
        %1375 = vmatprep.subr.bf16.mxu0 0
        %1376 = vmatpush1.bf16.msra.mxu0 0
        %1377 = vmatprep.subr.bf16.mxu0 0
        %1378 = vmatpush1.bf16.msra.mxu0 0
        %1379 = vmatprep.subr.bf16.mxu0 0
        %1380 = vmatpush1.bf16.msra.mxu0 0
        %1381 = vmatprep.subr.bf16.mxu0 0
        %1382 = vmatpush1.bf16.msra.mxu0 0
        %1383 = vmatprep.subr.bf16.mxu0 0
        %1384 = vmatpush1.bf16.msra.mxu0 0
        %1385 = vmatprep.subr.bf16.mxu0 0
        %1386 = vmatpush1.bf16.msra.mxu0 0
        %1387 = vmatprep.subr.bf16.mxu0 0
        %1388 = vmatpush1.bf16.msra.mxu0 0
        %1389 = vmatprep.subr.bf16.mxu0 0
        %1390 = vmatpush1.bf16.msra.mxu0 0
        %1391 = vmatprep.subr.bf16.mxu0 0
        %1392 = vmatpush1.bf16.msra.mxu0 0
        %1393 = vmatprep.mubr.bf16.mxu0 0
        %1394 = vmatmul.mubr.bf16.gmra.mrb[0].mxu0 %v1225
        %v1395 = vpop.f32.mrb[0].mxu0
        %v1396 = vadd.f32 %v1347, %v1395
        %v1397 = vpop.f32.mrb[0].mxu0
        %v1398 = vpop.f32.mrb[0].mxu0
        %v1399 = vadd.f32 %v1347, %v1398
        %v1400 = vpop.f32.mrb[0].mxu0
        %1401 = vdwg.mxu0
        %1404 = vrot.lane.b32.xlu0 %v1262, 120
        %v1405 = vpop.permute.xlu0 %1404
        %1406 = vrot.lane.b32.xlu0 %v1265, 120
        %v1407 = vpop.permute.xlu0 %1406
        %1410 = vrot.lane.b32.xlu0 %v1262, 112
        %v1411 = vpop.permute.xlu0 %1410
        %1412 = vrot.lane.b32.xlu0 %v1265, 112
        %v1413 = vpop.permute.xlu0 %1412
        %1416 = vrot.lane.b32.xlu0 %v1262, 104
        %v1417 = vpop.permute.xlu0 %1416
        %1418 = vrot.lane.b32.xlu0 %v1265, 104
        %v1419 = vpop.permute.xlu0 %1418
        %v1422 = vpack.c.bf16 %v1262, %v1262
        %v1423 = vpack.c.bf16 %v1265, %v1265
        %v1424 = vpack.c.bf16 %v1405, %v1405
        %v1425 = vpack.c.bf16 %v1407, %v1407
        %v1426 = vpack.c.bf16 %v1411, %v1411
        %v1427 = vpack.c.bf16 %v1413, %v1413
        %v1428 = vpack.c.bf16 %v1417, %v1417
        %v1429 = vpack.c.bf16 %v1419, %v1419
        %1432 = vrot.lane.b32.xlu0 %v1329, 120
        %v1433 = vpop.permute.xlu0 %1432
        %1434 = vrot.lane.b32.xlu0 %v1332, 120
        %v1435 = vpop.permute.xlu0 %1434
        %1438 = vrot.lane.b32.xlu0 %v1329, 112
        %v1439 = vpop.permute.xlu0 %1438
        %1440 = vrot.lane.b32.xlu0 %v1332, 112
        %v1441 = vpop.permute.xlu0 %1440
        %1444 = vrot.lane.b32.xlu0 %v1329, 104
        %v1445 = vpop.permute.xlu0 %1444
        %1446 = vrot.lane.b32.xlu0 %v1332, 104
        %v1447 = vpop.permute.xlu0 %1446
        %v1450 = vpack.c.bf16 %v1329, %v1329
        %v1451 = vpack.c.bf16 %v1332, %v1332
        %v1452 = vpack.c.bf16 %v1433, %v1433
        %v1453 = vpack.c.bf16 %v1435, %v1435
        %v1454 = vpack.c.bf16 %v1439, %v1439
        %v1455 = vpack.c.bf16 %v1441, %v1441
        %v1456 = vpack.c.bf16 %v1445, %v1445
        %v1457 = vpack.c.bf16 %v1447, %v1447
        %1460 = vrot.lane.b32.xlu0 %v1396, 120
        %v1461 = vpop.permute.xlu0 %1460
        %1462 = vrot.lane.b32.xlu0 %v1399, 120
        %v1463 = vpop.permute.xlu0 %1462
        %1466 = vrot.lane.b32.xlu0 %v1396, 112
        %v1467 = vpop.permute.xlu0 %1466
        %1468 = vrot.lane.b32.xlu0 %v1399, 112
        %v1469 = vpop.permute.xlu0 %1468
        %1472 = vrot.lane.b32.xlu0 %v1396, 104
        %v1473 = vpop.permute.xlu0 %1472
        %1474 = vrot.lane.b32.xlu0 %v1399, 104
        %v1475 = vpop.permute.xlu0 %1474
        %v1478 = vpack.c.bf16 %v1396, %v1396
        %v1479 = vpack.c.bf16 %v1399, %v1399
        %v1480 = vpack.c.bf16 %v1461, %v1461
        %v1481 = vpack.c.bf16 %v1463, %v1463
        %v1482 = vpack.c.bf16 %v1467, %v1467
        %v1483 = vpack.c.bf16 %v1469, %v1469
        %v1484 = vpack.c.bf16 %v1473, %v1473
        %v1485 = vpack.c.bf16 %v1475, %v1475
        %v1486 = vld [vmem:[#allocation4] sm:$0xff]
        %v1487 = vld [vmem:[#allocation4 + $0x8] sm:$0xff]
        %v1488 = vld [vmem:[#allocation4 + $0x10] sm:$0xff]
        %v1489 = vld [vmem:[#allocation4 + $0x18] sm:$0xff]
        %v1490 = vld [vmem:[#allocation4 + $0x20] sm:$0xff]
        %v1491 = vld [vmem:[#allocation4 + $0x28] sm:$0xff]
        %v1492 = vld [vmem:[#allocation4 + $0x30] sm:$0xff]
        %v1493 = vld [vmem:[#allocation4 + $0x38] sm:$0xff]
        %vm1494 = vcmask 64512
        %v1496 = vsel %vm1494, %v1422, 0
        %v1499 = vsel %vm1494, %v1450, 0
        %1501 = vmatprep.subr.bf16.mxu0 0
        %1502 = vmatpush1.bf16.xpose.msra.mxu0 %v1499
        %1503 = vmatprep.subr.bf16.mxu0 0
        %1504 = vmatpush1.bf16.xpose.msra.mxu0 0
        %1505 = vmatprep.subr.bf16.mxu0 0
        %1506 = vmatpush1.bf16.xpose.msra.mxu0 0
        %1507 = vmatprep.subr.bf16.mxu0 0
        %1508 = vmatpush1.bf16.xpose.msra.mxu0 0
        %1509 = vmatprep.subr.bf16.mxu0 0
        %1510 = vmatpush1.bf16.xpose.msra.mxu0 0
        %1511 = vmatprep.subr.bf16.mxu0 0
        %1512 = vmatpush1.bf16.xpose.msra.mxu0 0
        %1513 = vmatprep.subr.bf16.mxu0 0
        %1514 = vmatpush1.bf16.xpose.msra.mxu0 0
        %1515 = vmatprep.subr.bf16.mxu0 0
        %1516 = vmatpush1.bf16.xpose.msra.mxu0 0
        %1517 = vmatprep.subr.bf16.mxu0 0
        %1518 = vmatpush1.bf16.xpose.msra.mxu0 0
        %1519 = vmatprep.subr.bf16.mxu0 0
        %1520 = vmatpush1.bf16.xpose.msra.mxu0 0
        %1521 = vmatprep.subr.bf16.mxu0 0
        %1522 = vmatpush1.bf16.xpose.msra.mxu0 0
        %1523 = vmatprep.subr.bf16.mxu0 0
        %1524 = vmatpush1.bf16.xpose.msra.mxu0 0
        %1525 = vmatprep.subr.bf16.mxu0 0
        %1526 = vmatpush1.bf16.xpose.msra.mxu0 0
        %1527 = vmatprep.subr.bf16.mxu0 0
        %1528 = vmatpush1.bf16.xpose.msra.mxu0 0
        %1529 = vmatprep.subr.bf16.mxu0 0
        %1530 = vmatpush1.bf16.xpose.msra.mxu0 0
        %1531 = vmatprep.subr.bf16.mxu0 0
        %1532 = vmatpush1.bf16.xpose.msra.mxu0 0
        %1533 = vmatprep.mubr.bf16.mxu0 0
        %1534 = vmatmul.mubr.bf16.gmra.mrb[0].mxu0 %v1496
        %v1535 = vpop.f32.mrb[0].mxu0
        %v1536 = vadd.f32 %v1486, %v1535
        %v1537 = vpop.f32.mrb[0].mxu0
        %v1538 = vpop.f32.mrb[0].mxu0
        %v1539 = vpop.f32.mrb[0].mxu0
        %1540 = vdwg.mxu0
        %v1542 = vsel %vm1494, %v1423, 0
        %v1545 = vsel %vm1494, %v1451, 0
        %1547 = vmatprep.subr.bf16.mxu0 0
        %1548 = vmatpush1.bf16.xpose.msra.mxu0 %v1545
        %1549 = vmatprep.subr.bf16.mxu0 0
        %1550 = vmatpush1.bf16.xpose.msra.mxu0 0
        %1551 = vmatprep.subr.bf16.mxu0 0
        %1552 = vmatpush1.bf16.xpose.msra.mxu0 0
        %1553 = vmatprep.subr.bf16.mxu0 0
        %1554 = vmatpush1.bf16.xpose.msra.mxu0 0
        %1555 = vmatprep.subr.bf16.mxu0 0
        %1556 = vmatpush1.bf16.xpose.msra.mxu0 0
        %1557 = vmatprep.subr.bf16.mxu0 0
        %1558 = vmatpush1.bf16.xpose.msra.mxu0 0
        %1559 = vmatprep.subr.bf16.mxu0 0
        %1560 = vmatpush1.bf16.xpose.msra.mxu0 0
        %1561 = vmatprep.subr.bf16.mxu0 0
        %1562 = vmatpush1.bf16.xpose.msra.mxu0 0
        %1563 = vmatprep.subr.bf16.mxu0 0
        %1564 = vmatpush1.bf16.xpose.msra.mxu0 0
        %1565 = vmatprep.subr.bf16.mxu0 0
        %1566 = vmatpush1.bf16.xpose.msra.mxu0 0
        %1567 = vmatprep.subr.bf16.mxu0 0
        %1568 = vmatpush1.bf16.xpose.msra.mxu0 0
        %1569 = vmatprep.subr.bf16.mxu0 0
        %1570 = vmatpush1.bf16.xpose.msra.mxu0 0
        %1571 = vmatprep.subr.bf16.mxu0 0
        %1572 = vmatpush1.bf16.xpose.msra.mxu0 0
        %1573 = vmatprep.subr.bf16.mxu0 0
        %1574 = vmatpush1.bf16.xpose.msra.mxu0 0
        %1575 = vmatprep.subr.bf16.mxu0 0
        %1576 = vmatpush1.bf16.xpose.msra.mxu0 0
        %1577 = vmatprep.subr.bf16.mxu0 0
        %1578 = vmatpush1.bf16.xpose.msra.mxu0 0
        %1579 = vmatprep.mubr.bf16.mxu0 0
        %1580 = vmatmul.mubr.bf16.gmra.mrb[0].mxu0 %v1542
        %v1581 = vpop.f32.mrb[0].mxu0
        %v1582 = vadd.f32 %v1487, %v1581
        %v1583 = vpop.f32.mrb[0].mxu0
        %v1584 = vpop.f32.mrb[0].mxu0
        %v1585 = vpop.f32.mrb[0].mxu0
        %1586 = vdwg.mxu0
        %v1588 = vsel %vm1494, %v1424, 0
        %v1591 = vsel %vm1494, %v1452, 0
        %1593 = vmatprep.subr.bf16.mxu0 0
        %1594 = vmatpush1.bf16.xpose.msra.mxu0 %v1591
        %1595 = vmatprep.subr.bf16.mxu0 0
        %1596 = vmatpush1.bf16.xpose.msra.mxu0 0
        %1597 = vmatprep.subr.bf16.mxu0 0
        %1598 = vmatpush1.bf16.xpose.msra.mxu0 0
        %1599 = vmatprep.subr.bf16.mxu0 0
        %1600 = vmatpush1.bf16.xpose.msra.mxu0 0
        %1601 = vmatprep.subr.bf16.mxu0 0
        %1602 = vmatpush1.bf16.xpose.msra.mxu0 0
        %1603 = vmatprep.subr.bf16.mxu0 0
        %1604 = vmatpush1.bf16.xpose.msra.mxu0 0
        %1605 = vmatprep.subr.bf16.mxu0 0
        %1606 = vmatpush1.bf16.xpose.msra.mxu0 0
        %1607 = vmatprep.subr.bf16.mxu0 0
        %1608 = vmatpush1.bf16.xpose.msra.mxu0 0
        %1609 = vmatprep.subr.bf16.mxu0 0
        %1610 = vmatpush1.bf16.xpose.msra.mxu0 0
        %1611 = vmatprep.subr.bf16.mxu0 0
        %1612 = vmatpush1.bf16.xpose.msra.mxu0 0
        %1613 = vmatprep.subr.bf16.mxu0 0
        %1614 = vmatpush1.bf16.xpose.msra.mxu0 0
        %1615 = vmatprep.subr.bf16.mxu0 0
        %1616 = vmatpush1.bf16.xpose.msra.mxu0 0
        %1617 = vmatprep.subr.bf16.mxu0 0
        %1618 = vmatpush1.bf16.xpose.msra.mxu0 0
        %1619 = vmatprep.subr.bf16.mxu0 0
        %1620 = vmatpush1.bf16.xpose.msra.mxu0 0
        %1621 = vmatprep.subr.bf16.mxu0 0
        %1622 = vmatpush1.bf16.xpose.msra.mxu0 0
        %1623 = vmatprep.subr.bf16.mxu0 0
        %1624 = vmatpush1.bf16.xpose.msra.mxu0 0
        %1625 = vmatprep.mubr.bf16.mxu0 0
        %1626 = vmatmul.mubr.bf16.gmra.mrb[0].mxu0 %v1588
        %v1627 = vpop.f32.mrb[0].mxu0
        %v1628 = vadd.f32 %v1488, %v1627
        %v1629 = vpop.f32.mrb[0].mxu0
        %v1630 = vpop.f32.mrb[0].mxu0
        %v1631 = vpop.f32.mrb[0].mxu0
        %1632 = vdwg.mxu0
        %v1634 = vsel %vm1494, %v1425, 0
        %v1637 = vsel %vm1494, %v1453, 0
        %1639 = vmatprep.subr.bf16.mxu0 0
        %1640 = vmatpush1.bf16.xpose.msra.mxu0 %v1637
        %1641 = vmatprep.subr.bf16.mxu0 0
        %1642 = vmatpush1.bf16.xpose.msra.mxu0 0
        %1643 = vmatprep.subr.bf16.mxu0 0
        %1644 = vmatpush1.bf16.xpose.msra.mxu0 0
        %1645 = vmatprep.subr.bf16.mxu0 0
        %1646 = vmatpush1.bf16.xpose.msra.mxu0 0
        %1647 = vmatprep.subr.bf16.mxu0 0
        %1648 = vmatpush1.bf16.xpose.msra.mxu0 0
        %1649 = vmatprep.subr.bf16.mxu0 0
        %1650 = vmatpush1.bf16.xpose.msra.mxu0 0
        %1651 = vmatprep.subr.bf16.mxu0 0
        %1652 = vmatpush1.bf16.xpose.msra.mxu0 0
        %1653 = vmatprep.subr.bf16.mxu0 0
        %1654 = vmatpush1.bf16.xpose.msra.mxu0 0
        %1655 = vmatprep.subr.bf16.mxu0 0
        %1656 = vmatpush1.bf16.xpose.msra.mxu0 0
        %1657 = vmatprep.subr.bf16.mxu0 0
        %1658 = vmatpush1.bf16.xpose.msra.mxu0 0
        %1659 = vmatprep.subr.bf16.mxu0 0
        %1660 = vmatpush1.bf16.xpose.msra.mxu0 0
        %1661 = vmatprep.subr.bf16.mxu0 0
        %1662 = vmatpush1.bf16.xpose.msra.mxu0 0
        %1663 = vmatprep.subr.bf16.mxu0 0
        %1664 = vmatpush1.bf16.xpose.msra.mxu0 0
        %1665 = vmatprep.subr.bf16.mxu0 0
        %1666 = vmatpush1.bf16.xpose.msra.mxu0 0
        %1667 = vmatprep.subr.bf16.mxu0 0
        %1668 = vmatpush1.bf16.xpose.msra.mxu0 0
        %1669 = vmatprep.subr.bf16.mxu0 0
        %1670 = vmatpush1.bf16.xpose.msra.mxu0 0
        %1671 = vmatprep.mubr.bf16.mxu0 0
        %1672 = vmatmul.mubr.bf16.gmra.mrb[0].mxu0 %v1634
        %v1673 = vpop.f32.mrb[0].mxu0
        %v1674 = vadd.f32 %v1489, %v1673
        %v1675 = vpop.f32.mrb[0].mxu0
        %v1676 = vpop.f32.mrb[0].mxu0
        %v1677 = vpop.f32.mrb[0].mxu0
        %1678 = vdwg.mxu0
        %v1680 = vsel %vm1494, %v1426, 0
        %v1683 = vsel %vm1494, %v1454, 0
        %1685 = vmatprep.subr.bf16.mxu0 0
        %1686 = vmatpush1.bf16.xpose.msra.mxu0 %v1683
        %1687 = vmatprep.subr.bf16.mxu0 0
        %1688 = vmatpush1.bf16.xpose.msra.mxu0 0
        %1689 = vmatprep.subr.bf16.mxu0 0
        %1690 = vmatpush1.bf16.xpose.msra.mxu0 0
        %1691 = vmatprep.subr.bf16.mxu0 0
        %1692 = vmatpush1.bf16.xpose.msra.mxu0 0
        %1693 = vmatprep.subr.bf16.mxu0 0
        %1694 = vmatpush1.bf16.xpose.msra.mxu0 0
        %1695 = vmatprep.subr.bf16.mxu0 0
        %1696 = vmatpush1.bf16.xpose.msra.mxu0 0
        %1697 = vmatprep.subr.bf16.mxu0 0
        %1698 = vmatpush1.bf16.xpose.msra.mxu0 0
        %1699 = vmatprep.subr.bf16.mxu0 0
        %1700 = vmatpush1.bf16.xpose.msra.mxu0 0
        %1701 = vmatprep.subr.bf16.mxu0 0
        %1702 = vmatpush1.bf16.xpose.msra.mxu0 0
        %1703 = vmatprep.subr.bf16.mxu0 0
        %1704 = vmatpush1.bf16.xpose.msra.mxu0 0
        %1705 = vmatprep.subr.bf16.mxu0 0
        %1706 = vmatpush1.bf16.xpose.msra.mxu0 0
        %1707 = vmatprep.subr.bf16.mxu0 0
        %1708 = vmatpush1.bf16.xpose.msra.mxu0 0
        %1709 = vmatprep.subr.bf16.mxu0 0
        %1710 = vmatpush1.bf16.xpose.msra.mxu0 0
        %1711 = vmatprep.subr.bf16.mxu0 0
        %1712 = vmatpush1.bf16.xpose.msra.mxu0 0
        %1713 = vmatprep.subr.bf16.mxu0 0
        %1714 = vmatpush1.bf16.xpose.msra.mxu0 0
        %1715 = vmatprep.subr.bf16.mxu0 0
        %1716 = vmatpush1.bf16.xpose.msra.mxu0 0
        %1717 = vmatprep.mubr.bf16.mxu0 0
        %1718 = vmatmul.mubr.bf16.gmra.mrb[0].mxu0 %v1680
        %v1719 = vpop.f32.mrb[0].mxu0
        %v1720 = vadd.f32 %v1490, %v1719
        %v1721 = vpop.f32.mrb[0].mxu0
        %v1722 = vpop.f32.mrb[0].mxu0
        %v1723 = vpop.f32.mrb[0].mxu0
        %1724 = vdwg.mxu0
        %v1726 = vsel %vm1494, %v1427, 0
        %v1729 = vsel %vm1494, %v1455, 0
        %1731 = vmatprep.subr.bf16.mxu0 0
        %1732 = vmatpush1.bf16.xpose.msra.mxu0 %v1729
        %1733 = vmatprep.subr.bf16.mxu0 0
        %1734 = vmatpush1.bf16.xpose.msra.mxu0 0
        %1735 = vmatprep.subr.bf16.mxu0 0
        %1736 = vmatpush1.bf16.xpose.msra.mxu0 0
        %1737 = vmatprep.subr.bf16.mxu0 0
        %1738 = vmatpush1.bf16.xpose.msra.mxu0 0
        %1739 = vmatprep.subr.bf16.mxu0 0
        %1740 = vmatpush1.bf16.xpose.msra.mxu0 0
        %1741 = vmatprep.subr.bf16.mxu0 0
        %1742 = vmatpush1.bf16.xpose.msra.mxu0 0
        %1743 = vmatprep.subr.bf16.mxu0 0
        %1744 = vmatpush1.bf16.xpose.msra.mxu0 0
        %1745 = vmatprep.subr.bf16.mxu0 0
        %1746 = vmatpush1.bf16.xpose.msra.mxu0 0
        %1747 = vmatprep.subr.bf16.mxu0 0
        %1748 = vmatpush1.bf16.xpose.msra.mxu0 0
        %1749 = vmatprep.subr.bf16.mxu0 0
        %1750 = vmatpush1.bf16.xpose.msra.mxu0 0
        %1751 = vmatprep.subr.bf16.mxu0 0
        %1752 = vmatpush1.bf16.xpose.msra.mxu0 0
        %1753 = vmatprep.subr.bf16.mxu0 0
        %1754 = vmatpush1.bf16.xpose.msra.mxu0 0
        %1755 = vmatprep.subr.bf16.mxu0 0
        %1756 = vmatpush1.bf16.xpose.msra.mxu0 0
        %1757 = vmatprep.subr.bf16.mxu0 0
        %1758 = vmatpush1.bf16.xpose.msra.mxu0 0
        %1759 = vmatprep.subr.bf16.mxu0 0
        %1760 = vmatpush1.bf16.xpose.msra.mxu0 0
        %1761 = vmatprep.subr.bf16.mxu0 0
        %1762 = vmatpush1.bf16.xpose.msra.mxu0 0
        %1763 = vmatprep.mubr.bf16.mxu0 0
        %1764 = vmatmul.mubr.bf16.gmra.mrb[0].mxu0 %v1726
        %v1765 = vpop.f32.mrb[0].mxu0
        %v1766 = vadd.f32 %v1491, %v1765
        %v1767 = vpop.f32.mrb[0].mxu0
        %v1768 = vpop.f32.mrb[0].mxu0
        %v1769 = vpop.f32.mrb[0].mxu0
        %1770 = vdwg.mxu0
        %v1772 = vsel %vm1494, %v1428, 0
        %v1775 = vsel %vm1494, %v1456, 0
        %1777 = vmatprep.subr.bf16.mxu0 0
        %1778 = vmatpush1.bf16.xpose.msra.mxu0 %v1775
        %1779 = vmatprep.subr.bf16.mxu0 0
        %1780 = vmatpush1.bf16.xpose.msra.mxu0 0
        %1781 = vmatprep.subr.bf16.mxu0 0
        %1782 = vmatpush1.bf16.xpose.msra.mxu0 0
        %1783 = vmatprep.subr.bf16.mxu0 0
        %1784 = vmatpush1.bf16.xpose.msra.mxu0 0
        %1785 = vmatprep.subr.bf16.mxu0 0
        %1786 = vmatpush1.bf16.xpose.msra.mxu0 0
        %1787 = vmatprep.subr.bf16.mxu0 0
        %1788 = vmatpush1.bf16.xpose.msra.mxu0 0
        %1789 = vmatprep.subr.bf16.mxu0 0
        %1790 = vmatpush1.bf16.xpose.msra.mxu0 0
        %1791 = vmatprep.subr.bf16.mxu0 0
        %1792 = vmatpush1.bf16.xpose.msra.mxu0 0
        %1793 = vmatprep.subr.bf16.mxu0 0
        %1794 = vmatpush1.bf16.xpose.msra.mxu0 0
        %1795 = vmatprep.subr.bf16.mxu0 0
        %1796 = vmatpush1.bf16.xpose.msra.mxu0 0
        %1797 = vmatprep.subr.bf16.mxu0 0
        %1798 = vmatpush1.bf16.xpose.msra.mxu0 0
        %1799 = vmatprep.subr.bf16.mxu0 0
        %1800 = vmatpush1.bf16.xpose.msra.mxu0 0
        %1801 = vmatprep.subr.bf16.mxu0 0
        %1802 = vmatpush1.bf16.xpose.msra.mxu0 0
        %1803 = vmatprep.subr.bf16.mxu0 0
        %1804 = vmatpush1.bf16.xpose.msra.mxu0 0
        %1805 = vmatprep.subr.bf16.mxu0 0
        %1806 = vmatpush1.bf16.xpose.msra.mxu0 0
        %1807 = vmatprep.subr.bf16.mxu0 0
        %1808 = vmatpush1.bf16.xpose.msra.mxu0 0
        %1809 = vmatprep.mubr.bf16.mxu0 0
        %1810 = vmatmul.mubr.bf16.gmra.mrb[0].mxu0 %v1772
        %v1811 = vpop.f32.mrb[0].mxu0
        %v1812 = vadd.f32 %v1492, %v1811
        %v1813 = vpop.f32.mrb[0].mxu0
        %v1814 = vpop.f32.mrb[0].mxu0
        %v1815 = vpop.f32.mrb[0].mxu0
        %1816 = vdwg.mxu0
        %v1818 = vsel %vm1494, %v1429, 0
        %v1821 = vsel %vm1494, %v1457, 0
        %1823 = vmatprep.subr.bf16.mxu0 0
        %1824 = vmatpush1.bf16.xpose.msra.mxu0 %v1821
        %1825 = vmatprep.subr.bf16.mxu0 0
        %1826 = vmatpush1.bf16.xpose.msra.mxu0 0
        %1827 = vmatprep.subr.bf16.mxu0 0
        %1828 = vmatpush1.bf16.xpose.msra.mxu0 0
        %1829 = vmatprep.subr.bf16.mxu0 0
        %1830 = vmatpush1.bf16.xpose.msra.mxu0 0
        %1831 = vmatprep.subr.bf16.mxu0 0
        %1832 = vmatpush1.bf16.xpose.msra.mxu0 0
        %1833 = vmatprep.subr.bf16.mxu0 0
        %1834 = vmatpush1.bf16.xpose.msra.mxu0 0
        %1835 = vmatprep.subr.bf16.mxu0 0
        %1836 = vmatpush1.bf16.xpose.msra.mxu0 0
        %1837 = vmatprep.subr.bf16.mxu0 0
        %1838 = vmatpush1.bf16.xpose.msra.mxu0 0
        %1839 = vmatprep.subr.bf16.mxu0 0
        %1840 = vmatpush1.bf16.xpose.msra.mxu0 0
        %1841 = vmatprep.subr.bf16.mxu0 0
        %1842 = vmatpush1.bf16.xpose.msra.mxu0 0
        %1843 = vmatprep.subr.bf16.mxu0 0
        %1844 = vmatpush1.bf16.xpose.msra.mxu0 0
        %1845 = vmatprep.subr.bf16.mxu0 0
        %1846 = vmatpush1.bf16.xpose.msra.mxu0 0
        %1847 = vmatprep.subr.bf16.mxu0 0
        %1848 = vmatpush1.bf16.xpose.msra.mxu0 0
        %1849 = vmatprep.subr.bf16.mxu0 0
        %1850 = vmatpush1.bf16.xpose.msra.mxu0 0
        %1851 = vmatprep.subr.bf16.mxu0 0
        %1852 = vmatpush1.bf16.xpose.msra.mxu0 0
        %1853 = vmatprep.subr.bf16.mxu0 0
        %1854 = vmatpush1.bf16.xpose.msra.mxu0 0
        %1855 = vmatprep.mubr.bf16.mxu0 0
        %1856 = vmatmul.mubr.bf16.gmra.mrb[0].mxu0 %v1818
        %v1857 = vpop.f32.mrb[0].mxu0
        %v1858 = vadd.f32 %v1493, %v1857
        %v1859 = vpop.f32.mrb[0].mxu0
        %v1860 = vpop.f32.mrb[0].mxu0
        %v1861 = vpop.f32.mrb[0].mxu0
        %1862 = vdwg.mxu0
        %v1863 = vsel %vm1494, %v1536, -inf
        %1864 = vmax.xlane.f32.xlu0 %v1863
        %v1865 = vpop.xlane.xlu0 %1864
        %v1866 = vsel %vm1494, %v1582, -inf
        %1867 = vmax.xlane.f32.xlu0 %v1866
        %v1868 = vpop.xlane.xlu0 %1867
        %v1869 = vsel %vm1494, %v1628, -inf
        %1870 = vmax.xlane.f32.xlu0 %v1869
        %v1871 = vpop.xlane.xlu0 %1870
        %v1872 = vsel %vm1494, %v1674, -inf
        %1873 = vmax.xlane.f32.xlu0 %v1872
        %v1874 = vpop.xlane.xlu0 %1873
        %v1875 = vsel %vm1494, %v1720, -inf
        %1876 = vmax.xlane.f32.xlu0 %v1875
        %v1877 = vpop.xlane.xlu0 %1876
        %v1878 = vsel %vm1494, %v1766, -inf
        %1879 = vmax.xlane.f32.xlu0 %v1878
        %v1880 = vpop.xlane.xlu0 %1879
        %v1881 = vsel %vm1494, %v1812, -inf
        %1882 = vmax.xlane.f32.xlu0 %v1881
        %v1883 = vpop.xlane.xlu0 %1882
        %v1884 = vsel %vm1494, %v1858, -inf
        %1885 = vmax.xlane.f32.xlu0 %v1884
        %v1886 = vpop.xlane.xlu0 %1885
        %v1887 = vsub.f32 %v1536, %v1865
        %v1888 = vsub.f32 %v1582, %v1868
        %v1889 = vsub.f32 %v1628, %v1871
        %v1890 = vsub.f32 %v1674, %v1874
        %v1891 = vsub.f32 %v1720, %v1877
        %v1892 = vsub.f32 %v1766, %v1880
        %v1893 = vsub.f32 %v1812, %v1883
        %v1894 = vsub.f32 %v1858, %v1886
        %v1895 = vmul.f32 %v1887, 1.442695
        %v1896 = vpow.pop %v1895
        %v1897 = vmul.f32 %v1888, 1.442695
        %v1898 = vpow.pop %v1897
        %v1899 = vmul.f32 %v1889, 1.442695
        %v1900 = vpow.pop %v1899
        %v1901 = vmul.f32 %v1890, 1.442695
        %v1902 = vpow.pop %v1901
        %v1903 = vmul.f32 %v1891, 1.442695
        %v1904 = vpow.pop %v1903
        %v1905 = vmul.f32 %v1892, 1.442695
        %v1906 = vpow.pop %v1905
        %v1907 = vmul.f32 %v1893, 1.442695
        %v1908 = vpow.pop %v1907
        %v1909 = vmul.f32 %v1894, 1.442695
        %v1910 = vpow.pop %v1909
        %v1911 = vsel %vm1494, %v1896, 0.0
        %1912 = vadd.xlane.f32.xlu0 %v1911
        %v1913 = vpop.xlane.xlu0 %1912
        %v1914 = vsel %vm1494, %v1898, 0.0
        %1915 = vadd.xlane.f32.xlu0 %v1914
        %v1916 = vpop.xlane.xlu0 %1915
        %v1917 = vsel %vm1494, %v1900, 0.0
        %1918 = vadd.xlane.f32.xlu0 %v1917
        %v1919 = vpop.xlane.xlu0 %1918
        %v1920 = vsel %vm1494, %v1902, 0.0
        %1921 = vadd.xlane.f32.xlu0 %v1920
        %v1922 = vpop.xlane.xlu0 %1921
        %v1923 = vsel %vm1494, %v1904, 0.0
        %1924 = vadd.xlane.f32.xlu0 %v1923
        %v1925 = vpop.xlane.xlu0 %1924
        %v1926 = vsel %vm1494, %v1906, 0.0
        %1927 = vadd.xlane.f32.xlu0 %v1926
        %v1928 = vpop.xlane.xlu0 %1927
        %v1929 = vsel %vm1494, %v1908, 0.0
        %1930 = vadd.xlane.f32.xlu0 %v1929
        %v1931 = vpop.xlane.xlu0 %1930
        %v1932 = vsel %vm1494, %v1910, 0.0
        %1933 = vadd.xlane.f32.xlu0 %v1932
        %v1934 = vpop.xlane.xlu0 %1933
        %v1935 = vrcp.pop %v1913
        %v1936 = vrcp.pop %v1916
        %v1937 = vrcp.pop %v1919
        %v1938 = vrcp.pop %v1922
        %v1939 = vrcp.pop %v1925
        %v1940 = vrcp.pop %v1928
        %v1941 = vrcp.pop %v1931
        %v1942 = vrcp.pop %v1934
        %v1943 = vmul.f32 %v1896, %v1935
        %v1944 = vmul.f32 %v1898, %v1936
        %v1945 = vmul.f32 %v1900, %v1937
        %v1946 = vmul.f32 %v1902, %v1938
        %v1947 = vmul.f32 %v1904, %v1939
        %v1948 = vmul.f32 %v1906, %v1940
        %v1949 = vmul.f32 %v1908, %v1941
        %v1950 = vmul.f32 %v1910, %v1942
        %v1951 = vld [vmem:[#allocation3] sm:$0xff]
        %v1952 = vld [vmem:[#allocation3 + $0x8] sm:$0xff]
        %v1953 = vld [vmem:[#allocation3 + $0x10] sm:$0xff]
        %v1954 = vld [vmem:[#allocation3 + $0x18] sm:$0xff]
        %v1955 = vld [vmem:[#allocation3 + $0x20] sm:$0xff]
        %v1956 = vld [vmem:[#allocation3 + $0x28] sm:$0xff]
        %v1957 = vld [vmem:[#allocation3 + $0x30] sm:$0xff]
        %v1958 = vld [vmem:[#allocation3 + $0x38] sm:$0xff]
        %v1959 = vmul.f32 %v1943, %v1951
        %v1960 = vmul.f32 %v1944, %v1952
        %v1961 = vmul.f32 %v1945, %v1953
        %v1962 = vmul.f32 %v1946, %v1954
        %v1963 = vmul.f32 %v1947, %v1955
        %v1964 = vmul.f32 %v1948, %v1956
        %v1965 = vmul.f32 %v1949, %v1957
        %v1966 = vmul.f32 %v1950, %v1958
        %v1967 = vpack.c.bf16 %v1959, %v1959
        %v1968 = vpack.c.bf16 %v1960, %v1960
        %v1969 = vpack.c.bf16 %v1961, %v1961
        %v1970 = vpack.c.bf16 %v1962, %v1962
        %v1971 = vpack.c.bf16 %v1963, %v1963
        %v1972 = vpack.c.bf16 %v1964, %v1964
        %v1973 = vpack.c.bf16 %v1965, %v1965
        %v1974 = vpack.c.bf16 %v1966, %v1966
        %v1976 = vsel %vm1494, %v1967, 0
        %vm1978 = vcmask 1043456
        %v1980 = vsel %vm1978, %v1478, 0
        %1982 = vmatprep.subr.bf16.mxu0 0
        %1983 = vmatpush1.bf16.msra.mxu0 %v1980
        %1984 = vmatprep.subr.bf16.mxu0 0
        %1985 = vmatpush1.bf16.msra.mxu0 0
        %1986 = vmatprep.subr.bf16.mxu0 0
        %1987 = vmatpush1.bf16.msra.mxu0 0
        %1988 = vmatprep.subr.bf16.mxu0 0
        %1989 = vmatpush1.bf16.msra.mxu0 0
        %1990 = vmatprep.subr.bf16.mxu0 0
        %1991 = vmatpush1.bf16.msra.mxu0 0
        %1992 = vmatprep.subr.bf16.mxu0 0
        %1993 = vmatpush1.bf16.msra.mxu0 0
        %1994 = vmatprep.subr.bf16.mxu0 0
        %1995 = vmatpush1.bf16.msra.mxu0 0
        %1996 = vmatprep.subr.bf16.mxu0 0
        %1997 = vmatpush1.bf16.msra.mxu0 0
        %1998 = vmatprep.subr.bf16.mxu0 0
        %1999 = vmatpush1.bf16.msra.mxu0 0
        %2000 = vmatprep.subr.bf16.mxu0 0
        %2001 = vmatpush1.bf16.msra.mxu0 0
        %2002 = vmatprep.subr.bf16.mxu0 0
        %2003 = vmatpush1.bf16.msra.mxu0 0
        %2004 = vmatprep.subr.bf16.mxu0 0
        %2005 = vmatpush1.bf16.msra.mxu0 0
        %2006 = vmatprep.subr.bf16.mxu0 0
        %2007 = vmatpush1.bf16.msra.mxu0 0
        %2008 = vmatprep.subr.bf16.mxu0 0
        %2009 = vmatpush1.bf16.msra.mxu0 0
        %2010 = vmatprep.subr.bf16.mxu0 0
        %2011 = vmatpush1.bf16.msra.mxu0 0
        %2012 = vmatprep.subr.bf16.mxu0 0
        %2013 = vmatpush1.bf16.msra.mxu0 0
        %2014 = vmatprep.mubr.bf16.mxu0 0
        %2015 = vmatmul.mubr.bf16.gmra.mrb[0].mxu0 %v1976
        %v2016 = vpop.f32.mrb[0].mxu0
        %v2017 = vadd.f32 0.0, %v2016
        %v2018 = vpop.f32.mrb[0].mxu0
        %v2019 = vpop.f32.mrb[0].mxu0
        %v2020 = vpop.f32.mrb[0].mxu0
        %2021 = vdwg.mxu0
        %v2023 = vsel %vm1494, %v1968, 0
        %v2026 = vsel %vm1978, %v1479, 0
        %2028 = vmatprep.subr.bf16.mxu0 0
        %2029 = vmatpush1.bf16.msra.mxu0 %v2026
        %2030 = vmatprep.subr.bf16.mxu0 0
        %2031 = vmatpush1.bf16.msra.mxu0 0
        %2032 = vmatprep.subr.bf16.mxu0 0
        %2033 = vmatpush1.bf16.msra.mxu0 0
        %2034 = vmatprep.subr.bf16.mxu0 0
        %2035 = vmatpush1.bf16.msra.mxu0 0
        %2036 = vmatprep.subr.bf16.mxu0 0
        %2037 = vmatpush1.bf16.msra.mxu0 0
        %2038 = vmatprep.subr.bf16.mxu0 0
        %2039 = vmatpush1.bf16.msra.mxu0 0
        %2040 = vmatprep.subr.bf16.mxu0 0
        %2041 = vmatpush1.bf16.msra.mxu0 0
        %2042 = vmatprep.subr.bf16.mxu0 0
        %2043 = vmatpush1.bf16.msra.mxu0 0
        %2044 = vmatprep.subr.bf16.mxu0 0
        %2045 = vmatpush1.bf16.msra.mxu0 0
        %2046 = vmatprep.subr.bf16.mxu0 0
        %2047 = vmatpush1.bf16.msra.mxu0 0
        %2048 = vmatprep.subr.bf16.mxu0 0
        %2049 = vmatpush1.bf16.msra.mxu0 0
        %2050 = vmatprep.subr.bf16.mxu0 0
        %2051 = vmatpush1.bf16.msra.mxu0 0
        %2052 = vmatprep.subr.bf16.mxu0 0
        %2053 = vmatpush1.bf16.msra.mxu0 0
        %2054 = vmatprep.subr.bf16.mxu0 0
        %2055 = vmatpush1.bf16.msra.mxu0 0
        %2056 = vmatprep.subr.bf16.mxu0 0
        %2057 = vmatpush1.bf16.msra.mxu0 0
        %2058 = vmatprep.subr.bf16.mxu0 0
        %2059 = vmatpush1.bf16.msra.mxu0 0
        %2060 = vmatprep.mubr.bf16.mxu0 0
        %2061 = vmatmul.mubr.bf16.gmra.mrb[0].mxu0 %v2023
        %v2062 = vpop.f32.mrb[0].mxu0
        %v2063 = vadd.f32 0.0, %v2062
        %v2064 = vpop.f32.mrb[0].mxu0
        %v2065 = vpop.f32.mrb[0].mxu0
        %v2066 = vpop.f32.mrb[0].mxu0
        %2067 = vdwg.mxu0
        %v2069 = vsel %vm1494, %v1969, 0
        %v2072 = vsel %vm1978, %v1480, 0
        %2074 = vmatprep.subr.bf16.mxu0 0
        %2075 = vmatpush1.bf16.msra.mxu0 %v2072
        %2076 = vmatprep.subr.bf16.mxu0 0
        %2077 = vmatpush1.bf16.msra.mxu0 0
        %2078 = vmatprep.subr.bf16.mxu0 0
        %2079 = vmatpush1.bf16.msra.mxu0 0
        %2080 = vmatprep.subr.bf16.mxu0 0
        %2081 = vmatpush1.bf16.msra.mxu0 0
        %2082 = vmatprep.subr.bf16.mxu0 0
        %2083 = vmatpush1.bf16.msra.mxu0 0
        %2084 = vmatprep.subr.bf16.mxu0 0
        %2085 = vmatpush1.bf16.msra.mxu0 0
        %2086 = vmatprep.subr.bf16.mxu0 0
        %2087 = vmatpush1.bf16.msra.mxu0 0
        %2088 = vmatprep.subr.bf16.mxu0 0
        %2089 = vmatpush1.bf16.msra.mxu0 0
        %2090 = vmatprep.subr.bf16.mxu0 0
        %2091 = vmatpush1.bf16.msra.mxu0 0
        %2092 = vmatprep.subr.bf16.mxu0 0
        %2093 = vmatpush1.bf16.msra.mxu0 0
        %2094 = vmatprep.subr.bf16.mxu0 0
        %2095 = vmatpush1.bf16.msra.mxu0 0
        %2096 = vmatprep.subr.bf16.mxu0 0
        %2097 = vmatpush1.bf16.msra.mxu0 0
        %2098 = vmatprep.subr.bf16.mxu0 0
        %2099 = vmatpush1.bf16.msra.mxu0 0
        %2100 = vmatprep.subr.bf16.mxu0 0
        %2101 = vmatpush1.bf16.msra.mxu0 0
        %2102 = vmatprep.subr.bf16.mxu0 0
        %2103 = vmatpush1.bf16.msra.mxu0 0
        %2104 = vmatprep.subr.bf16.mxu0 0
        %2105 = vmatpush1.bf16.msra.mxu0 0
        %2106 = vmatprep.mubr.bf16.mxu0 0
        %2107 = vmatmul.mubr.bf16.gmra.mrb[0].mxu0 %v2069
        %v2108 = vpop.f32.mrb[0].mxu0
        %v2109 = vadd.f32 0.0, %v2108
        %v2110 = vpop.f32.mrb[0].mxu0
        %v2111 = vpop.f32.mrb[0].mxu0
        %v2112 = vpop.f32.mrb[0].mxu0
        %2113 = vdwg.mxu0
        %v2115 = vsel %vm1494, %v1970, 0
        %v2118 = vsel %vm1978, %v1481, 0
        %2120 = vmatprep.subr.bf16.mxu0 0
        %2121 = vmatpush1.bf16.msra.mxu0 %v2118
        %2122 = vmatprep.subr.bf16.mxu0 0
        %2123 = vmatpush1.bf16.msra.mxu0 0
        %2124 = vmatprep.subr.bf16.mxu0 0
        %2125 = vmatpush1.bf16.msra.mxu0 0
        %2126 = vmatprep.subr.bf16.mxu0 0
        %2127 = vmatpush1.bf16.msra.mxu0 0
        %2128 = vmatprep.subr.bf16.mxu0 0
        %2129 = vmatpush1.bf16.msra.mxu0 0
        %2130 = vmatprep.subr.bf16.mxu0 0
        %2131 = vmatpush1.bf16.msra.mxu0 0
        %2132 = vmatprep.subr.bf16.mxu0 0
        %2133 = vmatpush1.bf16.msra.mxu0 0
        %2134 = vmatprep.subr.bf16.mxu0 0
        %2135 = vmatpush1.bf16.msra.mxu0 0
        %2136 = vmatprep.subr.bf16.mxu0 0
        %2137 = vmatpush1.bf16.msra.mxu0 0
        %2138 = vmatprep.subr.bf16.mxu0 0
        %2139 = vmatpush1.bf16.msra.mxu0 0
        %2140 = vmatprep.subr.bf16.mxu0 0
        %2141 = vmatpush1.bf16.msra.mxu0 0
        %2142 = vmatprep.subr.bf16.mxu0 0
        %2143 = vmatpush1.bf16.msra.mxu0 0
        %2144 = vmatprep.subr.bf16.mxu0 0
        %2145 = vmatpush1.bf16.msra.mxu0 0
        %2146 = vmatprep.subr.bf16.mxu0 0
        %2147 = vmatpush1.bf16.msra.mxu0 0
        %2148 = vmatprep.subr.bf16.mxu0 0
        %2149 = vmatpush1.bf16.msra.mxu0 0
        %2150 = vmatprep.subr.bf16.mxu0 0
        %2151 = vmatpush1.bf16.msra.mxu0 0
        %2152 = vmatprep.mubr.bf16.mxu0 0
        %2153 = vmatmul.mubr.bf16.gmra.mrb[0].mxu0 %v2115
        %v2154 = vpop.f32.mrb[0].mxu0
        %v2155 = vadd.f32 0.0, %v2154
        %v2156 = vpop.f32.mrb[0].mxu0
        %v2157 = vpop.f32.mrb[0].mxu0
        %v2158 = vpop.f32.mrb[0].mxu0
        %2159 = vdwg.mxu0
        %v2161 = vsel %vm1494, %v1971, 0
        %v2164 = vsel %vm1978, %v1482, 0
        %2166 = vmatprep.subr.bf16.mxu0 0
        %2167 = vmatpush1.bf16.msra.mxu0 %v2164
        %2168 = vmatprep.subr.bf16.mxu0 0
        %2169 = vmatpush1.bf16.msra.mxu0 0
        %2170 = vmatprep.subr.bf16.mxu0 0
        %2171 = vmatpush1.bf16.msra.mxu0 0
        %2172 = vmatprep.subr.bf16.mxu0 0
        %2173 = vmatpush1.bf16.msra.mxu0 0
        %2174 = vmatprep.subr.bf16.mxu0 0
        %2175 = vmatpush1.bf16.msra.mxu0 0
        %2176 = vmatprep.subr.bf16.mxu0 0
        %2177 = vmatpush1.bf16.msra.mxu0 0
        %2178 = vmatprep.subr.bf16.mxu0 0
        %2179 = vmatpush1.bf16.msra.mxu0 0
        %2180 = vmatprep.subr.bf16.mxu0 0
        %2181 = vmatpush1.bf16.msra.mxu0 0
        %2182 = vmatprep.subr.bf16.mxu0 0
        %2183 = vmatpush1.bf16.msra.mxu0 0
        %2184 = vmatprep.subr.bf16.mxu0 0
        %2185 = vmatpush1.bf16.msra.mxu0 0
        %2186 = vmatprep.subr.bf16.mxu0 0
        %2187 = vmatpush1.bf16.msra.mxu0 0
        %2188 = vmatprep.subr.bf16.mxu0 0
        %2189 = vmatpush1.bf16.msra.mxu0 0
        %2190 = vmatprep.subr.bf16.mxu0 0
        %2191 = vmatpush1.bf16.msra.mxu0 0
        %2192 = vmatprep.subr.bf16.mxu0 0
        %2193 = vmatpush1.bf16.msra.mxu0 0
        %2194 = vmatprep.subr.bf16.mxu0 0
        %2195 = vmatpush1.bf16.msra.mxu0 0
        %2196 = vmatprep.subr.bf16.mxu0 0
        %2197 = vmatpush1.bf16.msra.mxu0 0
        %2198 = vmatprep.mubr.bf16.mxu0 0
        %2199 = vmatmul.mubr.bf16.gmra.mrb[0].mxu0 %v2161
        %v2200 = vpop.f32.mrb[0].mxu0
        %v2201 = vadd.f32 0.0, %v2200
        %v2202 = vpop.f32.mrb[0].mxu0
        %v2203 = vpop.f32.mrb[0].mxu0
        %v2204 = vpop.f32.mrb[0].mxu0
        %2205 = vdwg.mxu0
        %v2207 = vsel %vm1494, %v1972, 0
        %v2210 = vsel %vm1978, %v1483, 0
        %2212 = vmatprep.subr.bf16.mxu0 0
        %2213 = vmatpush1.bf16.msra.mxu0 %v2210
        %2214 = vmatprep.subr.bf16.mxu0 0
        %2215 = vmatpush1.bf16.msra.mxu0 0
        %2216 = vmatprep.subr.bf16.mxu0 0
        %2217 = vmatpush1.bf16.msra.mxu0 0
        %2218 = vmatprep.subr.bf16.mxu0 0
        %2219 = vmatpush1.bf16.msra.mxu0 0
        %2220 = vmatprep.subr.bf16.mxu0 0
        %2221 = vmatpush1.bf16.msra.mxu0 0
        %2222 = vmatprep.subr.bf16.mxu0 0
        %2223 = vmatpush1.bf16.msra.mxu0 0
        %2224 = vmatprep.subr.bf16.mxu0 0
        %2225 = vmatpush1.bf16.msra.mxu0 0
        %2226 = vmatprep.subr.bf16.mxu0 0
        %2227 = vmatpush1.bf16.msra.mxu0 0
        %2228 = vmatprep.subr.bf16.mxu0 0
        %2229 = vmatpush1.bf16.msra.mxu0 0
        %2230 = vmatprep.subr.bf16.mxu0 0
        %2231 = vmatpush1.bf16.msra.mxu0 0
        %2232 = vmatprep.subr.bf16.mxu0 0
        %2233 = vmatpush1.bf16.msra.mxu0 0
        %2234 = vmatprep.subr.bf16.mxu0 0
        %2235 = vmatpush1.bf16.msra.mxu0 0
        %2236 = vmatprep.subr.bf16.mxu0 0
        %2237 = vmatpush1.bf16.msra.mxu0 0
        %2238 = vmatprep.subr.bf16.mxu0 0
        %2239 = vmatpush1.bf16.msra.mxu0 0
        %2240 = vmatprep.subr.bf16.mxu0 0
        %2241 = vmatpush1.bf16.msra.mxu0 0
        %2242 = vmatprep.subr.bf16.mxu0 0
        %2243 = vmatpush1.bf16.msra.mxu0 0
        %2244 = vmatprep.mubr.bf16.mxu0 0
        %2245 = vmatmul.mubr.bf16.gmra.mrb[0].mxu0 %v2207
        %v2246 = vpop.f32.mrb[0].mxu0
        %v2247 = vadd.f32 0.0, %v2246
        %v2248 = vpop.f32.mrb[0].mxu0
        %v2249 = vpop.f32.mrb[0].mxu0
        %v2250 = vpop.f32.mrb[0].mxu0
        %2251 = vdwg.mxu0
        %v2253 = vsel %vm1494, %v1973, 0
        %v2256 = vsel %vm1978, %v1484, 0
        %2258 = vmatprep.subr.bf16.mxu0 0
        %2259 = vmatpush1.bf16.msra.mxu0 %v2256
        %2260 = vmatprep.subr.bf16.mxu0 0
        %2261 = vmatpush1.bf16.msra.mxu0 0
        %2262 = vmatprep.subr.bf16.mxu0 0
        %2263 = vmatpush1.bf16.msra.mxu0 0
        %2264 = vmatprep.subr.bf16.mxu0 0
        %2265 = vmatpush1.bf16.msra.mxu0 0
        %2266 = vmatprep.subr.bf16.mxu0 0
        %2267 = vmatpush1.bf16.msra.mxu0 0
        %2268 = vmatprep.subr.bf16.mxu0 0
        %2269 = vmatpush1.bf16.msra.mxu0 0
        %2270 = vmatprep.subr.bf16.mxu0 0
        %2271 = vmatpush1.bf16.msra.mxu0 0
        %2272 = vmatprep.subr.bf16.mxu0 0
        %2273 = vmatpush1.bf16.msra.mxu0 0
        %2274 = vmatprep.subr.bf16.mxu0 0
        %2275 = vmatpush1.bf16.msra.mxu0 0
        %2276 = vmatprep.subr.bf16.mxu0 0
        %2277 = vmatpush1.bf16.msra.mxu0 0
        %2278 = vmatprep.subr.bf16.mxu0 0
        %2279 = vmatpush1.bf16.msra.mxu0 0
        %2280 = vmatprep.subr.bf16.mxu0 0
        %2281 = vmatpush1.bf16.msra.mxu0 0
        %2282 = vmatprep.subr.bf16.mxu0 0
        %2283 = vmatpush1.bf16.msra.mxu0 0
        %2284 = vmatprep.subr.bf16.mxu0 0
        %2285 = vmatpush1.bf16.msra.mxu0 0
        %2286 = vmatprep.subr.bf16.mxu0 0
        %2287 = vmatpush1.bf16.msra.mxu0 0
        %2288 = vmatprep.subr.bf16.mxu0 0
        %2289 = vmatpush1.bf16.msra.mxu0 0
        %2290 = vmatprep.mubr.bf16.mxu0 0
        %2291 = vmatmul.mubr.bf16.gmra.mrb[0].mxu0 %v2253
        %v2292 = vpop.f32.mrb[0].mxu0
        %v2293 = vadd.f32 0.0, %v2292
        %v2294 = vpop.f32.mrb[0].mxu0
        %v2295 = vpop.f32.mrb[0].mxu0
        %v2296 = vpop.f32.mrb[0].mxu0
        %2297 = vdwg.mxu0
        %v2299 = vsel %vm1494, %v1974, 0
        %v2302 = vsel %vm1978, %v1485, 0
        %2304 = vmatprep.subr.bf16.mxu0 0
        %2305 = vmatpush1.bf16.msra.mxu0 %v2302
        %2306 = vmatprep.subr.bf16.mxu0 0
        %2307 = vmatpush1.bf16.msra.mxu0 0
        %2308 = vmatprep.subr.bf16.mxu0 0
        %2309 = vmatpush1.bf16.msra.mxu0 0
        %2310 = vmatprep.subr.bf16.mxu0 0
        %2311 = vmatpush1.bf16.msra.mxu0 0
        %2312 = vmatprep.subr.bf16.mxu0 0
        %2313 = vmatpush1.bf16.msra.mxu0 0
        %2314 = vmatprep.subr.bf16.mxu0 0
        %2315 = vmatpush1.bf16.msra.mxu0 0
        %2316 = vmatprep.subr.bf16.mxu0 0
        %2317 = vmatpush1.bf16.msra.mxu0 0
        %2318 = vmatprep.subr.bf16.mxu0 0
        %2319 = vmatpush1.bf16.msra.mxu0 0
        %2320 = vmatprep.subr.bf16.mxu0 0
        %2321 = vmatpush1.bf16.msra.mxu0 0
        %2322 = vmatprep.subr.bf16.mxu0 0
        %2323 = vmatpush1.bf16.msra.mxu0 0
        %2324 = vmatprep.subr.bf16.mxu0 0
        %2325 = vmatpush1.bf16.msra.mxu0 0
        %2326 = vmatprep.subr.bf16.mxu0 0
        %2327 = vmatpush1.bf16.msra.mxu0 0
        %2328 = vmatprep.subr.bf16.mxu0 0
        %2329 = vmatpush1.bf16.msra.mxu0 0
        %2330 = vmatprep.subr.bf16.mxu0 0
        %2331 = vmatpush1.bf16.msra.mxu0 0
        %2332 = vmatprep.subr.bf16.mxu0 0
        %2333 = vmatpush1.bf16.msra.mxu0 0
        %2334 = vmatprep.subr.bf16.mxu0 0
        %2335 = vmatpush1.bf16.msra.mxu0 0
        %2336 = vmatprep.mubr.bf16.mxu0 0
        %2337 = vmatmul.mubr.bf16.gmra.mrb[0].mxu0 %v2299
        %v2338 = vpop.f32.mrb[0].mxu0
        %v2339 = vadd.f32 0.0, %v2338
        %v2340 = vpop.f32.mrb[0].mxu0
        %v2341 = vpop.f32.mrb[0].mxu0
        %v2342 = vpop.f32.mrb[0].mxu0
        %2343 = vdwg.mxu0
        %vm2344 = vcmp.ge.f32.partialorder %v2017, 0.0
        %vm2345 = vcmp.ge.f32.partialorder %v2063, 0.0
        %vm2346 = vcmp.ge.f32.partialorder %v2109, 0.0
        %vm2347 = vcmp.ge.f32.partialorder %v2155, 0.0
        %vm2348 = vcmp.ge.f32.partialorder %v2201, 0.0
        %vm2349 = vcmp.ge.f32.partialorder %v2247, 0.0
        %vm2350 = vcmp.ge.f32.partialorder %v2293, 0.0
        %vm2351 = vcmp.ge.f32.partialorder %v2339, 0.0
        %v2352 = vmul.f32 %v2017, 0.01
        %v2353 = vmul.f32 %v2063, 0.01
        %v2354 = vmul.f32 %v2109, 0.01
        %v2355 = vmul.f32 %v2155, 0.01
        %v2356 = vmul.f32 %v2201, 0.01
        %v2357 = vmul.f32 %v2247, 0.01
        %v2358 = vmul.f32 %v2293, 0.01
        %v2359 = vmul.f32 %v2339, 0.01
        %v2360 = vsel %vm2344, %v2017, %v2352
        %v2361 = vsel %vm2345, %v2063, %v2353
        %v2362 = vsel %vm2346, %v2109, %v2354
        %v2363 = vsel %vm2347, %v2155, %v2355
        %v2364 = vsel %vm2348, %v2201, %v2356
        %v2365 = vsel %vm2349, %v2247, %v2357
        %v2366 = vsel %vm2350, %v2293, %v2358
        %v2367 = vsel %vm2351, %v2339, %v2359
        %v2368 = vpack.c.bf16 %v2361, %v2360
        %v2369 = vpack.c.bf16 %v2363, %v2362
        %v2370 = vpack.c.bf16 %v2365, %v2364
        %v2371 = vpack.c.bf16 %v2367, %v2366
        %s2372 = smul.addr %s1197, 4
        %s2373 = scalar_lea.vmem [#allocation18], %s2372
        %v2374 = vld [vmem:[%s2373] sm:$0xf]
        %v2375 = vld [vmem:[%s2373 + $0x4] sm:$0xf]
        %v2376 = vld [vmem:[%s2373 + $0x8] sm:$0xf]
        %v2377 = vld [vmem:[%s2373 + $0xc] sm:$0xf]
        %v2379 = vsel %vm1494, %v2368, 0
        %v2382 = vsel %vm1978, %v2374, 0
        %2384 = vmatprep.subr.bf16.mxu0 0
        %2385 = vmatpush1.bf16.msra.mxu0 %v2382
        %2386 = vmatprep.subr.bf16.mxu0 0
        %2387 = vmatpush1.bf16.msra.mxu0 0
        %2388 = vmatprep.subr.bf16.mxu0 0
        %2389 = vmatpush1.bf16.msra.mxu0 0
        %2390 = vmatprep.subr.bf16.mxu0 0
        %2391 = vmatpush1.bf16.msra.mxu0 0
        %2392 = vmatprep.subr.bf16.mxu0 0
        %2393 = vmatpush1.bf16.msra.mxu0 0
        %2394 = vmatprep.subr.bf16.mxu0 0
        %2395 = vmatpush1.bf16.msra.mxu0 0
        %2396 = vmatprep.subr.bf16.mxu0 0
        %2397 = vmatpush1.bf16.msra.mxu0 0
        %2398 = vmatprep.subr.bf16.mxu0 0
        %2399 = vmatpush1.bf16.msra.mxu0 0
        %2400 = vmatprep.subr.bf16.mxu0 0
        %2401 = vmatpush1.bf16.msra.mxu0 0
        %2402 = vmatprep.subr.bf16.mxu0 0
        %2403 = vmatpush1.bf16.msra.mxu0 0
        %2404 = vmatprep.subr.bf16.mxu0 0
        %2405 = vmatpush1.bf16.msra.mxu0 0
        %2406 = vmatprep.subr.bf16.mxu0 0
        %2407 = vmatpush1.bf16.msra.mxu0 0
        %2408 = vmatprep.subr.bf16.mxu0 0
        %2409 = vmatpush1.bf16.msra.mxu0 0
        %2410 = vmatprep.subr.bf16.mxu0 0
        %2411 = vmatpush1.bf16.msra.mxu0 0
        %2412 = vmatprep.subr.bf16.mxu0 0
        %2413 = vmatpush1.bf16.msra.mxu0 0
        %2414 = vmatprep.subr.bf16.mxu0 0
        %2415 = vmatpush1.bf16.msra.mxu0 0
        %2416 = vmatprep.mubr.bf16.mxu0 0
        %2417 = vmatmul.mubr.bf16.gmra.mrb[0].mxu0 %v2379
        %v2418 = vpop.f32.mrb[0].mxu0
        %v2419 = vadd.f32 0.0, %v2418
        %v2420 = vpop.f32.mrb[0].mxu0
        %v2421 = vpop.f32.mrb[0].mxu0
        %v2422 = vadd.f32 0.0, %v2421
        %v2423 = vpop.f32.mrb[0].mxu0
        %2424 = vdwg.mxu0
        %v2426 = vsel %vm1494, %v2369, 0
        %v2429 = vsel %vm1978, %v2375, 0
        %2431 = vmatprep.subr.bf16.mxu0 0
        %2432 = vmatpush1.bf16.msra.mxu0 %v2429
        %2433 = vmatprep.subr.bf16.mxu0 0
        %2434 = vmatpush1.bf16.msra.mxu0 0
        %2435 = vmatprep.subr.bf16.mxu0 0
        %2436 = vmatpush1.bf16.msra.mxu0 0
        %2437 = vmatprep.subr.bf16.mxu0 0
        %2438 = vmatpush1.bf16.msra.mxu0 0
        %2439 = vmatprep.subr.bf16.mxu0 0
        %2440 = vmatpush1.bf16.msra.mxu0 0
        %2441 = vmatprep.subr.bf16.mxu0 0
        %2442 = vmatpush1.bf16.msra.mxu0 0
        %2443 = vmatprep.subr.bf16.mxu0 0
        %2444 = vmatpush1.bf16.msra.mxu0 0
        %2445 = vmatprep.subr.bf16.mxu0 0
        %2446 = vmatpush1.bf16.msra.mxu0 0
        %2447 = vmatprep.subr.bf16.mxu0 0
        %2448 = vmatpush1.bf16.msra.mxu0 0
        %2449 = vmatprep.subr.bf16.mxu0 0
        %2450 = vmatpush1.bf16.msra.mxu0 0
        %2451 = vmatprep.subr.bf16.mxu0 0
        %2452 = vmatpush1.bf16.msra.mxu0 0
        %2453 = vmatprep.subr.bf16.mxu0 0
        %2454 = vmatpush1.bf16.msra.mxu0 0
        %2455 = vmatprep.subr.bf16.mxu0 0
        %2456 = vmatpush1.bf16.msra.mxu0 0
        %2457 = vmatprep.subr.bf16.mxu0 0
        %2458 = vmatpush1.bf16.msra.mxu0 0
        %2459 = vmatprep.subr.bf16.mxu0 0
        %2460 = vmatpush1.bf16.msra.mxu0 0
        %2461 = vmatprep.subr.bf16.mxu0 0
        %2462 = vmatpush1.bf16.msra.mxu0 0
        %2463 = vmatprep.mubr.bf16.mxu0 0
        %2464 = vmatmul.mubr.bf16.gmra.mrb[0].mxu0 %v2426
        %v2465 = vpop.f32.mrb[0].mxu0
        %v2466 = vadd.f32 0.0, %v2465
        %v2467 = vpop.f32.mrb[0].mxu0
        %v2468 = vpop.f32.mrb[0].mxu0
        %v2469 = vadd.f32 0.0, %v2468
        %v2470 = vpop.f32.mrb[0].mxu0
        %2471 = vdwg.mxu0
        %v2473 = vsel %vm1494, %v2370, 0
        %v2476 = vsel %vm1978, %v2376, 0
        %2478 = vmatprep.subr.bf16.mxu0 0
        %2479 = vmatpush1.bf16.msra.mxu0 %v2476
        %2480 = vmatprep.subr.bf16.mxu0 0
        %2481 = vmatpush1.bf16.msra.mxu0 0
        %2482 = vmatprep.subr.bf16.mxu0 0
        %2483 = vmatpush1.bf16.msra.mxu0 0
        %2484 = vmatprep.subr.bf16.mxu0 0
        %2485 = vmatpush1.bf16.msra.mxu0 0
        %2486 = vmatprep.subr.bf16.mxu0 0
        %2487 = vmatpush1.bf16.msra.mxu0 0
        %2488 = vmatprep.subr.bf16.mxu0 0
        %2489 = vmatpush1.bf16.msra.mxu0 0
        %2490 = vmatprep.subr.bf16.mxu0 0
        %2491 = vmatpush1.bf16.msra.mxu0 0
        %2492 = vmatprep.subr.bf16.mxu0 0
        %2493 = vmatpush1.bf16.msra.mxu0 0
        %2494 = vmatprep.subr.bf16.mxu0 0
        %2495 = vmatpush1.bf16.msra.mxu0 0
        %2496 = vmatprep.subr.bf16.mxu0 0
        %2497 = vmatpush1.bf16.msra.mxu0 0
        %2498 = vmatprep.subr.bf16.mxu0 0
        %2499 = vmatpush1.bf16.msra.mxu0 0
        %2500 = vmatprep.subr.bf16.mxu0 0
        %2501 = vmatpush1.bf16.msra.mxu0 0
        %2502 = vmatprep.subr.bf16.mxu0 0
        %2503 = vmatpush1.bf16.msra.mxu0 0
        %2504 = vmatprep.subr.bf16.mxu0 0
        %2505 = vmatpush1.bf16.msra.mxu0 0
        %2506 = vmatprep.subr.bf16.mxu0 0
        %2507 = vmatpush1.bf16.msra.mxu0 0
        %2508 = vmatprep.subr.bf16.mxu0 0
        %2509 = vmatpush1.bf16.msra.mxu0 0
        %2510 = vmatprep.mubr.bf16.mxu0 0
        %2511 = vmatmul.mubr.bf16.gmra.mrb[0].mxu0 %v2473
        %v2512 = vpop.f32.mrb[0].mxu0
        %v2513 = vadd.f32 0.0, %v2512
        %v2514 = vpop.f32.mrb[0].mxu0
        %v2515 = vpop.f32.mrb[0].mxu0
        %v2516 = vadd.f32 0.0, %v2515
        %v2517 = vpop.f32.mrb[0].mxu0
        %2518 = vdwg.mxu0
        %v2520 = vsel %vm1494, %v2371, 0
        %v2523 = vsel %vm1978, %v2377, 0
        %2525 = vmatprep.subr.bf16.mxu0 0
        %2526 = vmatpush1.bf16.msra.mxu0 %v2523
        %2527 = vmatprep.subr.bf16.mxu0 0
        %2528 = vmatpush1.bf16.msra.mxu0 0
        %2529 = vmatprep.subr.bf16.mxu0 0
        %2530 = vmatpush1.bf16.msra.mxu0 0
        %2531 = vmatprep.subr.bf16.mxu0 0
        %2532 = vmatpush1.bf16.msra.mxu0 0
        %2533 = vmatprep.subr.bf16.mxu0 0
        %2534 = vmatpush1.bf16.msra.mxu0 0
        %2535 = vmatprep.subr.bf16.mxu0 0
        %2536 = vmatpush1.bf16.msra.mxu0 0
        %2537 = vmatprep.subr.bf16.mxu0 0
        %2538 = vmatpush1.bf16.msra.mxu0 0
        %2539 = vmatprep.subr.bf16.mxu0 0
        %2540 = vmatpush1.bf16.msra.mxu0 0
        %2541 = vmatprep.subr.bf16.mxu0 0
        %2542 = vmatpush1.bf16.msra.mxu0 0
        %2543 = vmatprep.subr.bf16.mxu0 0
        %2544 = vmatpush1.bf16.msra.mxu0 0
        %2545 = vmatprep.subr.bf16.mxu0 0
        %2546 = vmatpush1.bf16.msra.mxu0 0
        %2547 = vmatprep.subr.bf16.mxu0 0
        %2548 = vmatpush1.bf16.msra.mxu0 0
        %2549 = vmatprep.subr.bf16.mxu0 0
        %2550 = vmatpush1.bf16.msra.mxu0 0
        %2551 = vmatprep.subr.bf16.mxu0 0
        %2552 = vmatpush1.bf16.msra.mxu0 0
        %2553 = vmatprep.subr.bf16.mxu0 0
        %2554 = vmatpush1.bf16.msra.mxu0 0
        %2555 = vmatprep.subr.bf16.mxu0 0
        %2556 = vmatpush1.bf16.msra.mxu0 0
        %2557 = vmatprep.mubr.bf16.mxu0 0
        %2558 = vmatmul.mubr.bf16.gmra.mrb[0].mxu0 %v2520
        %v2559 = vpop.f32.mrb[0].mxu0
        %v2560 = vadd.f32 0.0, %v2559
        %v2561 = vpop.f32.mrb[0].mxu0
        %v2562 = vpop.f32.mrb[0].mxu0
        %v2563 = vadd.f32 0.0, %v2562
        %v2564 = vpop.f32.mrb[0].mxu0
        %2565 = vdwg.mxu0
        %v2566 = vsel %vm1152, %v2419, 0.0
        %v2567 = vsel %vm1152, %v2466, 0.0
        %v2568 = vadd.f32 %v2566, %v2567
        %v2569 = vsel %vm1152, %v2513, 0.0
        %v2570 = vadd.f32 %v2568, %v2569
        %v2571 = vsel %vm1152, %v2560, 0.0
        %v2572 = vadd.f32 %v2570, %v2571
        %v2573 = vsel %vm1152, %v2422, 0.0
        %v2574 = vsel %vm1152, %v2469, 0.0
        %v2575 = vadd.f32 %v2573, %v2574
        %v2576 = vsel %vm1152, %v2516, 0.0
        %v2577 = vadd.f32 %v2575, %v2576
        %v2578 = vsel %vm1152, %v2563, 0.0
        %v2579 = vadd.f32 %v2577, %v2578
        %v2580 = vadd.f32 %v2572, %v1146
        %v2581 = vadd.f32 %v2579, %v1147
        %s2582 = scalar_lea.vmem [#allocation20], %s55
        %v2583 = vld [vmem:[%s2582] sm:$0x1]
        %s2584 = scalar_lea.vmem [#allocation21], %s55
        %v2585 = vld [vmem:[%s2584] sm:$0x1]
        %v2586 = vsel %vm1152, %v2580, 0.0
        %2587 = vadd.xlane.f32.xlu0 %v2586
        %v2588 = vpop.xlane.xlu0 %2587
        %v2589 = vsel %vm1152, %v2581, 0.0
        %2590 = vadd.xlane.f32.xlu0 %v2589
        %v2591 = vpop.xlane.xlu0 %2590
        %v2592 = vmul.f32 %v2588, %v1159
        %v2593 = vmul.f32 %v2591, %v1159
        %v2594 = vsub.f32 %v2580, %v2592
        %v2595 = vsub.f32 %v2581, %v2593
        %v2596 = vmul.f32 %v2594, %v2594
        %v2597 = vmul.f32 %v2595, %v2595
        %v2598 = vsel %vm1152, %v2596, 0.0
        %2599 = vadd.xlane.f32.xlu0 %v2598
        %v2600 = vpop.xlane.xlu0 %2599
        %v2601 = vsel %vm1152, %v2597, 0.0
        %2602 = vadd.xlane.f32.xlu0 %v2601
        %v2603 = vpop.xlane.xlu0 %2602
        %v2604 = vmul.f32 %v2600, %v1159
        %v2605 = vmul.f32 %v2603, %v1159
        %v2606 = vadd.f32 %v2604, 1e-05
        %v2607 = vadd.f32 %v2605, 1e-05
        %v2608 = vrsqrt.pop %v2606
        %v2609 = vrsqrt.pop %v2607
        %v2610 = vmul.f32 %v2594, %v2608
        %v2611 = vmul.f32 %v2595, %v2609
        %v2613 = vlaneseq
        %v2614 = vshrl.u32 %v2613, 7
        %v2615 = vsub.s32 0, %v2614
        %v2616 = vrot.slane %v2583, %v2615
        %v2618 = vmul.f32 %v2610, %v2616
        %v2619 = vmul.f32 %v2611, %v2616
        %v2621 = vlaneseq
        %v2622 = vshrl.u32 %v2621, 7
        %v2623 = vsub.s32 0, %v2622
        %v2624 = vrot.slane %v2585, %v2623
        %v2626 = vadd.f32 %v2618, %v2624
        %v2627 = vadd.f32 %v2619, %v2624
        %s2628 = smul.addr %s1197, 4
        %s2629 = scalar_lea.vmem %s14, %s2628
        %v2630 = vld [vmem:[%s2629] sm:$0xf]
        %v2631 = vld [vmem:[%s2629 + $0x4] sm:$0xf]
        %v2632 = vld [vmem:[%s2629 + $0x8] sm:$0xf]
        %v2633 = vld [vmem:[%s2629 + $0xc] sm:$0xf]
        %v2634 = vpack.c.bf16 %v2627, %v2626
        %s2635 = scalar_lea.vmem [#allocation23], %s55
        %v2636 = vld [vmem:[%s2635] sm:$0x1]
        %v2638 = vlaneseq
        %v2639 = vshrl.u32 %v2638, 7
        %v2640 = vsub.s32 0, %v2639
        %v2641 = vrot.slane %v2636, %v2640
        %v2647 = vunpack.c.l.b16 %v2630
        %v2648 = vunpack.c.l.b16 %v2631
        %v2649 = vunpack.c.l.b16 %v2632
        %v2650 = vunpack.c.l.b16 %v2633
        %v2651 = vpack.c.b16 %v2648, %v2647
        %v2652 = vpack.c.b16 %v2650, %v2649
        %v2656 = vsel %vm1152, %v2634, 0
        %2658 = vmatprep.subr.bf16.mxu0 0
        %2659 = vmatpush1.bf16.msra.mxu0 %v2651
        %2660 = vmatprep.subr.bf16.mxu0 0
        %2661 = vmatpush1.bf16.msra.mxu0 %v2652
        %2662 = vmatprep.subr.bf16.mxu0 0
        %2663 = vmatpush1.bf16.msra.mxu0 0
        %2664 = vmatprep.subr.bf16.mxu0 0
        %2665 = vmatpush1.bf16.msra.mxu0 0
        %2666 = vmatprep.subr.bf16.mxu0 0
        %2667 = vmatpush1.bf16.msra.mxu0 0
        %2668 = vmatprep.subr.bf16.mxu0 0
        %2669 = vmatpush1.bf16.msra.mxu0 0
        %2670 = vmatprep.subr.bf16.mxu0 0
        %2671 = vmatpush1.bf16.msra.mxu0 0
        %2672 = vmatprep.subr.bf16.mxu0 0
        %2673 = vmatpush1.bf16.msra.mxu0 0
        %2674 = vmatprep.subr.bf16.mxu0 0
        %2675 = vmatpush1.bf16.msra.mxu0 0
        %2676 = vmatprep.subr.bf16.mxu0 0
        %2677 = vmatpush1.bf16.msra.mxu0 0
        %2678 = vmatprep.subr.bf16.mxu0 0
        %2679 = vmatpush1.bf16.msra.mxu0 0
        %2680 = vmatprep.subr.bf16.mxu0 0
        %2681 = vmatpush1.bf16.msra.mxu0 0
        %2682 = vmatprep.subr.bf16.mxu0 0
        %2683 = vmatpush1.bf16.msra.mxu0 0
        %2684 = vmatprep.subr.bf16.mxu0 0
        %2685 = vmatpush1.bf16.msra.mxu0 0
        %2686 = vmatprep.subr.bf16.mxu0 0
        %2687 = vmatpush1.bf16.msra.mxu0 0
        %2688 = vmatprep.subr.bf16.mxu0 0
        %2689 = vmatpush1.bf16.msra.mxu0 0
        %2690 = vmatprep.mubr.bf16.mxu0 0
        %2691 = vmatmul.mubr.bf16.gmra.mrb[0].mxu0 %v2656
        %v2692 = vpop.f32.mrb[0].mxu0
        %v2693 = vadd.f32 %v2641, %v2692
        %v2694 = vpop.f32.mrb[0].mxu0
        %v2695 = vpop.f32.mrb[0].mxu0
        %v2696 = vadd.f32 %v2641, %v2695
        %v2697 = vpop.f32.mrb[0].mxu0
        %2698 = vdwg.mxu0
        %v2699 = vmax.f32 %v2693, 0.0
        %v2700 = vmax.f32 %v2696, 0.0
        %s2701 = smul.u32 %s55, 8
        %s2702 = smul.addr %s2701, 4
        %s2703 = scalar_lea.vmem %s16, %s2702
        %v2704 = vld [vmem:[%s2703] sm:$0xf]
        %v2705 = vld [vmem:[%s2703 + $0x4] sm:$0xf]
        %v2706 = vld [vmem:[%s2703 + $0x8] sm:$0xf]
        %v2707 = vld [vmem:[%s2703 + $0xc] sm:$0xf]
        %v2708 = vld [vmem:[%s2703 + $0x10] sm:$0xf]
        %v2709 = vld [vmem:[%s2703 + $0x14] sm:$0xf]
        %v2710 = vld [vmem:[%s2703 + $0x18] sm:$0xf]
        %v2711 = vld [vmem:[%s2703 + $0x1c] sm:$0xf]
        %v2712 = vpack.c.bf16 %v2700, %v2699
        %s2713 = scalar_lea.vmem [#allocation24], %s55
        %v2714 = vld [vmem:[%s2713] sm:$0x1]
        %v2716 = vlaneseq
        %v2717 = vshrl.u32 %v2716, 7
        %v2718 = vsub.s32 0, %v2717
        %v2719 = vrot.slane %v2714, %v2718
        %v2729 = vunpack.c.l.b16 %v2704
        %v2730 = vunpack.c.l.b16 %v2705
        %v2731 = vunpack.c.l.b16 %v2706
        %v2732 = vunpack.c.l.b16 %v2707
        %v2733 = vunpack.c.l.b16 %v2708
        %v2734 = vunpack.c.l.b16 %v2709
        %v2735 = vunpack.c.l.b16 %v2710
        %v2736 = vunpack.c.l.b16 %v2711
        %v2737 = vpack.c.b16 %v2730, %v2729
        %v2738 = vpack.c.b16 %v2732, %v2731
        %v2739 = vpack.c.b16 %v2734, %v2733
        %v2740 = vpack.c.b16 %v2736, %v2735
        %vm2745 = vcmask 523264
        %v2747 = vsel %vm2745, %v2712, 0
        %2749 = vmatprep.subr.bf16.mxu0 0
        %2750 = vmatpush1.bf16.msra.mxu0 %v2737
        %2751 = vmatprep.subr.bf16.mxu0 0
        %2752 = vmatpush1.bf16.msra.mxu0 %v2738
        %2753 = vmatprep.subr.bf16.mxu0 0
        %2754 = vmatpush1.bf16.msra.mxu0 %v2739
        %2755 = vmatprep.subr.bf16.mxu0 0
        %2756 = vmatpush1.bf16.msra.mxu0 %v2740
        %2757 = vmatprep.subr.bf16.mxu0 0
        %2758 = vmatpush1.bf16.msra.mxu0 0
        %2759 = vmatprep.subr.bf16.mxu0 0
        %2760 = vmatpush1.bf16.msra.mxu0 0
        %2761 = vmatprep.subr.bf16.mxu0 0
        %2762 = vmatpush1.bf16.msra.mxu0 0
        %2763 = vmatprep.subr.bf16.mxu0 0
        %2764 = vmatpush1.bf16.msra.mxu0 0
        %2765 = vmatprep.subr.bf16.mxu0 0
        %2766 = vmatpush1.bf16.msra.mxu0 0
        %2767 = vmatprep.subr.bf16.mxu0 0
        %2768 = vmatpush1.bf16.msra.mxu0 0
        %2769 = vmatprep.subr.bf16.mxu0 0
        %2770 = vmatpush1.bf16.msra.mxu0 0
        %2771 = vmatprep.subr.bf16.mxu0 0
        %2772 = vmatpush1.bf16.msra.mxu0 0
        %2773 = vmatprep.subr.bf16.mxu0 0
        %2774 = vmatpush1.bf16.msra.mxu0 0
        %2775 = vmatprep.subr.bf16.mxu0 0
        %2776 = vmatpush1.bf16.msra.mxu0 0
        %2777 = vmatprep.subr.bf16.mxu0 0
        %2778 = vmatpush1.bf16.msra.mxu0 0
        %2779 = vmatprep.subr.bf16.mxu0 0
        %2780 = vmatpush1.bf16.msra.mxu0 0
        %2781 = vmatprep.mubr.bf16.mxu0 0
        %2782 = vmatmul.mubr.bf16.gmra.mrb[0].mxu0 %v2747
        %v2783 = vpop.f32.mrb[0].mxu0
        %v2784 = vadd.f32 %v2719, %v2783
        %v2785 = vpop.f32.mrb[0].mxu0
        %v2786 = vpop.f32.mrb[0].mxu0
        %v2787 = vadd.f32 %v2719, %v2786
        %v2788 = vpop.f32.mrb[0].mxu0
        %2789 = vdwg.mxu0
        %v2790 = vadd.f32 %v2784, %v2580
        %v2791 = vadd.f32 %v2787, %v2581
        %2792 = vst.msk [vmem:[#allocation2] sm:$0xff] %vm1152, %v2790
        %2793 = vst.msk [vmem:[#allocation2 + $0x8] sm:$0xff] %vm1152, %v2791
        %p2794 = scmp.eq.s32.totalorder %s55, 1
        // Predicated region
        $region197: #{tpu_custom_call.1} parent=131 // pred_check
          %p2795 = pneg %p2794
        $region198: #{tpu_custom_call.1} parent=131 // pred_check_branch
          %2797 = sbr.rel (%p2795) target = $region200
        $region199: #{tpu_custom_call.1} parent=131 // pred_region
          %v2798 = vld [vmem:[#allocation2] sm:$0xff]
          %v2799 = vld [vmem:[#allocation2 + $0x8] sm:$0xff]
          %v2800 = vld [vmem:[%s18] sm:$0x1]
          %v2801 = vld [vmem:[#allocation26] sm:$0x1]
          %v2802 = vsel %vm1152, %v2798, 0.0
          %2803 = vadd.xlane.f32.xlu0 %v2802
          %v2804 = vpop.xlane.xlu0 %2803
          %v2805 = vsel %vm1152, %v2799, 0.0
          %2806 = vadd.xlane.f32.xlu0 %v2805
          %v2807 = vpop.xlane.xlu0 %2806
          %v2808 = vmul.f32 %v2804, %v1159
          %v2809 = vmul.f32 %v2807, %v1159
          %v2810 = vsub.f32 %v2798, %v2808
          %v2811 = vsub.f32 %v2799, %v2809
          %v2812 = vmul.f32 %v2810, %v2810
          %v2813 = vmul.f32 %v2811, %v2811
          %v2814 = vsel %vm1152, %v2812, 0.0
          %2815 = vadd.xlane.f32.xlu0 %v2814
          %v2816 = vpop.xlane.xlu0 %2815
          %v2817 = vsel %vm1152, %v2813, 0.0
          %2818 = vadd.xlane.f32.xlu0 %v2817
          %v2819 = vpop.xlane.xlu0 %2818
          %v2820 = vmul.f32 %v2816, %v1159
          %v2821 = vmul.f32 %v2819, %v1159
          %v2822 = vadd.f32 %v2820, 1e-05
          %v2823 = vadd.f32 %v2821, 1e-05
          %v2824 = vrsqrt.pop %v2822
          %v2825 = vrsqrt.pop %v2823
          %v2826 = vmul.f32 %v2810, %v2824
          %v2827 = vmul.f32 %v2811, %v2825
          %v2829 = vlaneseq
          %v2830 = vshrl.u32 %v2829, 7
          %v2831 = vsub.s32 0, %v2830
          %v2832 = vrot.slane %v2800, %v2831
          %v2834 = vmul.f32 %v2826, %v2832
          %v2835 = vmul.f32 %v2827, %v2832
          %v2837 = vlaneseq
          %v2838 = vshrl.u32 %v2837, 7
          %v2839 = vsub.s32 0, %v2838
          %v2840 = vrot.slane %v2801, %v2839
          %v2842 = vadd.f32 %v2834, %v2840
          %v2843 = vadd.f32 %v2835, %v2840
          %v2844 = vld [vmem:[#allocation27] sm:$0xf]
          %v2845 = vld [vmem:[#allocation27 + $0x4] sm:$0xf]
          %v2846 = vld [vmem:[#allocation27 + $0x8] sm:$0xf]
          %v2847 = vld [vmem:[#allocation27 + $0xc] sm:$0xf]
          %v2848 = vpack.c.bf16 %v2843, %v2842
          %v2849 = vld [vmem:[%s21] sm:$0x1]
          %v2851 = vlaneseq
          %v2852 = vshrl.u32 %v2851, 7
          %v2853 = vsub.s32 0, %v2852
          %v2854 = vrot.slane %v2849, %v2853
          %v2860 = vunpack.c.l.b16 %v2844
          %v2861 = vunpack.c.l.b16 %v2845
          %v2862 = vunpack.c.l.b16 %v2846
          %v2863 = vunpack.c.l.b16 %v2847
          %v2864 = vpack.c.b16 %v2861, %v2860
          %v2865 = vpack.c.b16 %v2863, %v2862
          %v2869 = vsel %vm1152, %v2848, 0
          %2871 = vmatprep.subr.bf16.mxu0 0
          %2872 = vmatpush1.bf16.msra.mxu0 %v2864
          %2873 = vmatprep.subr.bf16.mxu0 0
          %2874 = vmatpush1.bf16.msra.mxu0 %v2865
          %2875 = vmatprep.subr.bf16.mxu0 0
          %2876 = vmatpush1.bf16.msra.mxu0 0
          %2877 = vmatprep.subr.bf16.mxu0 0
          %2878 = vmatpush1.bf16.msra.mxu0 0
          %2879 = vmatprep.subr.bf16.mxu0 0
          %2880 = vmatpush1.bf16.msra.mxu0 0
          %2881 = vmatprep.subr.bf16.mxu0 0
          %2882 = vmatpush1.bf16.msra.mxu0 0
          %2883 = vmatprep.subr.bf16.mxu0 0
          %2884 = vmatpush1.bf16.msra.mxu0 0
          %2885 = vmatprep.subr.bf16.mxu0 0
          %2886 = vmatpush1.bf16.msra.mxu0 0
          %2887 = vmatprep.subr.bf16.mxu0 0
          %2888 = vmatpush1.bf16.msra.mxu0 0
          %2889 = vmatprep.subr.bf16.mxu0 0
          %2890 = vmatpush1.bf16.msra.mxu0 0
          %2891 = vmatprep.subr.bf16.mxu0 0
          %2892 = vmatpush1.bf16.msra.mxu0 0
          %2893 = vmatprep.subr.bf16.mxu0 0
          %2894 = vmatpush1.bf16.msra.mxu0 0
          %2895 = vmatprep.subr.bf16.mxu0 0
          %2896 = vmatpush1.bf16.msra.mxu0 0
          %2897 = vmatprep.subr.bf16.mxu0 0
          %2898 = vmatpush1.bf16.msra.mxu0 0
          %2899 = vmatprep.subr.bf16.mxu0 0
          %2900 = vmatpush1.bf16.msra.mxu0 0
          %2901 = vmatprep.subr.bf16.mxu0 0
          %2902 = vmatpush1.bf16.msra.mxu0 0
          %2903 = vmatprep.mubr.bf16.mxu0 0
          %2904 = vmatmul.mubr.bf16.gmra.mrb[0].mxu0 %v2869
          %v2905 = vpop.f32.mrb[0].mxu0
          %v2906 = vadd.f32 %v2854, %v2905
          %v2907 = vpop.f32.mrb[0].mxu0
          %v2908 = vpop.f32.mrb[0].mxu0
          %v2909 = vadd.f32 %v2854, %v2908
          %v2910 = vpop.f32.mrb[0].mxu0
          %2911 = vdwg.mxu0
          %v2912 = vld [vmem:[%s22] sm:$0xf]
          %v2913 = vld [vmem:[%s22 + $0x4] sm:$0xf]
          %v2914 = vld [vmem:[%s22 + $0x8] sm:$0xf]
          %v2915 = vld [vmem:[%s22 + $0xc] sm:$0xf]
          %v2916 = vld [vmem:[%s22 + $0x10] sm:$0xf]
          %v2917 = vld [vmem:[%s22 + $0x14] sm:$0xf]
          %v2918 = vld [vmem:[%s22 + $0x18] sm:$0xf]
          %v2919 = vld [vmem:[%s22 + $0x1c] sm:$0xf]
          %v2920 = vpack.c.bf16 %v2909, %v2906
          %v2921 = vld [vmem:[%s23] sm:$0x1]
          %v2923 = vlaneseq
          %v2924 = vshrl.u32 %v2923, 7
          %v2925 = vsub.s32 0, %v2924
          %v2926 = vrot.slane %v2921, %v2925
          %v2936 = vunpack.c.l.b16 %v2912
          %v2937 = vunpack.c.l.b16 %v2913
          %v2938 = vunpack.c.l.b16 %v2914
          %v2939 = vunpack.c.l.b16 %v2915
          %v2940 = vunpack.c.l.b16 %v2916
          %v2941 = vunpack.c.l.b16 %v2917
          %v2942 = vunpack.c.l.b16 %v2918
          %v2943 = vunpack.c.l.b16 %v2919
          %v2944 = vpack.c.b16 %v2937, %v2936
          %v2945 = vpack.c.b16 %v2939, %v2938
          %v2946 = vpack.c.b16 %v2941, %v2940
          %v2947 = vpack.c.b16 %v2943, %v2942
          %v2953 = vsel %vm2745, %v2920, 0
          %2955 = vmatprep.subr.bf16.mxu0 0
          %2956 = vmatpush1.bf16.msra.mxu0 %v2944
          %2957 = vmatprep.subr.bf16.mxu0 0
          %2958 = vmatpush1.bf16.msra.mxu0 %v2945
          %2959 = vmatprep.subr.bf16.mxu0 0
          %2960 = vmatpush1.bf16.msra.mxu0 %v2946
          %2961 = vmatprep.subr.bf16.mxu0 0
          %2962 = vmatpush1.bf16.msra.mxu0 %v2947
          %2963 = vmatprep.subr.bf16.mxu0 0
          %2964 = vmatpush1.bf16.msra.mxu0 0
          %2965 = vmatprep.subr.bf16.mxu0 0
          %2966 = vmatpush1.bf16.msra.mxu0 0
          %2967 = vmatprep.subr.bf16.mxu0 0
          %2968 = vmatpush1.bf16.msra.mxu0 0
          %2969 = vmatprep.subr.bf16.mxu0 0
          %2970 = vmatpush1.bf16.msra.mxu0 0
          %2971 = vmatprep.subr.bf16.mxu0 0
          %2972 = vmatpush1.bf16.msra.mxu0 0
          %2973 = vmatprep.subr.bf16.mxu0 0
          %2974 = vmatpush1.bf16.msra.mxu0 0
          %2975 = vmatprep.subr.bf16.mxu0 0
          %2976 = vmatpush1.bf16.msra.mxu0 0
          %2977 = vmatprep.subr.bf16.mxu0 0
          %2978 = vmatpush1.bf16.msra.mxu0 0
          %2979 = vmatprep.subr.bf16.mxu0 0
          %2980 = vmatpush1.bf16.msra.mxu0 0
          %2981 = vmatprep.subr.bf16.mxu0 0
          %2982 = vmatpush1.bf16.msra.mxu0 0
          %2983 = vmatprep.subr.bf16.mxu0 0
          %2984 = vmatpush1.bf16.msra.mxu0 0
          %2985 = vmatprep.subr.bf16.mxu0 0
          %2986 = vmatpush1.bf16.msra.mxu0 0
          %2987 = vmatprep.mubr.bf16.mxu0 0
          %2988 = vmatmul.mubr.bf16.gmra.mrb[0].mxu0 %v2953
          %v2989 = vpop.f32.mrb[0].mxu0
          %v2990 = vadd.f32 %v2926, %v2989
          %v2991 = vpop.f32.mrb[0].mxu0
          %v2992 = vpop.f32.mrb[0].mxu0
          %v2993 = vadd.f32 %v2926, %v2992
          %v2994 = vpop.f32.mrb[0].mxu0
          %2995 = vdwg.mxu0
          %v2996 = vmax.f32 %v2990, 0.0
          %v2997 = vmax.f32 %v2993, 0.0
          %v2998 = vld [vmem:[#allocation29] sm:$0xf]
          %v2999 = vld [vmem:[#allocation29 + $0x4] sm:$0xf]
          %v3000 = vld [vmem:[#allocation29 + $0x8] sm:$0xf]
          %v3001 = vld [vmem:[#allocation29 + $0xc] sm:$0xf]
          %v3002 = vld [vmem:[#allocation29 + $0x10] sm:$0xf]
          %v3003 = vld [vmem:[#allocation29 + $0x14] sm:$0xf]
          %v3004 = vld [vmem:[#allocation29 + $0x18] sm:$0xf]
          %v3005 = vld [vmem:[#allocation29 + $0x1c] sm:$0xf]
          %v3006 = vpack.c.bf16 %v2997, %v2996
          %v3007 = vld [vmem:[%s25] sm:$0x1]
          %v3009 = vlaneseq
          %v3010 = vshrl.u32 %v3009, 7
          %v3011 = vsub.s32 0, %v3010
          %v3012 = vrot.slane %v3007, %v3011
          %v3022 = vunpack.c.l.b16 %v2998
          %v3023 = vunpack.c.l.b16 %v2999
          %v3024 = vunpack.c.l.b16 %v3000
          %v3025 = vunpack.c.l.b16 %v3001
          %v3026 = vunpack.c.l.b16 %v3002
          %v3027 = vunpack.c.l.b16 %v3003
          %v3028 = vunpack.c.l.b16 %v3004
          %v3029 = vunpack.c.l.b16 %v3005
          %v3030 = vpack.c.b16 %v3023, %v3022
          %v3031 = vpack.c.b16 %v3025, %v3024
          %v3032 = vpack.c.b16 %v3027, %v3026
          %v3033 = vpack.c.b16 %v3029, %v3028
          %v3039 = vsel %vm2745, %v3006, 0
          %3041 = vmatprep.subr.bf16.mxu0 0
          %3042 = vmatpush1.bf16.msra.mxu0 %v3030
          %3043 = vmatprep.subr.bf16.mxu0 0
          %3044 = vmatpush1.bf16.msra.mxu0 %v3031
          %3045 = vmatprep.subr.bf16.mxu0 0
          %3046 = vmatpush1.bf16.msra.mxu0 %v3032
          %3047 = vmatprep.subr.bf16.mxu0 0
          %3048 = vmatpush1.bf16.msra.mxu0 %v3033
          %3049 = vmatprep.subr.bf16.mxu0 0
          %3050 = vmatpush1.bf16.msra.mxu0 0
          %3051 = vmatprep.subr.bf16.mxu0 0
          %3052 = vmatpush1.bf16.msra.mxu0 0
          %3053 = vmatprep.subr.bf16.mxu0 0
          %3054 = vmatpush1.bf16.msra.mxu0 0
          %3055 = vmatprep.subr.bf16.mxu0 0
          %3056 = vmatpush1.bf16.msra.mxu0 0
          %3057 = vmatprep.subr.bf16.mxu0 0
          %3058 = vmatpush1.bf16.msra.mxu0 0
          %3059 = vmatprep.subr.bf16.mxu0 0
          %3060 = vmatpush1.bf16.msra.mxu0 0
          %3061 = vmatprep.subr.bf16.mxu0 0
          %3062 = vmatpush1.bf16.msra.mxu0 0
          %3063 = vmatprep.subr.bf16.mxu0 0
          %3064 = vmatpush1.bf16.msra.mxu0 0
          %3065 = vmatprep.subr.bf16.mxu0 0
          %3066 = vmatpush1.bf16.msra.mxu0 0
          %3067 = vmatprep.subr.bf16.mxu0 0
          %3068 = vmatpush1.bf16.msra.mxu0 0
          %3069 = vmatprep.subr.bf16.mxu0 0
          %3070 = vmatpush1.bf16.msra.mxu0 0
          %3071 = vmatprep.subr.bf16.mxu0 0
          %3072 = vmatpush1.bf16.msra.mxu0 0
          %3073 = vmatprep.mubr.bf16.mxu0 0
          %3074 = vmatmul.mubr.bf16.gmra.mrb[0].mxu0 %v3039
          %v3075 = vpop.f32.mrb[0].mxu0
          %v3076 = vadd.f32 %v3012, %v3075
          %v3077 = vpop.f32.mrb[0].mxu0
          %v3078 = vpop.f32.mrb[0].mxu0
          %v3079 = vadd.f32 %v3012, %v3078
          %v3080 = vpop.f32.mrb[0].mxu0
          %3081 = vdwg.mxu0
          %v3082 = vadd.f32 %v2906, %v3076
          %v3083 = vadd.f32 %v2909, %v3079
          %v3084 = vpack.c.bf16 %v3083, %v3082
          %v3085 = vld [vmem:[%s26] sm:$0x1]
          %v3086 = vld [vmem:[#allocation5] sm:$0x1]
          %3088 = vset.pattern.permute.xlu0 0
          %3089 = vperm.xlu0 %3088, %v3086
          %v3090 = vpop.permute.xlu0 %3089
          %v3092 = vlaneseq
          %v3093 = vshrl.u32 %v3092, 7
          %v3094 = vsub.s32 0, %v3093
          %v3095 = vrot.slane %v3090, %v3094
          %v3097 = vsel %vm2745, %v3085, 0
          %v3100 = vsel %vm2745, %v3084, 0
          %3102 = vmatprep.subr.bf16.mxu0 0
          %3103 = vmatpush1.bf16.xpose.msra.mxu0 %v3100
          %3104 = vmatprep.subr.bf16.mxu0 0
          %3105 = vmatpush1.bf16.xpose.msra.mxu0 0
          %3106 = vmatprep.subr.bf16.mxu0 0
          %3107 = vmatpush1.bf16.xpose.msra.mxu0 0
          %3108 = vmatprep.subr.bf16.mxu0 0
          %3109 = vmatpush1.bf16.xpose.msra.mxu0 0
          %3110 = vmatprep.subr.bf16.mxu0 0
          %3111 = vmatpush1.bf16.xpose.msra.mxu0 0
          %3112 = vmatprep.subr.bf16.mxu0 0
          %3113 = vmatpush1.bf16.xpose.msra.mxu0 0
          %3114 = vmatprep.subr.bf16.mxu0 0
          %3115 = vmatpush1.bf16.xpose.msra.mxu0 0
          %3116 = vmatprep.subr.bf16.mxu0 0
          %3117 = vmatpush1.bf16.xpose.msra.mxu0 0
          %3118 = vmatprep.subr.bf16.mxu0 0
          %3119 = vmatpush1.bf16.xpose.msra.mxu0 0
          %3120 = vmatprep.subr.bf16.mxu0 0
          %3121 = vmatpush1.bf16.xpose.msra.mxu0 0
          %3122 = vmatprep.subr.bf16.mxu0 0
          %3123 = vmatpush1.bf16.xpose.msra.mxu0 0
          %3124 = vmatprep.subr.bf16.mxu0 0
          %3125 = vmatpush1.bf16.xpose.msra.mxu0 0
          %3126 = vmatprep.subr.bf16.mxu0 0
          %3127 = vmatpush1.bf16.xpose.msra.mxu0 0
          %3128 = vmatprep.subr.bf16.mxu0 0
          %3129 = vmatpush1.bf16.xpose.msra.mxu0 0
          %3130 = vmatprep.subr.bf16.mxu0 0
          %3131 = vmatpush1.bf16.xpose.msra.mxu0 0
          %3132 = vmatprep.subr.bf16.mxu0 0
          %3133 = vmatpush1.bf16.xpose.msra.mxu0 0
          %3134 = vmatprep.mubr.bf16.mxu0 0
          %3135 = vmatmul.mubr.bf16.gmra.mrb[0].mxu0 %v3097
          %v3136 = vpop.f32.mrb[0].mxu0
          %v3137 = vadd.f32 %v3095, %v3136
          %v3138 = vpop.f32.mrb[0].mxu0
          %v3139 = vpop.f32.mrb[0].mxu0
          %v3140 = vpop.f32.mrb[0].mxu0
          %3141 = vdwg.mxu0
          %vm3142 = vcmask 122880
          %3143 = vst.msk [vmem:[#allocation30] sm:$0x1] %vm3142, %v3137
        $region200: #{tpu_custom_call.1} parent=131 // pred_fallthru
          _
        // Predicated region
        $region201: #{tpu_custom_call.1} parent=131 // pred_check
          %p3144 = pneg %p683
        $region202: #{tpu_custom_call.1} parent=131 // pred_check_branch
          %3146 = sbr.rel (%p3144) target = $region204
        $region203: #{tpu_custom_call.1} parent=131 // pred_region
          %s3148 = ssub.s32 16, 16
          %3149 = vsyncadd [#allocation8], %s3148
          %s3150 = smul.addr %s54, 16
          %s3151 = scalar_lea.hbm %s28, %s3150
          %s3153 = sshll.u32 [#allocation30], 4
          %s3154 = int_to_ptr.vmem [resolvable:$true] %s3153
          %3156 = dma.vmem_to_hbm [thread:$0]  %s3154, 16, %s3151, [#allocation8]
        $region204: #{tpu_custom_call.1} parent=131 // pred_fallthru
          _
        // Predicated region
        $region205: #{tpu_custom_call.1} parent=131 // pred_check
          %p3157 = pneg %p683
        $region206: #{tpu_custom_call.1} parent=131 // pred_check_branch
          %3159 = sbr.rel (%p3157) target = $region208
        $region207: #{tpu_custom_call.1} parent=131 // pred_region
          %3160 = dma.done [#allocation8], 16
        $region208: #{tpu_custom_call.1} parent=131 // pred_fallthru
          _
      $region132: #{tpu_custom_call.1} parent=5 // pred_fallthru
        _
      %p3161 = scmp.le.s32.totalorder 2, %s45
      // Predicated region
      $region209: #{tpu_custom_call.1} parent=5 // pred_check
        %p3162 = pneg %p3161
      $region210: #{tpu_custom_call.1} parent=5 // pred_check_branch
        %3164 = sbr.rel (%p3162) target = $region212
      $region211: #{tpu_custom_call.1} parent=5 // pred_region
        %s3165 = ssub.s32 %s45, 2
      $region212: #{tpu_custom_call.1} parent=5 // pred_fallthru
        _
    $region6: #{tpu_custom_call.1} parent=1 // loop_footer
      %s49 = sadd.s32 1, %s45
    $region7: #{tpu_custom_call.1} parent=1 // loop_footer_branch
      %44 = sbr.rel target = $region3
    $region8: #{tpu_custom_call.1} parent=1 // loop_exit
      _
    %3166 = vsyncpa [#allocation7], 1
    %s3167 = scalar_lea.sflag [#allocation7], 1
    %3168 = vsyncpa %s3167, 1
    %3169 = vsyncpa [#allocation10], 1
    %3170 = vsyncpa [#allocation13], 1
    %3171 = vsyncpa [#allocation16], 1
    %3172 = vsyncpa [#allocation19], 1
    %3173 = vsyncpa [#allocation22], 1
    %3174 = vsyncpa [#allocation25], 1
    %3175 = vsyncpa [#allocation28], 1
    %3176 = vsyncpa [#allocation8], 1
    %s3177 = scalar_lea.sflag [#allocation8], 1
    %3178 = vsyncpa %s3177, 1

</llo_original>
